<compile_context>
chip_gen: v7x
topology: tpu7x:2x2x1
jax: 0.10.0
libtpu: 0.0.40
codegen_flags: <defaults>
</compile_context>

<pallas_src>
import numpy as np

import jax
import jax.numpy as jnp
from jax.experimental import pallas as pl
from jax.experimental.pallas import tpu as pltpu


# ----------------------------------------------------------------------------
# Fused Pallas kernel: whole LeNet forward, one invocation, all in VMEM.
# ----------------------------------------------------------------------------
def _lenet_kernel(xpad_ref,                      # (B, 32, 32)  zero-padded input
                  wb1_ref, b1_ref,               # (5, 32, 168), (1, 168)
                  pl1_ref, pr1_ref,              # (14, 28), (168, 84)
                  wb2_ref, b2_ref,               # (5, 84, 160), (1, 160)
                  pl2_ref, pr2_ref,              # (5, 10), (160, 80)
                  w1h_ref, bf1_ref,              # (5, 80, 120), (1, 120)
                  wf2_ref, bf2_ref,              # (120, 84), (1, 84)
                  wf3_ref, bf3_ref,              # (84, 10), (1, 10)
                  out_ref,                       # (B, 10)
                  p1_s, p2_s):                   # VMEM scratch (14, 84), (5, 80)
    B = xpad_ref.shape[0]

    def mm(a, b):
        return jnp.dot(a, b, preferred_element_type=jnp.float32)

    def sigmoid(v):
        return 1.0 / (1.0 + jnp.exp(-v))

    for b in range(B):
        # ---- conv1 (1->6, k=5, pad pre-applied) + sigmoid -------------------
        # acc1[i, 28*oc + j] = conv1 pre-activation at (oc, i, j).
        acc1 = mm(xpad_ref[b, 0:28, :], wb1_ref[0])
        for kh in range(1, 5):
            acc1 = acc1 + mm(xpad_ref[b, kh:kh + 28, :], wb1_ref[kh])
        h1 = sigmoid(acc1 + b1_ref[...])                        # (28, 168)

        # ---- avgpool 2x2 stride 2 as left/right pooling matmuls -------------
        p1_s[...] = mm(mm(pl1_ref[...], h1), pr1_ref[...])      # (14, 84)

        # ---- conv2 (6->16, k=5, valid) + sigmoid -----------------------------
        acc2 = mm(p1_s[0:10, :], wb2_ref[0])
        for kh in range(1, 5):
            acc2 = acc2 + mm(p1_s[kh:kh + 10, :], wb2_ref[kh])
        h2 = sigmoid(acc2 + b2_ref[...])                        # (10, 160)

        # ---- avgpool 2x2 ------------------------------------------------------
        p2_s[...] = mm(mm(pl2_ref[...], h2), pr2_ref[...])      # (5, 80)

        # ---- flatten + fc1 + sigmoid (flatten folded into w1h layout) -------
        z1 = mm(p2_s[0:1, :], w1h_ref[0])
        for h in range(1, 5):
            z1 = z1 + mm(p2_s[h:h + 1, :], w1h_ref[h])
        z1 = sigmoid(z1 + bf1_ref[...])                         # (1, 120)

        # ---- fc2 + sigmoid, fc3 (logits, no activation) ----------------------
        z2 = sigmoid(mm(z1, wf2_ref[...]) + bf2_ref[...])       # (1, 84)
        z3 = mm(z2, wf3_ref[...]) + bf3_ref[...]                # (1, 10)

        out_ref[b:b + 1, :] = z3


# ----------------------------------------------------------------------------
# One-time weight re-layout (numpy, outside the hot path / outside jit).
# ----------------------------------------------------------------------------
def _banded_conv_weight(w, in_w):
    """w: (OC, C, KH, KW) -> band (KH, C*in_w, OC*out_w) such that a stride-1
    conv over an activation matrix A (rows = height, cols = c*in_w + width)
    is   sum_kh  A[kh:kh+out_h, :] @ band[kh]."""
    oc_n, c_n, kh_n, kw_n = w.shape
    out_w = in_w - kw_n + 1
    band = np.zeros((kh_n, c_n * in_w, oc_n * out_w), np.float32)
    j = np.arange(out_w)
    for kh in range(kh_n):
        for oc in range(oc_n):
            for c in range(c_n):
                for kw in range(kw_n):
                    band[kh, c * in_w + j + kw, oc * out_w + j] = w[oc, c, kh, kw]
    return band


def _pool_left(n):
    """(n//2, n) matrix with 0.5 at [i//2, i]: averages row pairs."""
    m = np.zeros((n // 2, n), np.float32)
    m[np.arange(n) // 2, np.arange(n)] = 0.5
    return m


def _pool_right(n, ch):
    """(ch*n, ch*(n//2)) block-diagonal matrix averaging column pairs per
    channel block."""
    m = np.zeros((ch * n, ch * (n // 2)), np.float32)
    r = np.arange(ch * n)
    m[r, (r // n) * (n // 2) + (r % n) // 2] = 0.5
    return m


def prepare_params(params):
    """Re-layout PyTorch-style LeNet weights into kernel-ready form (done once)."""
    p = {k: np.asarray(v, np.float32) for k, v in params.items()}
    kp = {
        "wb1": _banded_conv_weight(p["conv1_w"], in_w=32),        # (5, 32, 168)
        "b1row": np.repeat(p["conv1_b"], 28)[None, :],            # (1, 168)
        "pl1": _pool_left(28),                                    # (14, 28)
        "pr1": _pool_right(28, 6),                                # (168, 84)
        "wb2": _banded_conv_weight(p["conv2_w"], in_w=14),        # (5, 84, 160)
        "b2row": np.repeat(p["conv2_b"], 10)[None, :],            # (1, 160)
        "pl2": _pool_left(10),                                    # (5, 10)
        "pr2": _pool_right(10, 16),                               # (160, 80)
        # fc1 input column m = 25*c + 5*h + w  -> blocks indexed by h so the
        # flatten is absorbed into 5 row-block matmuls:
        "w1h": p["fc1_w"].reshape(120, 16, 5, 5)
                          .transpose(2, 1, 3, 0).reshape(5, 80, 120),
        "bf1": p["fc1_b"][None, :],                               # (1, 120)
        "wf2": p["fc2_w"].T.copy(),                               # (120, 84)
        "bf2": p["fc2_b"][None, :],                               # (1, 84)
        "wf3": p["fc3_w"].T.copy(),                               # (84, 10)
        "bf3": p["fc3_b"][None, :],                               # (1, 10)
    }
    return {k: jnp.asarray(v) for k, v in kp.items()}


# ----------------------------------------------------------------------------
# Forward pass: pad input (only XLA glue) + one fused pallas_call.
# ----------------------------------------------------------------------------
@jax.jit
def lenet_forward(x, kp):
    """x: (B, 1, 28, 28) float32 NCHW -> logits (B, 10)."""
    xpad = jnp.pad(x[:, 0, :, :].astype(jnp.float32),
                   ((0, 0), (2, 2), (2, 2)))                      # (B, 32, 32)
    B = xpad.shape[0]
    return pl.pallas_call(
        _lenet_kernel,
        out_shape=jax.ShapeDtypeStruct((B, 10), jnp.float32),
        scratch_shapes=[
            pltpu.VMEM((14, 6 * 14), jnp.float32),   # pooled conv1 activations
            pltpu.VMEM((5, 16 * 5), jnp.float32),    # pooled conv2 activations
        ],
    )(
        xpad,
        kp["wb1"], kp["b1row"], kp["pl1"], kp["pr1"],
        kp["wb2"], kp["b2row"], kp["pl2"], kp["pr2"],
        kp["w1h"], kp["bf1"], kp["wf2"], kp["bf2"], kp["wf3"], kp["bf3"],
    )


# ----------------------------------------------------------------------------
# Plain-JAX reference (for a correctness check) and synthetic init.
# ----------------------------------------------------------------------------
def _avgpool2x2_ref(x):
    B, C, H, W = x.shape
    return x.reshape(B, C, H // 2, 2, W // 2, 2).mean(axis=(3, 5))


def reference_forward(x, params):
    with jax.default_matmul_precision("highest"):
        y = jax.lax.conv_general_dilated(
            x, params["conv1_w"], (1, 1), ((2, 2), (2, 2)),
            dimension_numbers=("NCHW", "OIHW", "NCHW"))
        y = jax.nn.sigmoid(y + params["conv1_b"][None, :, None, None])
        y = _avgpool2x2_ref(y)
        y = jax.lax.conv_general_dilated(
            y, params["conv2_w"], (1, 1), ((0, 0), (0, 0)),
            dimension_numbers=("NCHW", "OIHW", "NCHW"))
        y = jax.nn.sigmoid(y + params["conv2_b"][None, :, None, None])
        y = _avgpool2x2_ref(y)
        y = y.reshape(y.shape[0], -1)
        y = jax.nn.sigmoid(y @ params["fc1_w"].T + params["fc1_b"])
        y = jax.nn.sigmoid(y @ params["fc2_w"].T + params["fc2_b"])
        return y @ params["fc3_w"].T + params["fc3_b"]


def init_params(key):
    ks = jax.random.split(key, 10)
    s = 0.1  # deterministic synthetic init (PyTorch weight layouts)
    return {
        "conv1_w": s * jax.random.normal(ks[0], (6, 1, 5, 5), jnp.float32),
        "conv1_b": s * jax.random.normal(ks[1], (6,), jnp.float32),
        "conv2_w": s * jax.random.normal(ks[2], (16, 6, 5, 5), jnp.float32),
        "conv2_b": s * jax.random.normal(ks[3], (16,), jnp.float32),
        "fc1_w": s * jax.random.normal(ks[4], (120, 400), jnp.float32),
        "fc1_b": s * jax.random.normal(ks[5], (120,), jnp.float32),
        "fc2_w": s * jax.random.normal(ks[6], (84, 120), jnp.float32),
        "fc2_b": s * jax.random.normal(ks[7], (84,), jnp.float32),
        "fc3_w": s * jax.random.normal(ks[8], (10, 84), jnp.float32),
        "fc3_b": s * jax.random.normal(ks[9], (10,), jnp.float32),
    }


if __name__ == "__main__":
    key = jax.random.PRNGKey(0)
    k_x, k_p = jax.random.split(key)
    # LeNet requires 28x28 single-channel input so the flatten yields 16*5*5.
    x = jax.random.normal(k_x, (2, 1, 28, 28), jnp.float32)
    params = init_params(k_p)
    kparams = prepare_params(params)          # one-time weight re-layout

    out = jax.block_until_ready(lenet_forward(x, kparams))
    assert out.shape == (2, 10), out.shape
    assert bool(jnp.all(jnp.isfinite(out)))

    ref = jax.block_until_ready(reference_forward(x, params))
    assert bool(jnp.allclose(out, ref, atol=1e-2, rtol=1e-2)), (
        float(jnp.max(jnp.abs(out - ref))))
    print("KERNEL_OK")
</pallas_src>

<mosaic_0001>
module attributes {stable_mosaic.version = 11 : i64} {
  func.func @_lenet_kernel(%arg0: memref<2x32x32xf32, #tpu.memory_space<vmem>>, %arg1: memref<5x32x168xf32, #tpu.memory_space<vmem>>, %arg2: memref<1x168xf32, #tpu.memory_space<vmem>>, %arg3: memref<14x28xf32, #tpu.memory_space<vmem>>, %arg4: memref<168x84xf32, #tpu.memory_space<vmem>>, %arg5: memref<5x84x160xf32, #tpu.memory_space<vmem>>, %arg6: memref<1x160xf32, #tpu.memory_space<vmem>>, %arg7: memref<5x10xf32, #tpu.memory_space<vmem>>, %arg8: memref<160x80xf32, #tpu.memory_space<vmem>>, %arg9: memref<5x80x120xf32, #tpu.memory_space<vmem>>, %arg10: memref<1x120xf32, #tpu.memory_space<vmem>>, %arg11: memref<120x84xf32, #tpu.memory_space<vmem>>, %arg12: memref<1x84xf32, #tpu.memory_space<vmem>>, %arg13: memref<84x10xf32, #tpu.memory_space<vmem>>, %arg14: memref<1x10xf32, #tpu.memory_space<vmem>>, %arg15: memref<2x10xf32, #tpu.memory_space<vmem>>, %arg16: memref<14x84xf32, #tpu.memory_space<vmem>>, %arg17: memref<5x80xf32, #tpu.memory_space<vmem>>) attributes {dimension_semantics = [], scalar_prefetch = 0 : i64, scratch_operands = 2 : i64, tpu.core_type = #tpu.core_type<tc>} {
    %c0 = arith.constant 0 : index
    %c0_0 = arith.constant 0 : index
    %c0_1 = arith.constant 0 : index
    %0 = vector.load %arg0[%c0, %c0_0, %c0_1] : memref<2x32x32xf32, #tpu.memory_space<vmem>>, vector<1x28x32xf32>
    %1 = vector.shape_cast %0 : vector<1x28x32xf32> to vector<28x32xf32>
    %c0_2 = arith.constant 0 : index
    %c0_3 = arith.constant 0 : index
    %c0_4 = arith.constant 0 : index
    %2 = vector.load %arg1[%c0_2, %c0_3, %c0_4] : memref<5x32x168xf32, #tpu.memory_space<vmem>>, vector<1x32x168xf32>
    %3 = vector.shape_cast %2 : vector<1x32x168xf32> to vector<32x168xf32>
    %cst = arith.constant dense<0.000000e+00> : vector<28x168xf32>
    %4 = tpu.matmul %1, %3, %cst {dimension_numbers = #tpu.dot_dimension_numbers<[1], [0], [0], [1], [0, 0, 1, 1], [], []>} : vector<28x32xf32>, vector<32x168xf32>, vector<28x168xf32> -> vector<28x168xf32>
    %c0_5 = arith.constant 0 : index
    %c1 = arith.constant 1 : index
    %c0_6 = arith.constant 0 : index
    %5 = vector.load %arg0[%c0_5, %c1, %c0_6] : memref<2x32x32xf32, #tpu.memory_space<vmem>>, vector<1x28x32xf32>
    %6 = vector.shape_cast %5 : vector<1x28x32xf32> to vector<28x32xf32>
    %c1_7 = arith.constant 1 : index
    %c0_8 = arith.constant 0 : index
    %c0_9 = arith.constant 0 : index
    %7 = vector.load %arg1[%c1_7, %c0_8, %c0_9] : memref<5x32x168xf32, #tpu.memory_space<vmem>>, vector<1x32x168xf32>
    %8 = vector.shape_cast %7 : vector<1x32x168xf32> to vector<32x168xf32>
    %cst_10 = arith.constant dense<0.000000e+00> : vector<28x168xf32>
    %9 = tpu.matmul %6, %8, %cst_10 {dimension_numbers = #tpu.dot_dimension_numbers<[1], [0], [0], [1], [0, 0, 1, 1], [], []>} : vector<28x32xf32>, vector<32x168xf32>, vector<28x168xf32> -> vector<28x168xf32>
    %10 = arith.addf %4, %9 : vector<28x168xf32>
    %c0_11 = arith.constant 0 : index
    %c2 = arith.constant 2 : index
    %c0_12 = arith.constant 0 : index
    %11 = vector.load %arg0[%c0_11, %c2, %c0_12] : memref<2x32x32xf32, #tpu.memory_space<vmem>>, vector<1x28x32xf32>
    %12 = vector.shape_cast %11 : vector<1x28x32xf32> to vector<28x32xf32>
    %c2_13 = arith.constant 2 : index
    %c0_14 = arith.constant 0 : index
    %c0_15 = arith.constant 0 : index
    %13 = vector.load %arg1[%c2_13, %c0_14, %c0_15] : memref<5x32x168xf32, #tpu.memory_space<vmem>>, vector<1x32x168xf32>
    %14 = vector.shape_cast %13 : vector<1x32x168xf32> to vector<32x168xf32>
    %cst_16 = arith.constant dense<0.000000e+00> : vector<28x168xf32>
    %15 = tpu.matmul %12, %14, %cst_16 {dimension_numbers = #tpu.dot_dimension_numbers<[1], [0], [0], [1], [0, 0, 1, 1], [], []>} : vector<28x32xf32>, vector<32x168xf32>, vector<28x168xf32> -> vector<28x168xf32>
    %16 = arith.addf %10, %15 : vector<28x168xf32>
    %c0_17 = arith.constant 0 : index
    %c3 = arith.constant 3 : index
    %c0_18 = arith.constant 0 : index
    %17 = vector.load %arg0[%c0_17, %c3, %c0_18] : memref<2x32x32xf32, #tpu.memory_space<vmem>>, vector<1x28x32xf32>
    %18 = vector.shape_cast %17 : vector<1x28x32xf32> to vector<28x32xf32>
    %c3_19 = arith.constant 3 : index
    %c0_20 = arith.constant 0 : index
    %c0_21 = arith.constant 0 : index
    %19 = vector.load %arg1[%c3_19, %c0_20, %c0_21] : memref<5x32x168xf32, #tpu.memory_space<vmem>>, vector<1x32x168xf32>
    %20 = vector.shape_cast %19 : vector<1x32x168xf32> to vector<32x168xf32>
    %cst_22 = arith.constant dense<0.000000e+00> : vector<28x168xf32>
    %21 = tpu.matmul %18, %20, %cst_22 {dimension_numbers = #tpu.dot_dimension_numbers<[1], [0], [0], [1], [0, 0, 1, 1], [], []>} : vector<28x32xf32>, vector<32x168xf32>, vector<28x168xf32> -> vector<28x168xf32>
    %22 = arith.addf %16, %21 : vector<28x168xf32>
    %c0_23 = arith.constant 0 : index
    %c4 = arith.constant 4 : index
    %c0_24 = arith.constant 0 : index
    %23 = vector.load %arg0[%c0_23, %c4, %c0_24] : memref<2x32x32xf32, #tpu.memory_space<vmem>>, vector<1x28x32xf32>
    %24 = vector.shape_cast %23 : vector<1x28x32xf32> to vector<28x32xf32>
    %c4_25 = arith.constant 4 : index
    %c0_26 = arith.constant 0 : index
    %c0_27 = arith.constant 0 : index
    %25 = vector.load %arg1[%c4_25, %c0_26, %c0_27] : memref<5x32x168xf32, #tpu.memory_space<vmem>>, vector<1x32x168xf32>
    %26 = vector.shape_cast %25 : vector<1x32x168xf32> to vector<32x168xf32>
    %cst_28 = arith.constant dense<0.000000e+00> : vector<28x168xf32>
    %27 = tpu.matmul %24, %26, %cst_28 {dimension_numbers = #tpu.dot_dimension_numbers<[1], [0], [0], [1], [0, 0, 1, 1], [], []>} : vector<28x32xf32>, vector<32x168xf32>, vector<28x168xf32> -> vector<28x168xf32>
    %28 = arith.addf %22, %27 : vector<28x168xf32>
    %c0_29 = arith.constant 0 : index
    %c0_30 = arith.constant 0 : index
    %29 = vector.load %arg2[%c0_29, %c0_30] : memref<1x168xf32, #tpu.memory_space<vmem>>, vector<1x168xf32>
    %30 = vector.broadcast %29 : vector<1x168xf32> to vector<28x168xf32>
    %31 = arith.addf %28, %30 : vector<28x168xf32>
    %cst_31 = arith.constant 0.000000e+00 : f32
    %32 = vector.broadcast %cst_31 : f32 to vector<28x168xf32>
    %33 = arith.subf %32, %31 : vector<28x168xf32>
    %34 = math.exp %33 : vector<28x168xf32>
    %cst_32 = arith.constant 1.000000e+00 : f32
    %35 = vector.broadcast %cst_32 : f32 to vector<28x168xf32>
    %36 = arith.addf %35, %34 : vector<28x168xf32>
    %cst_33 = arith.constant 1.000000e+00 : f32
    %37 = vector.broadcast %cst_33 : f32 to vector<28x168xf32>
    %38 = arith.divf %37, %36 : vector<28x168xf32>
    %c0_34 = arith.constant 0 : index
    %c0_35 = arith.constant 0 : index
    %39 = vector.load %arg3[%c0_34, %c0_35] : memref<14x28xf32, #tpu.memory_space<vmem>>, vector<14x28xf32>
    %cst_36 = arith.constant dense<0.000000e+00> : vector<14x168xf32>
    %40 = tpu.matmul %39, %38, %cst_36 {dimension_numbers = #tpu.dot_dimension_numbers<[1], [0], [0], [1], [0, 0, 1, 1], [], []>} : vector<14x28xf32>, vector<28x168xf32>, vector<14x168xf32> -> vector<14x168xf32>
    %c0_37 = arith.constant 0 : index
    %c0_38 = arith.constant 0 : index
    %41 = vector.load %arg4[%c0_37, %c0_38] : memref<168x84xf32, #tpu.memory_space<vmem>>, vector<168x84xf32>
    %cst_39 = arith.constant dense<0.000000e+00> : vector<14x84xf32>
    %42 = tpu.matmul %40, %41, %cst_39 {dimension_numbers = #tpu.dot_dimension_numbers<[1], [0], [0], [1], [0, 0, 1, 1], [], []>} : vector<14x168xf32>, vector<168x84xf32>, vector<14x84xf32> -> vector<14x84xf32>
    %c0_40 = arith.constant 0 : index
    %c0_41 = arith.constant 0 : index
    %43 = vector.load %arg16[%c0_40, %c0_41] : memref<14x84xf32, #tpu.memory_space<vmem>>, vector<14x84xf32>
    tpu.vector_store %arg16[%c0_40, %c0_41], %42 {strides = array<i32>} : memref<14x84xf32, #tpu.memory_space<vmem>>, vector<14x84xf32>,
    %c0_42 = arith.constant 0 : index
    %c0_43 = arith.constant 0 : index
    %44 = vector.load %arg16[%c0_42, %c0_43] : memref<14x84xf32, #tpu.memory_space<vmem>>, vector<10x84xf32>
    %c0_44 = arith.constant 0 : index
    %c0_45 = arith.constant 0 : index
    %c0_46 = arith.constant 0 : index
    %45 = vector.load %arg5[%c0_44, %c0_45, %c0_46] : memref<5x84x160xf32, #tpu.memory_space<vmem>>, vector<1x84x160xf32>
    %46 = vector.shape_cast %45 : vector<1x84x160xf32> to vector<84x160xf32>
    %cst_47 = arith.constant dense<0.000000e+00> : vector<10x160xf32>
    %47 = tpu.matmul %44, %46, %cst_47 {dimension_numbers = #tpu.dot_dimension_numbers<[1], [0], [0], [1], [0, 0, 1, 1], [], []>} : vector<10x84xf32>, vector<84x160xf32>, vector<10x160xf32> -> vector<10x160xf32>
    %c1_48 = arith.constant 1 : index
    %c0_49 = arith.constant 0 : index
    %48 = vector.load %arg16[%c1_48, %c0_49] : memref<14x84xf32, #tpu.memory_space<vmem>>, vector<10x84xf32>
    %c1_50 = arith.constant 1 : index
    %c0_51 = arith.constant 0 : index
    %c0_52 = arith.constant 0 : index
    %49 = vector.load %arg5[%c1_50, %c0_51, %c0_52] : memref<5x84x160xf32, #tpu.memory_space<vmem>>, vector<1x84x160xf32>
    %50 = vector.shape_cast %49 : vector<1x84x160xf32> to vector<84x160xf32>
    %cst_53 = arith.constant dense<0.000000e+00> : vector<10x160xf32>
    %51 = tpu.matmul %48, %50, %cst_53 {dimension_numbers = #tpu.dot_dimension_numbers<[1], [0], [0], [1], [0, 0, 1, 1], [], []>} : vector<10x84xf32>, vector<84x160xf32>, vector<10x160xf32> -> vector<10x160xf32>
    %52 = arith.addf %47, %51 : vector<10x160xf32>
    %c2_54 = arith.constant 2 : index
    %c0_55 = arith.constant 0 : index
    %53 = vector.load %arg16[%c2_54, %c0_55] : memref<14x84xf32, #tpu.memory_space<vmem>>, vector<10x84xf32>
    %c2_56 = arith.constant 2 : index
    %c0_57 = arith.constant 0 : index
    %c0_58 = arith.constant 0 : index
    %54 = vector.load %arg5[%c2_56, %c0_57, %c0_58] : memref<5x84x160xf32, #tpu.memory_space<vmem>>, vector<1x84x160xf32>
    %55 = vector.shape_cast %54 : vector<1x84x160xf32> to vector<84x160xf32>
    %cst_59 = arith.constant dense<0.000000e+00> : vector<10x160xf32>
    %56 = tpu.matmul %53, %55, %cst_59 {dimension_numbers = #tpu.dot_dimension_numbers<[1], [0], [0], [1], [0, 0, 1, 1], [], []>} : vector<10x84xf32>, vector<84x160xf32>, vector<10x160xf32> -> vector<10x160xf32>
    %57 = arith.addf %52, %56 : vector<10x160xf32>
    %c3_60 = arith.constant 3 : index
    %c0_61 = arith.constant 0 : index
    %58 = vector.load %arg16[%c3_60, %c0_61] : memref<14x84xf32, #tpu.memory_space<vmem>>, vector<10x84xf32>
    %c3_62 = arith.constant 3 : index
    %c0_63 = arith.constant 0 : index
    %c0_64 = arith.constant 0 : index
    %59 = vector.load %arg5[%c3_62, %c0_63, %c0_64] : memref<5x84x160xf32, #tpu.memory_space<vmem>>, vector<1x84x160xf32>
    %60 = vector.shape_cast %59 : vector<1x84x160xf32> to vector<84x160xf32>
    %cst_65 = arith.constant dense<0.000000e+00> : vector<10x160xf32>
    %61 = tpu.matmul %58, %60, %cst_65 {dimension_numbers = #tpu.dot_dimension_numbers<[1], [0], [0], [1], [0, 0, 1, 1], [], []>} : vector<10x84xf32>, vector<84x160xf32>, vector<10x160xf32> -> vector<10x160xf32>
    %62 = arith.addf %57, %61 : vector<10x160xf32>
    %c4_66 = arith.constant 4 : index
    %c0_67 = arith.constant 0 : index
    %63 = vector.load %arg16[%c4_66, %c0_67] : memref<14x84xf32, #tpu.memory_space<vmem>>, vector<10x84xf32>
    %c4_68 = arith.constant 4 : index
    %c0_69 = arith.constant 0 : index
    %c0_70 = arith.constant 0 : index
    %64 = vector.load %arg5[%c4_68, %c0_69, %c0_70] : memref<5x84x160xf32, #tpu.memory_space<vmem>>, vector<1x84x160xf32>
    %65 = vector.shape_cast %64 : vector<1x84x160xf32> to vector<84x160xf32>
    %cst_71 = arith.constant dense<0.000000e+00> : vector<10x160xf32>
    %66 = tpu.matmul %63, %65, %cst_71 {dimension_numbers = #tpu.dot_dimension_numbers<[1], [0], [0], [1], [0, 0, 1, 1], [], []>} : vector<10x84xf32>, vector<84x160xf32>, vector<10x160xf32> -> vector<10x160xf32>
    %67 = arith.addf %62, %66 : vector<10x160xf32>
    %c0_72 = arith.constant 0 : index
    %c0_73 = arith.constant 0 : index
    %68 = vector.load %arg6[%c0_72, %c0_73] : memref<1x160xf32, #tpu.memory_space<vmem>>, vector<1x160xf32>
    %69 = vector.broadcast %68 : vector<1x160xf32> to vector<10x160xf32>
    %70 = arith.addf %67, %69 : vector<10x160xf32>
    %cst_74 = arith.constant 0.000000e+00 : f32
    %71 = vector.broadcast %cst_74 : f32 to vector<10x160xf32>
    %72 = arith.subf %71, %70 : vector<10x160xf32>
    %73 = math.exp %72 : vector<10x160xf32>
    %cst_75 = arith.constant 1.000000e+00 : f32
    %74 = vector.broadcast %cst_75 : f32 to vector<10x160xf32>
    %75 = arith.addf %74, %73 : vector<10x160xf32>
    %cst_76 = arith.constant 1.000000e+00 : f32
    %76 = vector.broadcast %cst_76 : f32 to vector<10x160xf32>
    %77 = arith.divf %76, %75 : vector<10x160xf32>
    %c0_77 = arith.constant 0 : index
    %c0_78 = arith.constant 0 : index
    %78 = vector.load %arg7[%c0_77, %c0_78] : memref<5x10xf32, #tpu.memory_space<vmem>>, vector<5x10xf32>
    %cst_79 = arith.constant dense<0.000000e+00> : vector<5x160xf32>
    %79 = tpu.matmul %78, %77, %cst_79 {dimension_numbers = #tpu.dot_dimension_numbers<[1], [0], [0], [1], [0, 0, 1, 1], [], []>} : vector<5x10xf32>, vector<10x160xf32>, vector<5x160xf32> -> vector<5x160xf32>
    %c0_80 = arith.constant 0 : index
    %c0_81 = arith.constant 0 : index
    %80 = vector.load %arg8[%c0_80, %c0_81] : memref<160x80xf32, #tpu.memory_space<vmem>>, vector<160x80xf32>
    %cst_82 = arith.constant dense<0.000000e+00> : vector<5x80xf32>
    %81 = tpu.matmul %79, %80, %cst_82 {dimension_numbers = #tpu.dot_dimension_numbers<[1], [0], [0], [1], [0, 0, 1, 1], [], []>} : vector<5x160xf32>, vector<160x80xf32>, vector<5x80xf32> -> vector<5x80xf32>
    %c0_83 = arith.constant 0 : index
    %c0_84 = arith.constant 0 : index
    %82 = vector.load %arg17[%c0_83, %c0_84] : memref<5x80xf32, #tpu.memory_space<vmem>>, vector<5x80xf32>
    tpu.vector_store %arg17[%c0_83, %c0_84], %81 {strides = array<i32>} : memref<5x80xf32, #tpu.memory_space<vmem>>, vector<5x80xf32>,
    %c0_85 = arith.constant 0 : index
    %c0_86 = arith.constant 0 : index
    %83 = vector.load %arg17[%c0_85, %c0_86] : memref<5x80xf32, #tpu.memory_space<vmem>>, vector<1x80xf32>
    %c0_87 = arith.constant 0 : index
    %c0_88 = arith.constant 0 : index
    %c0_89 = arith.constant 0 : index
    %84 = vector.load %arg9[%c0_87, %c0_88, %c0_89] : memref<5x80x120xf32, #tpu.memory_space<vmem>>, vector<1x80x120xf32>
    %85 = vector.shape_cast %84 : vector<1x80x120xf32> to vector<80x120xf32>
    %cst_90 = arith.constant dense<0.000000e+00> : vector<1x120xf32>
    %86 = tpu.matmul %83, %85, %cst_90 {dimension_numbers = #tpu.dot_dimension_numbers<[1], [0], [0], [1], [0, 0, 1, 1], [], []>} : vector<1x80xf32>, vector<80x120xf32>, vector<1x120xf32> -> vector<1x120xf32>
    %c1_91 = arith.constant 1 : index
    %c0_92 = arith.constant 0 : index
    %87 = vector.load %arg17[%c1_91, %c0_92] : memref<5x80xf32, #tpu.memory_space<vmem>>, vector<1x80xf32>
    %c1_93 = arith.constant 1 : index
    %c0_94 = arith.constant 0 : index
    %c0_95 = arith.constant 0 : index
    %88 = vector.load %arg9[%c1_93, %c0_94, %c0_95] : memref<5x80x120xf32, #tpu.memory_space<vmem>>, vector<1x80x120xf32>
    %89 = vector.shape_cast %88 : vector<1x80x120xf32> to vector<80x120xf32>
    %cst_96 = arith.constant dense<0.000000e+00> : vector<1x120xf32>
    %90 = tpu.matmul %87, %89, %cst_96 {dimension_numbers = #tpu.dot_dimension_numbers<[1], [0], [0], [1], [0, 0, 1, 1], [], []>} : vector<1x80xf32>, vector<80x120xf32>, vector<1x120xf32> -> vector<1x120xf32>
    %91 = arith.addf %86, %90 : vector<1x120xf32>
    %c2_97 = arith.constant 2 : index
    %c0_98 = arith.constant 0 : index
    %92 = vector.load %arg17[%c2_97, %c0_98] : memref<5x80xf32, #tpu.memory_space<vmem>>, vector<1x80xf32>
    %c2_99 = arith.constant 2 : index
    %c0_100 = arith.constant 0 : index
    %c0_101 = arith.constant 0 : index
    %93 = vector.load %arg9[%c2_99, %c0_100, %c0_101] : memref<5x80x120xf32, #tpu.memory_space<vmem>>, vector<1x80x120xf32>
    %94 = vector.shape_cast %93 : vector<1x80x120xf32> to vector<80x120xf32>
    %cst_102 = arith.constant dense<0.000000e+00> : vector<1x120xf32>
    %95 = tpu.matmul %92, %94, %cst_102 {dimension_numbers = #tpu.dot_dimension_numbers<[1], [0], [0], [1], [0, 0, 1, 1], [], []>} : vector<1x80xf32>, vector<80x120xf32>, vector<1x120xf32> -> vector<1x120xf32>
    %96 = arith.addf %91, %95 : vector<1x120xf32>
    %c3_103 = arith.constant 3 : index
    %c0_104 = arith.constant 0 : index
    %97 = vector.load %arg17[%c3_103, %c0_104] : memref<5x80xf32, #tpu.memory_space<vmem>>, vector<1x80xf32>
    %c3_105 = arith.constant 3 : index
    %c0_106 = arith.constant 0 : index
    %c0_107 = arith.constant 0 : index
    %98 = vector.load %arg9[%c3_105, %c0_106, %c0_107] : memref<5x80x120xf32, #tpu.memory_space<vmem>>, vector<1x80x120xf32>
    %99 = vector.shape_cast %98 : vector<1x80x120xf32> to vector<80x120xf32>
    %cst_108 = arith.constant dense<0.000000e+00> : vector<1x120xf32>
    %100 = tpu.matmul %97, %99, %cst_108 {dimension_numbers = #tpu.dot_dimension_numbers<[1], [0], [0], [1], [0, 0, 1, 1], [], []>} : vector<1x80xf32>, vector<80x120xf32>, vector<1x120xf32> -> vector<1x120xf32>
    %101 = arith.addf %96, %100 : vector<1x120xf32>
    %c4_109 = arith.constant 4 : index
    %c0_110 = arith.constant 0 : index
    %102 = vector.load %arg17[%c4_109, %c0_110] : memref<5x80xf32, #tpu.memory_space<vmem>>, vector<1x80xf32>
    %c4_111 = arith.constant 4 : index
    %c0_112 = arith.constant 0 : index
    %c0_113 = arith.constant 0 : index
    %103 = vector.load %arg9[%c4_111, %c0_112, %c0_113] : memref<5x80x120xf32, #tpu.memory_space<vmem>>, vector<1x80x120xf32>
    %104 = vector.shape_cast %103 : vector<1x80x120xf32> to vector<80x120xf32>
    %cst_114 = arith.constant dense<0.000000e+00> : vector<1x120xf32>
    %105 = tpu.matmul %102, %104, %cst_114 {dimension_numbers = #tpu.dot_dimension_numbers<[1], [0], [0], [1], [0, 0, 1, 1], [], []>} : vector<1x80xf32>, vector<80x120xf32>, vector<1x120xf32> -> vector<1x120xf32>
    %106 = arith.addf %101, %105 : vector<1x120xf32>
    %c0_115 = arith.constant 0 : index
    %c0_116 = arith.constant 0 : index
    %107 = vector.load %arg10[%c0_115, %c0_116] : memref<1x120xf32, #tpu.memory_space<vmem>>, vector<1x120xf32>
    %108 = arith.addf %106, %107 : vector<1x120xf32>
    %cst_117 = arith.constant 0.000000e+00 : f32
    %109 = vector.broadcast %cst_117 : f32 to vector<1x120xf32>
    %110 = arith.subf %109, %108 : vector<1x120xf32>
    %111 = math.exp %110 : vector<1x120xf32>
    %cst_118 = arith.constant 1.000000e+00 : f32
    %112 = vector.broadcast %cst_118 : f32 to vector<1x120xf32>
    %113 = arith.addf %112, %111 : vector<1x120xf32>
    %cst_119 = arith.constant 1.000000e+00 : f32
    %114 = vector.broadcast %cst_119 : f32 to vector<1x120xf32>
    %115 = arith.divf %114, %113 : vector<1x120xf32>
    %c0_120 = arith.constant 0 : index
    %c0_121 = arith.constant 0 : index
    %116 = vector.load %arg11[%c0_120, %c0_121] : memref<120x84xf32, #tpu.memory_space<vmem>>, vector<120x84xf32>
    %cst_122 = arith.constant dense<0.000000e+00> : vector<1x84xf32>
    %117 = tpu.matmul %115, %116, %cst_122 {dimension_numbers = #tpu.dot_dimension_numbers<[1], [0], [0], [1], [0, 0, 1, 1], [], []>} : vector<1x120xf32>, vector<120x84xf32>, vector<1x84xf32> -> vector<1x84xf32>
    %c0_123 = arith.constant 0 : index
    %c0_124 = arith.constant 0 : index
    %118 = vector.load %arg12[%c0_123, %c0_124] : memref<1x84xf32, #tpu.memory_space<vmem>>, vector<1x84xf32>
    %119 = arith.addf %117, %118 : vector<1x84xf32>
    %cst_125 = arith.constant 0.000000e+00 : f32
    %120 = vector.broadcast %cst_125 : f32 to vector<1x84xf32>
    %121 = arith.subf %120, %119 : vector<1x84xf32>
    %122 = math.exp %121 : vector<1x84xf32>
    %cst_126 = arith.constant 1.000000e+00 : f32
    %123 = vector.broadcast %cst_126 : f32 to vector<1x84xf32>
    %124 = arith.addf %123, %122 : vector<1x84xf32>
    %cst_127 = arith.constant 1.000000e+00 : f32
    %125 = vector.broadcast %cst_127 : f32 to vector<1x84xf32>
    %126 = arith.divf %125, %124 : vector<1x84xf32>
    %c0_128 = arith.constant 0 : index
    %c0_129 = arith.constant 0 : index
    %127 = vector.load %arg13[%c0_128, %c0_129] : memref<84x10xf32, #tpu.memory_space<vmem>>, vector<84x10xf32>
    %cst_130 = arith.constant dense<0.000000e+00> : vector<1x10xf32>
    %128 = tpu.matmul %126, %127, %cst_130 {dimension_numbers = #tpu.dot_dimension_numbers<[1], [0], [0], [1], [0, 0, 1, 1], [], []>} : vector<1x84xf32>, vector<84x10xf32>, vector<1x10xf32> -> vector<1x10xf32>
    %c0_131 = arith.constant 0 : index
    %c0_132 = arith.constant 0 : index
    %129 = vector.load %arg14[%c0_131, %c0_132] : memref<1x10xf32, #tpu.memory_space<vmem>>, vector<1x10xf32>
    %130 = arith.addf %128, %129 : vector<1x10xf32>
    %c0_133 = arith.constant 0 : index
    %c0_134 = arith.constant 0 : index
    %131 = vector.load %arg15[%c0_133, %c0_134] : memref<2x10xf32, #tpu.memory_space<vmem>>, vector<1x10xf32>
    tpu.vector_store %arg15[%c0_133, %c0_134], %130 {strides = array<i32>} : memref<2x10xf32, #tpu.memory_space<vmem>>, vector<1x10xf32>,
    %c1_135 = arith.constant 1 : index
    %c0_136 = arith.constant 0 : index
    %c0_137 = arith.constant 0 : index
    %132 = vector.load %arg0[%c1_135, %c0_136, %c0_137] : memref<2x32x32xf32, #tpu.memory_space<vmem>>, vector<1x28x32xf32>
    %133 = vector.shape_cast %132 : vector<1x28x32xf32> to vector<28x32xf32>
    %c0_138 = arith.constant 0 : index
    %c0_139 = arith.constant 0 : index
    %c0_140 = arith.constant 0 : index
    %134 = vector.load %arg1[%c0_138, %c0_139, %c0_140] : memref<5x32x168xf32, #tpu.memory_space<vmem>>, vector<1x32x168xf32>
    %135 = vector.shape_cast %134 : vector<1x32x168xf32> to vector<32x168xf32>
    %cst_141 = arith.constant dense<0.000000e+00> : vector<28x168xf32>
    %136 = tpu.matmul %133, %135, %cst_141 {dimension_numbers = #tpu.dot_dimension_numbers<[1], [0], [0], [1], [0, 0, 1, 1], [], []>} : vector<28x32xf32>, vector<32x168xf32>, vector<28x168xf32> -> vector<28x168xf32>
    %c1_142 = arith.constant 1 : index
    %c1_143 = arith.constant 1 : index
    %c0_144 = arith.constant 0 : index
    %137 = vector.load %arg0[%c1_142, %c1_143, %c0_144] : memref<2x32x32xf32, #tpu.memory_space<vmem>>, vector<1x28x32xf32>
    %138 = vector.shape_cast %137 : vector<1x28x32xf32> to vector<28x32xf32>
    %c1_145 = arith.constant 1 : index
    %c0_146 = arith.constant 0 : index
    %c0_147 = arith.constant 0 : index
    %139 = vector.load %arg1[%c1_145, %c0_146, %c0_147] : memref<5x32x168xf32, #tpu.memory_space<vmem>>, vector<1x32x168xf32>
    %140 = vector.shape_cast %139 : vector<1x32x168xf32> to vector<32x168xf32>
    %cst_148 = arith.constant dense<0.000000e+00> : vector<28x168xf32>
    %141 = tpu.matmul %138, %140, %cst_148 {dimension_numbers = #tpu.dot_dimension_numbers<[1], [0], [0], [1], [0, 0, 1, 1], [], []>} : vector<28x32xf32>, vector<32x168xf32>, vector<28x168xf32> -> vector<28x168xf32>
    %142 = arith.addf %136, %141 : vector<28x168xf32>
    %c1_149 = arith.constant 1 : index
    %c2_150 = arith.constant 2 : index
    %c0_151 = arith.constant 0 : index
    %143 = vector.load %arg0[%c1_149, %c2_150, %c0_151] : memref<2x32x32xf32, #tpu.memory_space<vmem>>, vector<1x28x32xf32>
    %144 = vector.shape_cast %143 : vector<1x28x32xf32> to vector<28x32xf32>
    %c2_152 = arith.constant 2 : index
    %c0_153 = arith.constant 0 : index
    %c0_154 = arith.constant 0 : index
    %145 = vector.load %arg1[%c2_152, %c0_153, %c0_154] : memref<5x32x168xf32, #tpu.memory_space<vmem>>, vector<1x32x168xf32>
    %146 = vector.shape_cast %145 : vector<1x32x168xf32> to vector<32x168xf32>
    %cst_155 = arith.constant dense<0.000000e+00> : vector<28x168xf32>
    %147 = tpu.matmul %144, %146, %cst_155 {dimension_numbers = #tpu.dot_dimension_numbers<[1], [0], [0], [1], [0, 0, 1, 1], [], []>} : vector<28x32xf32>, vector<32x168xf32>, vector<28x168xf32> -> vector<28x168xf32>
    %148 = arith.addf %142, %147 : vector<28x168xf32>
    %c1_156 = arith.constant 1 : index
    %c3_157 = arith.constant 3 : index
    %c0_158 = arith.constant 0 : index
    %149 = vector.load %arg0[%c1_156, %c3_157, %c0_158] : memref<2x32x32xf32, #tpu.memory_space<vmem>>, vector<1x28x32xf32>
    %150 = vector.shape_cast %149 : vector<1x28x32xf32> to vector<28x32xf32>
    %c3_159 = arith.constant 3 : index
    %c0_160 = arith.constant 0 : index
    %c0_161 = arith.constant 0 : index
    %151 = vector.load %arg1[%c3_159, %c0_160, %c0_161] : memref<5x32x168xf32, #tpu.memory_space<vmem>>, vector<1x32x168xf32>
    %152 = vector.shape_cast %151 : vector<1x32x168xf32> to vector<32x168xf32>
    %cst_162 = arith.constant dense<0.000000e+00> : vector<28x168xf32>
    %153 = tpu.matmul %150, %152, %cst_162 {dimension_numbers = #tpu.dot_dimension_numbers<[1], [0], [0], [1], [0, 0, 1, 1], [], []>} : vector<28x32xf32>, vector<32x168xf32>, vector<28x168xf32> -> vector<28x168xf32>
    %154 = arith.addf %148, %153 : vector<28x168xf32>
    %c1_163 = arith.constant 1 : index
    %c4_164 = arith.constant 4 : index
    %c0_165 = arith.constant 0 : index
    %155 = vector.load %arg0[%c1_163, %c4_164, %c0_165] : memref<2x32x32xf32, #tpu.memory_space<vmem>>, vector<1x28x32xf32>
    %156 = vector.shape_cast %155 : vector<1x28x32xf32> to vector<28x32xf32>
    %c4_166 = arith.constant 4 : index
    %c0_167 = arith.constant 0 : index
    %c0_168 = arith.constant 0 : index
    %157 = vector.load %arg1[%c4_166, %c0_167, %c0_168] : memref<5x32x168xf32, #tpu.memory_space<vmem>>, vector<1x32x168xf32>
    %158 = vector.shape_cast %157 : vector<1x32x168xf32> to vector<32x168xf32>
    %cst_169 = arith.constant dense<0.000000e+00> : vector<28x168xf32>
    %159 = tpu.matmul %156, %158, %cst_169 {dimension_numbers = #tpu.dot_dimension_numbers<[1], [0], [0], [1], [0, 0, 1, 1], [], []>} : vector<28x32xf32>, vector<32x168xf32>, vector<28x168xf32> -> vector<28x168xf32>
    %160 = arith.addf %154, %159 : vector<28x168xf32>
    %c0_170 = arith.constant 0 : index
    %c0_171 = arith.constant 0 : index
    %161 = vector.load %arg2[%c0_170, %c0_171] : memref<1x168xf32, #tpu.memory_space<vmem>>, vector<1x168xf32>
    %162 = vector.broadcast %161 : vector<1x168xf32> to vector<28x168xf32>
    %163 = arith.addf %160, %162 : vector<28x168xf32>
    %cst_172 = arith.constant 0.000000e+00 : f32
    %164 = vector.broadcast %cst_172 : f32 to vector<28x168xf32>
    %165 = arith.subf %164, %163 : vector<28x168xf32>
    %166 = math.exp %165 : vector<28x168xf32>
    %cst_173 = arith.constant 1.000000e+00 : f32
    %167 = vector.broadcast %cst_173 : f32 to vector<28x168xf32>
    %168 = arith.addf %167, %166 : vector<28x168xf32>
    %cst_174 = arith.constant 1.000000e+00 : f32
    %169 = vector.broadcast %cst_174 : f32 to vector<28x168xf32>
    %170 = arith.divf %169, %168 : vector<28x168xf32>
    %c0_175 = arith.constant 0 : index
    %c0_176 = arith.constant 0 : index
    %171 = vector.load %arg3[%c0_175, %c0_176] : memref<14x28xf32, #tpu.memory_space<vmem>>, vector<14x28xf32>
    %cst_177 = arith.constant dense<0.000000e+00> : vector<14x168xf32>
    %172 = tpu.matmul %171, %170, %cst_177 {dimension_numbers = #tpu.dot_dimension_numbers<[1], [0], [0], [1], [0, 0, 1, 1], [], []>} : vector<14x28xf32>, vector<28x168xf32>, vector<14x168xf32> -> vector<14x168xf32>
    %c0_178 = arith.constant 0 : index
    %c0_179 = arith.constant 0 : index
    %173 = vector.load %arg4[%c0_178, %c0_179] : memref<168x84xf32, #tpu.memory_space<vmem>>, vector<168x84xf32>
    %cst_180 = arith.constant dense<0.000000e+00> : vector<14x84xf32>
    %174 = tpu.matmul %172, %173, %cst_180 {dimension_numbers = #tpu.dot_dimension_numbers<[1], [0], [0], [1], [0, 0, 1, 1], [], []>} : vector<14x168xf32>, vector<168x84xf32>, vector<14x84xf32> -> vector<14x84xf32>
    %c0_181 = arith.constant 0 : index
    %c0_182 = arith.constant 0 : index
    %175 = vector.load %arg16[%c0_181, %c0_182] : memref<14x84xf32, #tpu.memory_space<vmem>>, vector<14x84xf32>
    tpu.vector_store %arg16[%c0_181, %c0_182], %174 {strides = array<i32>} : memref<14x84xf32, #tpu.memory_space<vmem>>, vector<14x84xf32>,
    %c0_183 = arith.constant 0 : index
    %c0_184 = arith.constant 0 : index
    %176 = vector.load %arg16[%c0_183, %c0_184] : memref<14x84xf32, #tpu.memory_space<vmem>>, vector<10x84xf32>
    %c0_185 = arith.constant 0 : index
    %c0_186 = arith.constant 0 : index
    %c0_187 = arith.constant 0 : index
    %177 = vector.load %arg5[%c0_185, %c0_186, %c0_187] : memref<5x84x160xf32, #tpu.memory_space<vmem>>, vector<1x84x160xf32>
    %178 = vector.shape_cast %177 : vector<1x84x160xf32> to vector<84x160xf32>
    %cst_188 = arith.constant dense<0.000000e+00> : vector<10x160xf32>
    %179 = tpu.matmul %176, %178, %cst_188 {dimension_numbers = #tpu.dot_dimension_numbers<[1], [0], [0], [1], [0, 0, 1, 1], [], []>} : vector<10x84xf32>, vector<84x160xf32>, vector<10x160xf32> -> vector<10x160xf32>
    %c1_189 = arith.constant 1 : index
    %c0_190 = arith.constant 0 : index
    %180 = vector.load %arg16[%c1_189, %c0_190] : memref<14x84xf32, #tpu.memory_space<vmem>>, vector<10x84xf32>
    %c1_191 = arith.constant 1 : index
    %c0_192 = arith.constant 0 : index
    %c0_193 = arith.constant 0 : index
    %181 = vector.load %arg5[%c1_191, %c0_192, %c0_193] : memref<5x84x160xf32, #tpu.memory_space<vmem>>, vector<1x84x160xf32>
    %182 = vector.shape_cast %181 : vector<1x84x160xf32> to vector<84x160xf32>
    %cst_194 = arith.constant dense<0.000000e+00> : vector<10x160xf32>
    %183 = tpu.matmul %180, %182, %cst_194 {dimension_numbers = #tpu.dot_dimension_numbers<[1], [0], [0], [1], [0, 0, 1, 1], [], []>} : vector<10x84xf32>, vector<84x160xf32>, vector<10x160xf32> -> vector<10x160xf32>
    %184 = arith.addf %179, %183 : vector<10x160xf32>
    %c2_195 = arith.constant 2 : index
    %c0_196 = arith.constant 0 : index
    %185 = vector.load %arg16[%c2_195, %c0_196] : memref<14x84xf32, #tpu.memory_space<vmem>>, vector<10x84xf32>
    %c2_197 = arith.constant 2 : index
    %c0_198 = arith.constant 0 : index
    %c0_199 = arith.constant 0 : index
    %186 = vector.load %arg5[%c2_197, %c0_198, %c0_199] : memref<5x84x160xf32, #tpu.memory_space<vmem>>, vector<1x84x160xf32>
    %187 = vector.shape_cast %186 : vector<1x84x160xf32> to vector<84x160xf32>
    %cst_200 = arith.constant dense<0.000000e+00> : vector<10x160xf32>
    %188 = tpu.matmul %185, %187, %cst_200 {dimension_numbers = #tpu.dot_dimension_numbers<[1], [0], [0], [1], [0, 0, 1, 1], [], []>} : vector<10x84xf32>, vector<84x160xf32>, vector<10x160xf32> -> vector<10x160xf32>
    %189 = arith.addf %184, %188 : vector<10x160xf32>
    %c3_201 = arith.constant 3 : index
    %c0_202 = arith.constant 0 : index
    %190 = vector.load %arg16[%c3_201, %c0_202] : memref<14x84xf32, #tpu.memory_space<vmem>>, vector<10x84xf32>
    %c3_203 = arith.constant 3 : index
    %c0_204 = arith.constant 0 : index
    %c0_205 = arith.constant 0 : index
    %191 = vector.load %arg5[%c3_203, %c0_204, %c0_205] : memref<5x84x160xf32, #tpu.memory_space<vmem>>, vector<1x84x160xf32>
    %192 = vector.shape_cast %191 : vector<1x84x160xf32> to vector<84x160xf32>
    %cst_206 = arith.constant dense<0.000000e+00> : vector<10x160xf32>
    %193 = tpu.matmul %190, %192, %cst_206 {dimension_numbers = #tpu.dot_dimension_numbers<[1], [0], [0], [1], [0, 0, 1, 1], [], []>} : vector<10x84xf32>, vector<84x160xf32>, vector<10x160xf32> -> vector<10x160xf32>
    %194 = arith.addf %189, %193 : vector<10x160xf32>
    %c4_207 = arith.constant 4 : index
    %c0_208 = arith.constant 0 : index
    %195 = vector.load %arg16[%c4_207, %c0_208] : memref<14x84xf32, #tpu.memory_space<vmem>>, vector<10x84xf32>
    %c4_209 = arith.constant 4 : index
    %c0_210 = arith.constant 0 : index
    %c0_211 = arith.constant 0 : index
    %196 = vector.load %arg5[%c4_209, %c0_210, %c0_211] : memref<5x84x160xf32, #tpu.memory_space<vmem>>, vector<1x84x160xf32>
    %197 = vector.shape_cast %196 : vector<1x84x160xf32> to vector<84x160xf32>
    %cst_212 = arith.constant dense<0.000000e+00> : vector<10x160xf32>
    %198 = tpu.matmul %195, %197, %cst_212 {dimension_numbers = #tpu.dot_dimension_numbers<[1], [0], [0], [1], [0, 0, 1, 1], [], []>} : vector<10x84xf32>, vector<84x160xf32>, vector<10x160xf32> -> vector<10x160xf32>
    %199 = arith.addf %194, %198 : vector<10x160xf32>
    %c0_213 = arith.constant 0 : index
    %c0_214 = arith.constant 0 : index
    %200 = vector.load %arg6[%c0_213, %c0_214] : memref<1x160xf32, #tpu.memory_space<vmem>>, vector<1x160xf32>
    %201 = vector.broadcast %200 : vector<1x160xf32> to vector<10x160xf32>
    %202 = arith.addf %199, %201 : vector<10x160xf32>
    %cst_215 = arith.constant 0.000000e+00 : f32
    %203 = vector.broadcast %cst_215 : f32 to vector<10x160xf32>
    %204 = arith.subf %203, %202 : vector<10x160xf32>
    %205 = math.exp %204 : vector<10x160xf32>
    %cst_216 = arith.constant 1.000000e+00 : f32
    %206 = vector.broadcast %cst_216 : f32 to vector<10x160xf32>
    %207 = arith.addf %206, %205 : vector<10x160xf32>
    %cst_217 = arith.constant 1.000000e+00 : f32
    %208 = vector.broadcast %cst_217 : f32 to vector<10x160xf32>
    %209 = arith.divf %208, %207 : vector<10x160xf32>
    %c0_218 = arith.constant 0 : index
    %c0_219 = arith.constant 0 : index
    %210 = vector.load %arg7[%c0_218, %c0_219] : memref<5x10xf32, #tpu.memory_space<vmem>>, vector<5x10xf32>
    %cst_220 = arith.constant dense<0.000000e+00> : vector<5x160xf32>
    %211 = tpu.matmul %210, %209, %cst_220 {dimension_numbers = #tpu.dot_dimension_numbers<[1], [0], [0], [1], [0, 0, 1, 1], [], []>} : vector<5x10xf32>, vector<10x160xf32>, vector<5x160xf32> -> vector<5x160xf32>
    %c0_221 = arith.constant 0 : index
    %c0_222 = arith.constant 0 : index
    %212 = vector.load %arg8[%c0_221, %c0_222] : memref<160x80xf32, #tpu.memory_space<vmem>>, vector<160x80xf32>
    %cst_223 = arith.constant dense<0.000000e+00> : vector<5x80xf32>
    %213 = tpu.matmul %211, %212, %cst_223 {dimension_numbers = #tpu.dot_dimension_numbers<[1], [0], [0], [1], [0, 0, 1, 1], [], []>} : vector<5x160xf32>, vector<160x80xf32>, vector<5x80xf32> -> vector<5x80xf32>
    %c0_224 = arith.constant 0 : index
    %c0_225 = arith.constant 0 : index
    %214 = vector.load %arg17[%c0_224, %c0_225] : memref<5x80xf32, #tpu.memory_space<vmem>>, vector<5x80xf32>
    tpu.vector_store %arg17[%c0_224, %c0_225], %213 {strides = array<i32>} : memref<5x80xf32, #tpu.memory_space<vmem>>, vector<5x80xf32>,
    %c0_226 = arith.constant 0 : index
    %c0_227 = arith.constant 0 : index
    %215 = vector.load %arg17[%c0_226, %c0_227] : memref<5x80xf32, #tpu.memory_space<vmem>>, vector<1x80xf32>
    %c0_228 = arith.constant 0 : index
    %c0_229 = arith.constant 0 : index
    %c0_230 = arith.constant 0 : index
    %216 = vector.load %arg9[%c0_228, %c0_229, %c0_230] : memref<5x80x120xf32, #tpu.memory_space<vmem>>, vector<1x80x120xf32>
    %217 = vector.shape_cast %216 : vector<1x80x120xf32> to vector<80x120xf32>
    %cst_231 = arith.constant dense<0.000000e+00> : vector<1x120xf32>
    %218 = tpu.matmul %215, %217, %cst_231 {dimension_numbers = #tpu.dot_dimension_numbers<[1], [0], [0], [1], [0, 0, 1, 1], [], []>} : vector<1x80xf32>, vector<80x120xf32>, vector<1x120xf32> -> vector<1x120xf32>
    %c1_232 = arith.constant 1 : index
    %c0_233 = arith.constant 0 : index
    %219 = vector.load %arg17[%c1_232, %c0_233] : memref<5x80xf32, #tpu.memory_space<vmem>>, vector<1x80xf32>
    %c1_234 = arith.constant 1 : index
    %c0_235 = arith.constant 0 : index
    %c0_236 = arith.constant 0 : index
    %220 = vector.load %arg9[%c1_234, %c0_235, %c0_236] : memref<5x80x120xf32, #tpu.memory_space<vmem>>, vector<1x80x120xf32>
    %221 = vector.shape_cast %220 : vector<1x80x120xf32> to vector<80x120xf32>
    %cst_237 = arith.constant dense<0.000000e+00> : vector<1x120xf32>
    %222 = tpu.matmul %219, %221, %cst_237 {dimension_numbers = #tpu.dot_dimension_numbers<[1], [0], [0], [1], [0, 0, 1, 1], [], []>} : vector<1x80xf32>, vector<80x120xf32>, vector<1x120xf32> -> vector<1x120xf32>
    %223 = arith.addf %218, %222 : vector<1x120xf32>
    %c2_238 = arith.constant 2 : index
    %c0_239 = arith.constant 0 : index
    %224 = vector.load %arg17[%c2_238, %c0_239] : memref<5x80xf32, #tpu.memory_space<vmem>>, vector<1x80xf32>
    %c2_240 = arith.constant 2 : index
    %c0_241 = arith.constant 0 : index
    %c0_242 = arith.constant 0 : index
    %225 = vector.load %arg9[%c2_240, %c0_241, %c0_242] : memref<5x80x120xf32, #tpu.memory_space<vmem>>, vector<1x80x120xf32>
    %226 = vector.shape_cast %225 : vector<1x80x120xf32> to vector<80x120xf32>
    %cst_243 = arith.constant dense<0.000000e+00> : vector<1x120xf32>
    %227 = tpu.matmul %224, %226, %cst_243 {dimension_numbers = #tpu.dot_dimension_numbers<[1], [0], [0], [1], [0, 0, 1, 1], [], []>} : vector<1x80xf32>, vector<80x120xf32>, vector<1x120xf32> -> vector<1x120xf32>
    %228 = arith.addf %223, %227 : vector<1x120xf32>
    %c3_244 = arith.constant 3 : index
    %c0_245 = arith.constant 0 : index
    %229 = vector.load %arg17[%c3_244, %c0_245] : memref<5x80xf32, #tpu.memory_space<vmem>>, vector<1x80xf32>
    %c3_246 = arith.constant 3 : index
    %c0_247 = arith.constant 0 : index
    %c0_248 = arith.constant 0 : index
    %230 = vector.load %arg9[%c3_246, %c0_247, %c0_248] : memref<5x80x120xf32, #tpu.memory_space<vmem>>, vector<1x80x120xf32>
    %231 = vector.shape_cast %230 : vector<1x80x120xf32> to vector<80x120xf32>
    %cst_249 = arith.constant dense<0.000000e+00> : vector<1x120xf32>
    %232 = tpu.matmul %229, %231, %cst_249 {dimension_numbers = #tpu.dot_dimension_numbers<[1], [0], [0], [1], [0, 0, 1, 1], [], []>} : vector<1x80xf32>, vector<80x120xf32>, vector<1x120xf32> -> vector<1x120xf32>
    %233 = arith.addf %228, %232 : vector<1x120xf32>
    %c4_250 = arith.constant 4 : index
    %c0_251 = arith.constant 0 : index
    %234 = vector.load %arg17[%c4_250, %c0_251] : memref<5x80xf32, #tpu.memory_space<vmem>>, vector<1x80xf32>
    %c4_252 = arith.constant 4 : index
    %c0_253 = arith.constant 0 : index
    %c0_254 = arith.constant 0 : index
    %235 = vector.load %arg9[%c4_252, %c0_253, %c0_254] : memref<5x80x120xf32, #tpu.memory_space<vmem>>, vector<1x80x120xf32>
    %236 = vector.shape_cast %235 : vector<1x80x120xf32> to vector<80x120xf32>
    %cst_255 = arith.constant dense<0.000000e+00> : vector<1x120xf32>
    %237 = tpu.matmul %234, %236, %cst_255 {dimension_numbers = #tpu.dot_dimension_numbers<[1], [0], [0], [1], [0, 0, 1, 1], [], []>} : vector<1x80xf32>, vector<80x120xf32>, vector<1x120xf32> -> vector<1x120xf32>
    %238 = arith.addf %233, %237 : vector<1x120xf32>
    %c0_256 = arith.constant 0 : index
    %c0_257 = arith.constant 0 : index
    %239 = vector.load %arg10[%c0_256, %c0_257] : memref<1x120xf32, #tpu.memory_space<vmem>>, vector<1x120xf32>
    %240 = arith.addf %238, %239 : vector<1x120xf32>
    %cst_258 = arith.constant 0.000000e+00 : f32
    %241 = vector.broadcast %cst_258 : f32 to vector<1x120xf32>
    %242 = arith.subf %241, %240 : vector<1x120xf32>
    %243 = math.exp %242 : vector<1x120xf32>
    %cst_259 = arith.constant 1.000000e+00 : f32
    %244 = vector.broadcast %cst_259 : f32 to vector<1x120xf32>
    %245 = arith.addf %244, %243 : vector<1x120xf32>
    %cst_260 = arith.constant 1.000000e+00 : f32
    %246 = vector.broadcast %cst_260 : f32 to vector<1x120xf32>
    %247 = arith.divf %246, %245 : vector<1x120xf32>
    %c0_261 = arith.constant 0 : index
    %c0_262 = arith.constant 0 : index
    %248 = vector.load %arg11[%c0_261, %c0_262] : memref<120x84xf32, #tpu.memory_space<vmem>>, vector<120x84xf32>
    %cst_263 = arith.constant dense<0.000000e+00> : vector<1x84xf32>
    %249 = tpu.matmul %247, %248, %cst_263 {dimension_numbers = #tpu.dot_dimension_numbers<[1], [0], [0], [1], [0, 0, 1, 1], [], []>} : vector<1x120xf32>, vector<120x84xf32>, vector<1x84xf32> -> vector<1x84xf32>
    %c0_264 = arith.constant 0 : index
    %c0_265 = arith.constant 0 : index
    %250 = vector.load %arg12[%c0_264, %c0_265] : memref<1x84xf32, #tpu.memory_space<vmem>>, vector<1x84xf32>
    %251 = arith.addf %249, %250 : vector<1x84xf32>
    %cst_266 = arith.constant 0.000000e+00 : f32
    %252 = vector.broadcast %cst_266 : f32 to vector<1x84xf32>
    %253 = arith.subf %252, %251 : vector<1x84xf32>
    %254 = math.exp %253 : vector<1x84xf32>
    %cst_267 = arith.constant 1.000000e+00 : f32
    %255 = vector.broadcast %cst_267 : f32 to vector<1x84xf32>
    %256 = arith.addf %255, %254 : vector<1x84xf32>
    %cst_268 = arith.constant 1.000000e+00 : f32
    %257 = vector.broadcast %cst_268 : f32 to vector<1x84xf32>
    %258 = arith.divf %257, %256 : vector<1x84xf32>
    %c0_269 = arith.constant 0 : index
    %c0_270 = arith.constant 0 : index
    %259 = vector.load %arg13[%c0_269, %c0_270] : memref<84x10xf32, #tpu.memory_space<vmem>>, vector<84x10xf32>
    %cst_271 = arith.constant dense<0.000000e+00> : vector<1x10xf32>
    %260 = tpu.matmul %258, %259, %cst_271 {dimension_numbers = #tpu.dot_dimension_numbers<[1], [0], [0], [1], [0, 0, 1, 1], [], []>} : vector<1x84xf32>, vector<84x10xf32>, vector<1x10xf32> -> vector<1x10xf32>
    %c0_272 = arith.constant 0 : index
    %c0_273 = arith.constant 0 : index
    %261 = vector.load %arg14[%c0_272, %c0_273] : memref<1x10xf32, #tpu.memory_space<vmem>>, vector<1x10xf32>
    %262 = arith.addf %260, %261 : vector<1x10xf32>
    %c1_274 = arith.constant 1 : index
    %c0_275 = arith.constant 0 : index
    %263 = vector.load %arg15[%c1_274, %c0_275] : memref<2x10xf32, #tpu.memory_space<vmem>>, vector<1x10xf32>
    tpu.vector_store %arg15[%c1_274, %c0_275], %262 {strides = array<i32>} : memref<2x10xf32, #tpu.memory_space<vmem>>, vector<1x10xf32>,
    return
  }
}

</mosaic_0001>

<llo_original>
// kernel: lenet_forward.1
$region0: #{lenet_forward.1}
  #allocation0 [shape = 'u32[]', space=smem, size = 0x4, offset = 0x4, fixed_abs, tag = 'smem constant byte address 0x4 - core index']
  #allocation1 [shape = 'u32[144,128]{1,0:T(1,128)}', space=vmem, size = 0x12000, scoped, tag = 'internal scratch']
  #allocation2 [shape = 'f32[14,84]{1,0:T(8,128)}', space=vmem, size = 0x2000, scoped, tag = 'scratch operand']
  #allocation3 [shape = 'f32[5,80]{1,0:T(8,128)}', space=vmem, size = 0x1000, scoped, tag = 'scratch operand']
  %s0 = inlined_call_operand.vmem [shape: f32[2,32,32], index: 0, kind: input, shape index: {}]
  %s1 = inlined_call_operand.vmem [shape: f32[5,32,168], index: 1, kind: input, shape index: {}]
  %s2 = inlined_call_operand.vmem [shape: f32[1,168], index: 2, kind: input, shape index: {}]
  %s3 = inlined_call_operand.vmem [shape: f32[14,28], index: 3, kind: input, shape index: {}]
  %s4 = inlined_call_operand.vmem [shape: f32[168,84], index: 4, kind: input, shape index: {}]
  %s5 = inlined_call_operand.vmem [shape: f32[5,84,160], index: 5, kind: input, shape index: {}]
  %s6 = inlined_call_operand.vmem [shape: f32[1,160], index: 6, kind: input, shape index: {}]
  %s7 = inlined_call_operand.vmem [shape: f32[5,10], index: 7, kind: input, shape index: {}]
  %s8 = inlined_call_operand.vmem [shape: f32[160,80], index: 8, kind: input, shape index: {}]
  %s9 = inlined_call_operand.vmem [shape: f32[5,80,120], index: 9, kind: input, shape index: {}]
  %s10 = inlined_call_operand.vmem [shape: f32[1,120], index: 10, kind: input, shape index: {}]
  %s11 = inlined_call_operand.vmem [shape: f32[120,84], index: 11, kind: input, shape index: {}]
  %s12 = inlined_call_operand.vmem [shape: f32[1,84], index: 12, kind: input, shape index: {}]
  %s13 = inlined_call_operand.vmem [shape: f32[84,10], index: 13, kind: input, shape index: {}]
  %s14 = inlined_call_operand.vmem [shape: f32[1,10], index: 14, kind: input, shape index: {}]
  %s15 = inlined_call_operand.hbm [shape: f32[2,10], index: 15, kind: output, shape index: {}]
  %s16 = sld [smem:[#allocation0]]
  $region70: #{lenet_forward.1} parent=0
    _
  %s18 = ssub.s32 1, %s16
  %s19 = scalar_select 0, %s18, %s16
  $region1: #{lenet_forward.1} parent=0
    #allocation4 [shape = 'u8[1024]{0}', space=vmem, size = 0x400, scoped, tag = 'output window, operand 0, single buffered']
    #allocation5 [shape = 's32[1]{0}', space=sflag, size = 0x4, scoped, tag = 'scoped memory for lenet_forward.1']
    %20 = vsyncpa [#allocation5], 0
    // Predicated region
    $region2: #{lenet_forward.1} parent=1 // pred_check
      _
    $region3: #{lenet_forward.1} parent=1 // pred_check_branch
      %22 = sbr.rel (0) target = $region5
    $region4: #{lenet_forward.1} parent=1 // pred_region
      _
    $region5: #{lenet_forward.1} parent=1 // pred_fallthru
      _
    // Predicated region
    $region6: #{lenet_forward.1} parent=1 // pred_check
      _
    $region7: #{lenet_forward.1} parent=1 // pred_check_branch
      %24 = sbr.rel (0) target = $region9
    $region8: #{lenet_forward.1} parent=1 // pred_region
      _
    $region9: #{lenet_forward.1} parent=1 // pred_fallthru
      _
    // Predicated region
    $region10: #{lenet_forward.1} parent=1 // pred_check
      _
    $region11: #{lenet_forward.1} parent=1 // pred_check_branch
      %26 = sbr.rel (0) target = $region13
    $region12: #{lenet_forward.1} parent=1 // pred_region
      _
    $region13: #{lenet_forward.1} parent=1 // pred_fallthru
      _
    // Predicated region
    $region14: #{lenet_forward.1} parent=1 // pred_check
      _
    $region15: #{lenet_forward.1} parent=1 // pred_check_branch
      %28 = sbr.rel (0) target = $region17
    $region16: #{lenet_forward.1} parent=1 // pred_region
      _
    $region17: #{lenet_forward.1} parent=1 // pred_fallthru
      _
    // Predicated region
    $region18: #{lenet_forward.1} parent=1 // pred_check
      _
    $region19: #{lenet_forward.1} parent=1 // pred_check_branch
      %30 = sbr.rel (0) target = $region21
    $region20: #{lenet_forward.1} parent=1 // pred_region
      _
    $region21: #{lenet_forward.1} parent=1 // pred_fallthru
      _
    // Predicated region
    $region22: #{lenet_forward.1} parent=1 // pred_check
      _
    $region23: #{lenet_forward.1} parent=1 // pred_check_branch
      %32 = sbr.rel (0) target = $region25
    $region24: #{lenet_forward.1} parent=1 // pred_region
      _
    $region25: #{lenet_forward.1} parent=1 // pred_fallthru
      _
    // Predicated region
    $region26: #{lenet_forward.1} parent=1 // pred_check
      _
    $region27: #{lenet_forward.1} parent=1 // pred_check_branch
      %34 = sbr.rel (0) target = $region29
    $region28: #{lenet_forward.1} parent=1 // pred_region
      _
    $region29: #{lenet_forward.1} parent=1 // pred_fallthru
      _
    // Predicated region
    $region30: #{lenet_forward.1} parent=1 // pred_check
      _
    $region31: #{lenet_forward.1} parent=1 // pred_check_branch
      %36 = sbr.rel (0) target = $region33
    $region32: #{lenet_forward.1} parent=1 // pred_region
      _
    $region33: #{lenet_forward.1} parent=1 // pred_fallthru
      _
    // Predicated region
    $region34: #{lenet_forward.1} parent=1 // pred_check
      _
    $region35: #{lenet_forward.1} parent=1 // pred_check_branch
      %38 = sbr.rel (0) target = $region37
    $region36: #{lenet_forward.1} parent=1 // pred_region
      _
    $region37: #{lenet_forward.1} parent=1 // pred_fallthru
      _
    // Predicated region
    $region38: #{lenet_forward.1} parent=1 // pred_check
      _
    $region39: #{lenet_forward.1} parent=1 // pred_check_branch
      %40 = sbr.rel (0) target = $region41
    $region40: #{lenet_forward.1} parent=1 // pred_region
      _
    $region41: #{lenet_forward.1} parent=1 // pred_fallthru
      _
    // Predicated region
    $region42: #{lenet_forward.1} parent=1 // pred_check
      _
    $region43: #{lenet_forward.1} parent=1 // pred_check_branch
      %42 = sbr.rel (0) target = $region45
    $region44: #{lenet_forward.1} parent=1 // pred_region
      _
    $region45: #{lenet_forward.1} parent=1 // pred_fallthru
      _
    // Predicated region
    $region46: #{lenet_forward.1} parent=1 // pred_check
      _
    $region47: #{lenet_forward.1} parent=1 // pred_check_branch
      %44 = sbr.rel (0) target = $region49
    $region48: #{lenet_forward.1} parent=1 // pred_region
      _
    $region49: #{lenet_forward.1} parent=1 // pred_fallthru
      _
    // Predicated region
    $region50: #{lenet_forward.1} parent=1 // pred_check
      _
    $region51: #{lenet_forward.1} parent=1 // pred_check_branch
      %46 = sbr.rel (0) target = $region53
    $region52: #{lenet_forward.1} parent=1 // pred_region
      _
    $region53: #{lenet_forward.1} parent=1 // pred_fallthru
      _
    // Predicated region
    $region54: #{lenet_forward.1} parent=1 // pred_check
      _
    $region55: #{lenet_forward.1} parent=1 // pred_check_branch
      %48 = sbr.rel (0) target = $region57
    $region56: #{lenet_forward.1} parent=1 // pred_region
      _
    $region57: #{lenet_forward.1} parent=1 // pred_fallthru
      _
    // Predicated region
    $region58: #{lenet_forward.1} parent=1 // pred_check
      _
    $region59: #{lenet_forward.1} parent=1 // pred_check_branch
      %50 = sbr.rel (0) target = $region61
    $region60: #{lenet_forward.1} parent=1 // pred_region
      _
    $region61: #{lenet_forward.1} parent=1 // pred_fallthru
      _
    %v51 = vld [vmem:[%s0] sm:$0xff]
    %v52 = vld [vmem:[%s0 + $0x8] sm:$0xff]
    %v53 = vld [vmem:[%s0 + $0x10] sm:$0xff]
    %v54 = vld [vmem:[%s0 + $0x18] sm:$0xf]
    %v55 = vld [vmem:[%s1] sm:$0xff]
    %v56 = vld [vmem:[%s1 + $0x8] sm:$0xff]
    %v57 = vld [vmem:[%s1 + $0x10] sm:$0xff]
    %v58 = vld [vmem:[%s1 + $0x18] sm:$0xff]
    %v59 = vld [vmem:[%s1 + $0x20] sm:$0xff]
    %v60 = vld [vmem:[%s1 + $0x28] sm:$0xff]
    %v61 = vld [vmem:[%s1 + $0x30] sm:$0xff]
    %v62 = vld [vmem:[%s1 + $0x38] sm:$0xff]
    %v63 = vld [vmem:[%s0 + $0x1] sm:$0xff]
    %v64 = vld [vmem:[%s0 + $0x9] sm:$0xff]
    %v65 = vld [vmem:[%s0 + $0x11] sm:$0xff]
    %v66 = vld [vmem:[%s0 + $0x19] sm:$0xf]
    %s67 = scalar_lea.vmem %s1, 64
    %v68 = vld [vmem:[%s67] sm:$0xff]
    %v69 = vld [vmem:[%s67 + $0x8] sm:$0xff]
    %v70 = vld [vmem:[%s67 + $0x10] sm:$0xff]
    %v71 = vld [vmem:[%s67 + $0x18] sm:$0xff]
    %v72 = vld [vmem:[%s67 + $0x20] sm:$0xff]
    %v73 = vld [vmem:[%s67 + $0x28] sm:$0xff]
    %v74 = vld [vmem:[%s67 + $0x30] sm:$0xff]
    %v75 = vld [vmem:[%s67 + $0x38] sm:$0xff]
    %vm76 = vcmask 261120
    %v78 = vsel %vm76, %v63, 0
    %v81 = vsel %vm76, %v64, 0
    %v84 = vsel %vm76, %v65, 0
    %v87 = vsel %vm76, %v66, 0
    %89 = vmatprep.subr.mxu0 %v69
    %90 = vmatpush1.msra.mxu0 %v68
    %91 = vmatprep.subr.mxu0 %v71
    %92 = vmatpush1.msra.mxu0 %v70
    %93 = vmatprep.subr.mxu0 %v73
    %94 = vmatpush1.msra.mxu0 %v72
    %95 = vmatprep.subr.mxu0 %v75
    %96 = vmatpush1.msra.mxu0 %v74
    %97 = vmatprep.subr.mxu0 0.0
    %98 = vmatpush1.msra.mxu0 0.0
    %99 = vmatprep.subr.mxu0 0.0
    %100 = vmatpush1.msra.mxu0 0.0
    %101 = vmatprep.subr.mxu0 0.0
    %102 = vmatpush1.msra.mxu0 0.0
    %103 = vmatprep.subr.mxu0 0.0
    %104 = vmatpush1.msra.mxu0 0.0
    %105 = vmatprep.subr.mxu0 0.0
    %106 = vmatpush1.msra.mxu0 0.0
    %107 = vmatprep.subr.mxu0 0.0
    %108 = vmatpush1.msra.mxu0 0.0
    %109 = vmatprep.subr.mxu0 0.0
    %110 = vmatpush1.msra.mxu0 0.0
    %111 = vmatprep.subr.mxu0 0.0
    %112 = vmatpush1.msra.mxu0 0.0
    %113 = vmatprep.subr.mxu0 0.0
    %114 = vmatpush1.msra.mxu0 0.0
    %115 = vmatprep.subr.mxu0 0.0
    %116 = vmatpush1.msra.mxu0 0.0
    %117 = vmatprep.subr.mxu0 0.0
    %118 = vmatpush1.msra.mxu0 0.0
    %119 = vmatprep.subr.mxu0 0.0
    %120 = vmatpush1.msra.mxu0 0.0
    %121 = vmatprep.subr.mxu0 0.0
    %122 = vmatpush1.msra.mxu0 0.0
    %123 = vmatprep.subr.mxu0 0.0
    %124 = vmatpush1.msra.mxu0 0.0
    %125 = vmatprep.subr.mxu0 0.0
    %126 = vmatpush1.msra.mxu0 0.0
    %127 = vmatprep.subr.mxu0 0.0
    %128 = vmatpush1.msra.mxu0 0.0
    %129 = vmatprep.subr.mxu0 0.0
    %130 = vmatpush1.msra.mxu0 0.0
    %131 = vmatprep.subr.mxu0 0.0
    %132 = vmatpush1.msra.mxu0 0.0
    %133 = vmatprep.subr.mxu0 0.0
    %134 = vmatpush1.msra.mxu0 0.0
    %135 = vmatprep.subr.mxu0 0.0
    %136 = vmatpush1.msra.mxu0 0.0
    %137 = vmatprep.subr.mxu0 0.0
    %138 = vmatpush1.msra.mxu0 0.0
    %139 = vmatprep.subr.mxu0 0.0
    %140 = vmatpush1.msra.mxu0 0.0
    %141 = vmatprep.subr.mxu0 0.0
    %142 = vmatpush1.msra.mxu0 0.0
    %143 = vmatprep.subr.mxu0 0.0
    %144 = vmatpush1.msra.mxu0 0.0
    %145 = vmatprep.subr.mxu0 0.0
    %146 = vmatpush1.msra.mxu0 0.0
    %147 = vmatprep.subr.mxu0 0.0
    %148 = vmatpush1.msra.mxu0 0.0
    %149 = vmatprep.subr.mxu0 0.0
    %150 = vmatpush1.msra.mxu0 0.0
    %151 = vmatprep.subr.mxu0 0.0
    %152 = vmatpush1.msra.mxu0 0.0
    %153 = vmatprep.mubr.f32.mxu0 0.0
    %154 = vmatmul.mubr.f32.gmra.mrb[0].mxu0 %v78
    %v155 = vpop.f32.mrb[0].mxu0
    %v156 = vadd.f32 0.0, %v155
    %v157 = vpop.f32.mrb[0].mxu0
    %v158 = vadd.f32 0.0, %v157
    %159 = vmatprep.mubr.f32.mxu0 0.0
    %160 = vmatmul.mubr.f32.gmra.mrb[0].mxu0 %v81
    %v161 = vpop.f32.mrb[0].mxu0
    %v162 = vadd.f32 0.0, %v161
    %v163 = vpop.f32.mrb[0].mxu0
    %v164 = vadd.f32 0.0, %v163
    %165 = vmatprep.mubr.f32.mxu0 0.0
    %166 = vmatmul.mubr.f32.gmra.mrb[0].mxu0 %v84
    %v167 = vpop.f32.mrb[0].mxu0
    %v168 = vadd.f32 0.0, %v167
    %v169 = vpop.f32.mrb[0].mxu0
    %v170 = vadd.f32 0.0, %v169
    %171 = vmatprep.mubr.f32.mxu0 0.0
    %172 = vmatmul.mubr.f32.gmra.mrb[0].mxu0 %v87
    %v173 = vpop.f32.mrb[0].mxu0
    %v174 = vadd.f32 0.0, %v173
    %v175 = vpop.f32.mrb[0].mxu0
    %v176 = vadd.f32 0.0, %v175
    %177 = vdwg.mxu0
    %v179 = vsel %vm76, %v51, 0
    %v182 = vsel %vm76, %v52, 0
    %v185 = vsel %vm76, %v53, 0
    %v188 = vsel %vm76, %v54, 0
    %190 = vmatprep.subr.mxu0 %v56
    %191 = vmatpush1.msra.mxu0 %v55
    %192 = vmatprep.subr.mxu0 %v58
    %193 = vmatpush1.msra.mxu0 %v57
    %194 = vmatprep.subr.mxu0 %v60
    %195 = vmatpush1.msra.mxu0 %v59
    %196 = vmatprep.subr.mxu0 %v62
    %197 = vmatpush1.msra.mxu0 %v61
    %198 = vmatprep.subr.mxu0 0.0
    %199 = vmatpush1.msra.mxu0 0.0
    %200 = vmatprep.subr.mxu0 0.0
    %201 = vmatpush1.msra.mxu0 0.0
    %202 = vmatprep.subr.mxu0 0.0
    %203 = vmatpush1.msra.mxu0 0.0
    %204 = vmatprep.subr.mxu0 0.0
    %205 = vmatpush1.msra.mxu0 0.0
    %206 = vmatprep.subr.mxu0 0.0
    %207 = vmatpush1.msra.mxu0 0.0
    %208 = vmatprep.subr.mxu0 0.0
    %209 = vmatpush1.msra.mxu0 0.0
    %210 = vmatprep.subr.mxu0 0.0
    %211 = vmatpush1.msra.mxu0 0.0
    %212 = vmatprep.subr.mxu0 0.0
    %213 = vmatpush1.msra.mxu0 0.0
    %214 = vmatprep.subr.mxu0 0.0
    %215 = vmatpush1.msra.mxu0 0.0
    %216 = vmatprep.subr.mxu0 0.0
    %217 = vmatpush1.msra.mxu0 0.0
    %218 = vmatprep.subr.mxu0 0.0
    %219 = vmatpush1.msra.mxu0 0.0
    %220 = vmatprep.subr.mxu0 0.0
    %221 = vmatpush1.msra.mxu0 0.0
    %222 = vmatprep.subr.mxu0 0.0
    %223 = vmatpush1.msra.mxu0 0.0
    %224 = vmatprep.subr.mxu0 0.0
    %225 = vmatpush1.msra.mxu0 0.0
    %226 = vmatprep.subr.mxu0 0.0
    %227 = vmatpush1.msra.mxu0 0.0
    %228 = vmatprep.subr.mxu0 0.0
    %229 = vmatpush1.msra.mxu0 0.0
    %230 = vmatprep.subr.mxu0 0.0
    %231 = vmatpush1.msra.mxu0 0.0
    %232 = vmatprep.subr.mxu0 0.0
    %233 = vmatpush1.msra.mxu0 0.0
    %234 = vmatprep.subr.mxu0 0.0
    %235 = vmatpush1.msra.mxu0 0.0
    %236 = vmatprep.subr.mxu0 0.0
    %237 = vmatpush1.msra.mxu0 0.0
    %238 = vmatprep.subr.mxu0 0.0
    %239 = vmatpush1.msra.mxu0 0.0
    %240 = vmatprep.subr.mxu0 0.0
    %241 = vmatpush1.msra.mxu0 0.0
    %242 = vmatprep.subr.mxu0 0.0
    %243 = vmatpush1.msra.mxu0 0.0
    %244 = vmatprep.subr.mxu0 0.0
    %245 = vmatpush1.msra.mxu0 0.0
    %246 = vmatprep.subr.mxu0 0.0
    %247 = vmatpush1.msra.mxu0 0.0
    %248 = vmatprep.subr.mxu0 0.0
    %249 = vmatpush1.msra.mxu0 0.0
    %250 = vmatprep.subr.mxu0 0.0
    %251 = vmatpush1.msra.mxu0 0.0
    %252 = vmatprep.subr.mxu0 0.0
    %253 = vmatpush1.msra.mxu0 0.0
    %254 = vmatprep.mubr.f32.mxu0 0.0
    %255 = vmatmul.mubr.f32.gmra.mrb[0].mxu0 %v179
    %v256 = vpop.f32.mrb[0].mxu0
    %v257 = vadd.f32 %v156, %v256
    %v258 = vpop.f32.mrb[0].mxu0
    %v259 = vadd.f32 %v158, %v258
    %260 = vmatprep.mubr.f32.mxu0 0.0
    %261 = vmatmul.mubr.f32.gmra.mrb[0].mxu0 %v182
    %v262 = vpop.f32.mrb[0].mxu0
    %v263 = vadd.f32 %v162, %v262
    %v264 = vpop.f32.mrb[0].mxu0
    %v265 = vadd.f32 %v164, %v264
    %266 = vmatprep.mubr.f32.mxu0 0.0
    %267 = vmatmul.mubr.f32.gmra.mrb[0].mxu0 %v185
    %v268 = vpop.f32.mrb[0].mxu0
    %v269 = vadd.f32 %v168, %v268
    %v270 = vpop.f32.mrb[0].mxu0
    %v271 = vadd.f32 %v170, %v270
    %272 = vmatprep.mubr.f32.mxu0 0.0
    %273 = vmatmul.mubr.f32.gmra.mrb[0].mxu0 %v188
    %v274 = vpop.f32.mrb[0].mxu0
    %v275 = vadd.f32 %v174, %v274
    %v276 = vpop.f32.mrb[0].mxu0
    %v277 = vadd.f32 %v176, %v276
    %278 = vdwg.mxu0
    %v279 = vld [vmem:[%s0 + $0x2] sm:$0xff]
    %v280 = vld [vmem:[%s0 + $0xa] sm:$0xff]
    %v281 = vld [vmem:[%s0 + $0x12] sm:$0xff]
    %v282 = vld [vmem:[%s0 + $0x1a] sm:$0xf]
    %s283 = scalar_lea.vmem %s1, 128
    %v284 = vld [vmem:[%s283] sm:$0xff]
    %v285 = vld [vmem:[%s283 + $0x8] sm:$0xff]
    %v286 = vld [vmem:[%s283 + $0x10] sm:$0xff]
    %v287 = vld [vmem:[%s283 + $0x18] sm:$0xff]
    %v288 = vld [vmem:[%s283 + $0x20] sm:$0xff]
    %v289 = vld [vmem:[%s283 + $0x28] sm:$0xff]
    %v290 = vld [vmem:[%s283 + $0x30] sm:$0xff]
    %v291 = vld [vmem:[%s283 + $0x38] sm:$0xff]
    %v293 = vsel %vm76, %v279, 0
    %v296 = vsel %vm76, %v280, 0
    %v299 = vsel %vm76, %v281, 0
    %v302 = vsel %vm76, %v282, 0
    %304 = vmatprep.subr.mxu0 %v285
    %305 = vmatpush1.msra.mxu0 %v284
    %306 = vmatprep.subr.mxu0 %v287
    %307 = vmatpush1.msra.mxu0 %v286
    %308 = vmatprep.subr.mxu0 %v289
    %309 = vmatpush1.msra.mxu0 %v288
    %310 = vmatprep.subr.mxu0 %v291
    %311 = vmatpush1.msra.mxu0 %v290
    %312 = vmatprep.subr.mxu0 0.0
    %313 = vmatpush1.msra.mxu0 0.0
    %314 = vmatprep.subr.mxu0 0.0
    %315 = vmatpush1.msra.mxu0 0.0
    %316 = vmatprep.subr.mxu0 0.0
    %317 = vmatpush1.msra.mxu0 0.0
    %318 = vmatprep.subr.mxu0 0.0
    %319 = vmatpush1.msra.mxu0 0.0
    %320 = vmatprep.subr.mxu0 0.0
    %321 = vmatpush1.msra.mxu0 0.0
    %322 = vmatprep.subr.mxu0 0.0
    %323 = vmatpush1.msra.mxu0 0.0
    %324 = vmatprep.subr.mxu0 0.0
    %325 = vmatpush1.msra.mxu0 0.0
    %326 = vmatprep.subr.mxu0 0.0
    %327 = vmatpush1.msra.mxu0 0.0
    %328 = vmatprep.subr.mxu0 0.0
    %329 = vmatpush1.msra.mxu0 0.0
    %330 = vmatprep.subr.mxu0 0.0
    %331 = vmatpush1.msra.mxu0 0.0
    %332 = vmatprep.subr.mxu0 0.0
    %333 = vmatpush1.msra.mxu0 0.0
    %334 = vmatprep.subr.mxu0 0.0
    %335 = vmatpush1.msra.mxu0 0.0
    %336 = vmatprep.subr.mxu0 0.0
    %337 = vmatpush1.msra.mxu0 0.0
    %338 = vmatprep.subr.mxu0 0.0
    %339 = vmatpush1.msra.mxu0 0.0
    %340 = vmatprep.subr.mxu0 0.0
    %341 = vmatpush1.msra.mxu0 0.0
    %342 = vmatprep.subr.mxu0 0.0
    %343 = vmatpush1.msra.mxu0 0.0
    %344 = vmatprep.subr.mxu0 0.0
    %345 = vmatpush1.msra.mxu0 0.0
    %346 = vmatprep.subr.mxu0 0.0
    %347 = vmatpush1.msra.mxu0 0.0
    %348 = vmatprep.subr.mxu0 0.0
    %349 = vmatpush1.msra.mxu0 0.0
    %350 = vmatprep.subr.mxu0 0.0
    %351 = vmatpush1.msra.mxu0 0.0
    %352 = vmatprep.subr.mxu0 0.0
    %353 = vmatpush1.msra.mxu0 0.0
    %354 = vmatprep.subr.mxu0 0.0
    %355 = vmatpush1.msra.mxu0 0.0
    %356 = vmatprep.subr.mxu0 0.0
    %357 = vmatpush1.msra.mxu0 0.0
    %358 = vmatprep.subr.mxu0 0.0
    %359 = vmatpush1.msra.mxu0 0.0
    %360 = vmatprep.subr.mxu0 0.0
    %361 = vmatpush1.msra.mxu0 0.0
    %362 = vmatprep.subr.mxu0 0.0
    %363 = vmatpush1.msra.mxu0 0.0
    %364 = vmatprep.subr.mxu0 0.0
    %365 = vmatpush1.msra.mxu0 0.0
    %366 = vmatprep.subr.mxu0 0.0
    %367 = vmatpush1.msra.mxu0 0.0
    %368 = vmatprep.mubr.f32.mxu0 0.0
    %369 = vmatmul.mubr.f32.gmra.mrb[0].mxu0 %v293
    %v370 = vpop.f32.mrb[0].mxu0
    %v371 = vadd.f32 0.0, %v370
    %v372 = vpop.f32.mrb[0].mxu0
    %v373 = vadd.f32 0.0, %v372
    %374 = vmatprep.mubr.f32.mxu0 0.0
    %375 = vmatmul.mubr.f32.gmra.mrb[0].mxu0 %v296
    %v376 = vpop.f32.mrb[0].mxu0
    %v377 = vadd.f32 0.0, %v376
    %v378 = vpop.f32.mrb[0].mxu0
    %v379 = vadd.f32 0.0, %v378
    %380 = vmatprep.mubr.f32.mxu0 0.0
    %381 = vmatmul.mubr.f32.gmra.mrb[0].mxu0 %v299
    %v382 = vpop.f32.mrb[0].mxu0
    %v383 = vadd.f32 0.0, %v382
    %v384 = vpop.f32.mrb[0].mxu0
    %v385 = vadd.f32 0.0, %v384
    %386 = vmatprep.mubr.f32.mxu0 0.0
    %387 = vmatmul.mubr.f32.gmra.mrb[0].mxu0 %v302
    %v388 = vpop.f32.mrb[0].mxu0
    %v389 = vadd.f32 0.0, %v388
    %v390 = vpop.f32.mrb[0].mxu0
    %v391 = vadd.f32 0.0, %v390
    %392 = vdwg.mxu0
    %v393 = vadd.f32 %v257, %v371
    %v394 = vadd.f32 %v259, %v373
    %v395 = vadd.f32 %v263, %v377
    %v396 = vadd.f32 %v265, %v379
    %v397 = vadd.f32 %v269, %v383
    %v398 = vadd.f32 %v271, %v385
    %v399 = vadd.f32 %v275, %v389
    %v400 = vadd.f32 %v277, %v391
    %v401 = vld [vmem:[%s0 + $0x3] sm:$0xff]
    %v402 = vld [vmem:[%s0 + $0xb] sm:$0xff]
    %v403 = vld [vmem:[%s0 + $0x13] sm:$0xff]
    %v404 = vld [vmem:[%s0 + $0x1b] sm:$0xf]
    %s405 = scalar_lea.vmem %s1, 192
    %v406 = vld [vmem:[%s405] sm:$0xff]
    %v407 = vld [vmem:[%s405 + $0x8] sm:$0xff]
    %v408 = vld [vmem:[%s405 + $0x10] sm:$0xff]
    %v409 = vld [vmem:[%s405 + $0x18] sm:$0xff]
    %v410 = vld [vmem:[%s405 + $0x20] sm:$0xff]
    %v411 = vld [vmem:[%s405 + $0x28] sm:$0xff]
    %v412 = vld [vmem:[%s405 + $0x30] sm:$0xff]
    %v413 = vld [vmem:[%s405 + $0x38] sm:$0xff]
    %v415 = vsel %vm76, %v401, 0
    %v418 = vsel %vm76, %v402, 0
    %v421 = vsel %vm76, %v403, 0
    %v424 = vsel %vm76, %v404, 0
    %426 = vmatprep.subr.mxu0 %v407
    %427 = vmatpush1.msra.mxu0 %v406
    %428 = vmatprep.subr.mxu0 %v409
    %429 = vmatpush1.msra.mxu0 %v408
    %430 = vmatprep.subr.mxu0 %v411
    %431 = vmatpush1.msra.mxu0 %v410
    %432 = vmatprep.subr.mxu0 %v413
    %433 = vmatpush1.msra.mxu0 %v412
    %434 = vmatprep.subr.mxu0 0.0
    %435 = vmatpush1.msra.mxu0 0.0
    %436 = vmatprep.subr.mxu0 0.0
    %437 = vmatpush1.msra.mxu0 0.0
    %438 = vmatprep.subr.mxu0 0.0
    %439 = vmatpush1.msra.mxu0 0.0
    %440 = vmatprep.subr.mxu0 0.0
    %441 = vmatpush1.msra.mxu0 0.0
    %442 = vmatprep.subr.mxu0 0.0
    %443 = vmatpush1.msra.mxu0 0.0
    %444 = vmatprep.subr.mxu0 0.0
    %445 = vmatpush1.msra.mxu0 0.0
    %446 = vmatprep.subr.mxu0 0.0
    %447 = vmatpush1.msra.mxu0 0.0
    %448 = vmatprep.subr.mxu0 0.0
    %449 = vmatpush1.msra.mxu0 0.0
    %450 = vmatprep.subr.mxu0 0.0
    %451 = vmatpush1.msra.mxu0 0.0
    %452 = vmatprep.subr.mxu0 0.0
    %453 = vmatpush1.msra.mxu0 0.0
    %454 = vmatprep.subr.mxu0 0.0
    %455 = vmatpush1.msra.mxu0 0.0
    %456 = vmatprep.subr.mxu0 0.0
    %457 = vmatpush1.msra.mxu0 0.0
    %458 = vmatprep.subr.mxu0 0.0
    %459 = vmatpush1.msra.mxu0 0.0
    %460 = vmatprep.subr.mxu0 0.0
    %461 = vmatpush1.msra.mxu0 0.0
    %462 = vmatprep.subr.mxu0 0.0
    %463 = vmatpush1.msra.mxu0 0.0
    %464 = vmatprep.subr.mxu0 0.0
    %465 = vmatpush1.msra.mxu0 0.0
    %466 = vmatprep.subr.mxu0 0.0
    %467 = vmatpush1.msra.mxu0 0.0
    %468 = vmatprep.subr.mxu0 0.0
    %469 = vmatpush1.msra.mxu0 0.0
    %470 = vmatprep.subr.mxu0 0.0
    %471 = vmatpush1.msra.mxu0 0.0
    %472 = vmatprep.subr.mxu0 0.0
    %473 = vmatpush1.msra.mxu0 0.0
    %474 = vmatprep.subr.mxu0 0.0
    %475 = vmatpush1.msra.mxu0 0.0
    %476 = vmatprep.subr.mxu0 0.0
    %477 = vmatpush1.msra.mxu0 0.0
    %478 = vmatprep.subr.mxu0 0.0
    %479 = vmatpush1.msra.mxu0 0.0
    %480 = vmatprep.subr.mxu0 0.0
    %481 = vmatpush1.msra.mxu0 0.0
    %482 = vmatprep.subr.mxu0 0.0
    %483 = vmatpush1.msra.mxu0 0.0
    %484 = vmatprep.subr.mxu0 0.0
    %485 = vmatpush1.msra.mxu0 0.0
    %486 = vmatprep.subr.mxu0 0.0
    %487 = vmatpush1.msra.mxu0 0.0
    %488 = vmatprep.subr.mxu0 0.0
    %489 = vmatpush1.msra.mxu0 0.0
    %490 = vmatprep.mubr.f32.mxu0 0.0
    %491 = vmatmul.mubr.f32.gmra.mrb[0].mxu0 %v415
    %v492 = vpop.f32.mrb[0].mxu0
    %v493 = vadd.f32 0.0, %v492
    %v494 = vpop.f32.mrb[0].mxu0
    %v495 = vadd.f32 0.0, %v494
    %496 = vmatprep.mubr.f32.mxu0 0.0
    %497 = vmatmul.mubr.f32.gmra.mrb[0].mxu0 %v418
    %v498 = vpop.f32.mrb[0].mxu0
    %v499 = vadd.f32 0.0, %v498
    %v500 = vpop.f32.mrb[0].mxu0
    %v501 = vadd.f32 0.0, %v500
    %502 = vmatprep.mubr.f32.mxu0 0.0
    %503 = vmatmul.mubr.f32.gmra.mrb[0].mxu0 %v421
    %v504 = vpop.f32.mrb[0].mxu0
    %v505 = vadd.f32 0.0, %v504
    %v506 = vpop.f32.mrb[0].mxu0
    %v507 = vadd.f32 0.0, %v506
    %508 = vmatprep.mubr.f32.mxu0 0.0
    %509 = vmatmul.mubr.f32.gmra.mrb[0].mxu0 %v424
    %v510 = vpop.f32.mrb[0].mxu0
    %v511 = vadd.f32 0.0, %v510
    %v512 = vpop.f32.mrb[0].mxu0
    %v513 = vadd.f32 0.0, %v512
    %514 = vdwg.mxu0
    %v515 = vadd.f32 %v393, %v493
    %v516 = vadd.f32 %v394, %v495
    %v517 = vadd.f32 %v395, %v499
    %v518 = vadd.f32 %v396, %v501
    %v519 = vadd.f32 %v397, %v505
    %v520 = vadd.f32 %v398, %v507
    %v521 = vadd.f32 %v399, %v511
    %v522 = vadd.f32 %v400, %v513
    %v523 = vld [vmem:[%s0 + $0x4] sm:$0xff]
    %v524 = vld [vmem:[%s0 + $0xc] sm:$0xff]
    %v525 = vld [vmem:[%s0 + $0x14] sm:$0xff]
    %v526 = vld [vmem:[%s0 + $0x1c] sm:$0xf]
    %s527 = scalar_lea.vmem %s1, 256
    %v528 = vld [vmem:[%s527] sm:$0xff]
    %v529 = vld [vmem:[%s527 + $0x8] sm:$0xff]
    %v530 = vld [vmem:[%s527 + $0x10] sm:$0xff]
    %v531 = vld [vmem:[%s527 + $0x18] sm:$0xff]
    %v532 = vld [vmem:[%s527 + $0x20] sm:$0xff]
    %v533 = vld [vmem:[%s527 + $0x28] sm:$0xff]
    %v534 = vld [vmem:[%s527 + $0x30] sm:$0xff]
    %v535 = vld [vmem:[%s527 + $0x38] sm:$0xff]
    %v537 = vsel %vm76, %v523, 0
    %v540 = vsel %vm76, %v524, 0
    %v543 = vsel %vm76, %v525, 0
    %v546 = vsel %vm76, %v526, 0
    %548 = vmatprep.subr.mxu0 %v529
    %549 = vmatpush1.msra.mxu0 %v528
    %550 = vmatprep.subr.mxu0 %v531
    %551 = vmatpush1.msra.mxu0 %v530
    %552 = vmatprep.subr.mxu0 %v533
    %553 = vmatpush1.msra.mxu0 %v532
    %554 = vmatprep.subr.mxu0 %v535
    %555 = vmatpush1.msra.mxu0 %v534
    %556 = vmatprep.subr.mxu0 0.0
    %557 = vmatpush1.msra.mxu0 0.0
    %558 = vmatprep.subr.mxu0 0.0
    %559 = vmatpush1.msra.mxu0 0.0
    %560 = vmatprep.subr.mxu0 0.0
    %561 = vmatpush1.msra.mxu0 0.0
    %562 = vmatprep.subr.mxu0 0.0
    %563 = vmatpush1.msra.mxu0 0.0
    %564 = vmatprep.subr.mxu0 0.0
    %565 = vmatpush1.msra.mxu0 0.0
    %566 = vmatprep.subr.mxu0 0.0
    %567 = vmatpush1.msra.mxu0 0.0
    %568 = vmatprep.subr.mxu0 0.0
    %569 = vmatpush1.msra.mxu0 0.0
    %570 = vmatprep.subr.mxu0 0.0
    %571 = vmatpush1.msra.mxu0 0.0
    %572 = vmatprep.subr.mxu0 0.0
    %573 = vmatpush1.msra.mxu0 0.0
    %574 = vmatprep.subr.mxu0 0.0
    %575 = vmatpush1.msra.mxu0 0.0
    %576 = vmatprep.subr.mxu0 0.0
    %577 = vmatpush1.msra.mxu0 0.0
    %578 = vmatprep.subr.mxu0 0.0
    %579 = vmatpush1.msra.mxu0 0.0
    %580 = vmatprep.subr.mxu0 0.0
    %581 = vmatpush1.msra.mxu0 0.0
    %582 = vmatprep.subr.mxu0 0.0
    %583 = vmatpush1.msra.mxu0 0.0
    %584 = vmatprep.subr.mxu0 0.0
    %585 = vmatpush1.msra.mxu0 0.0
    %586 = vmatprep.subr.mxu0 0.0
    %587 = vmatpush1.msra.mxu0 0.0
    %588 = vmatprep.subr.mxu0 0.0
    %589 = vmatpush1.msra.mxu0 0.0
    %590 = vmatprep.subr.mxu0 0.0
    %591 = vmatpush1.msra.mxu0 0.0
    %592 = vmatprep.subr.mxu0 0.0
    %593 = vmatpush1.msra.mxu0 0.0
    %594 = vmatprep.subr.mxu0 0.0
    %595 = vmatpush1.msra.mxu0 0.0
    %596 = vmatprep.subr.mxu0 0.0
    %597 = vmatpush1.msra.mxu0 0.0
    %598 = vmatprep.subr.mxu0 0.0
    %599 = vmatpush1.msra.mxu0 0.0
    %600 = vmatprep.subr.mxu0 0.0
    %601 = vmatpush1.msra.mxu0 0.0
    %602 = vmatprep.subr.mxu0 0.0
    %603 = vmatpush1.msra.mxu0 0.0
    %604 = vmatprep.subr.mxu0 0.0
    %605 = vmatpush1.msra.mxu0 0.0
    %606 = vmatprep.subr.mxu0 0.0
    %607 = vmatpush1.msra.mxu0 0.0
    %608 = vmatprep.subr.mxu0 0.0
    %609 = vmatpush1.msra.mxu0 0.0
    %610 = vmatprep.subr.mxu0 0.0
    %611 = vmatpush1.msra.mxu0 0.0
    %612 = vmatprep.mubr.f32.mxu0 0.0
    %613 = vmatmul.mubr.f32.gmra.mrb[0].mxu0 %v537
    %v614 = vpop.f32.mrb[0].mxu0
    %v615 = vadd.f32 0.0, %v614
    %v616 = vpop.f32.mrb[0].mxu0
    %v617 = vadd.f32 0.0, %v616
    %618 = vmatprep.mubr.f32.mxu0 0.0
    %619 = vmatmul.mubr.f32.gmra.mrb[0].mxu0 %v540
    %v620 = vpop.f32.mrb[0].mxu0
    %v621 = vadd.f32 0.0, %v620
    %v622 = vpop.f32.mrb[0].mxu0
    %v623 = vadd.f32 0.0, %v622
    %624 = vmatprep.mubr.f32.mxu0 0.0
    %625 = vmatmul.mubr.f32.gmra.mrb[0].mxu0 %v543
    %v626 = vpop.f32.mrb[0].mxu0
    %v627 = vadd.f32 0.0, %v626
    %v628 = vpop.f32.mrb[0].mxu0
    %v629 = vadd.f32 0.0, %v628
    %630 = vmatprep.mubr.f32.mxu0 0.0
    %631 = vmatmul.mubr.f32.gmra.mrb[0].mxu0 %v546
    %v632 = vpop.f32.mrb[0].mxu0
    %v633 = vadd.f32 0.0, %v632
    %v634 = vpop.f32.mrb[0].mxu0
    %v635 = vadd.f32 0.0, %v634
    %636 = vdwg.mxu0
    %v637 = vadd.f32 %v515, %v615
    %v638 = vadd.f32 %v516, %v617
    %v639 = vadd.f32 %v517, %v621
    %v640 = vadd.f32 %v518, %v623
    %v641 = vadd.f32 %v519, %v627
    %v642 = vadd.f32 %v520, %v629
    %v643 = vadd.f32 %v521, %v633
    %v644 = vadd.f32 %v522, %v635
    %v645 = vld [vmem:[%s2] sm:$0x3]
    %v647 = vlaneseq
    %v648 = vshrl.u32 %v647, 7
    %v649 = vsub.s32 0, %v648
    %v650 = vrot.slane %v645, %v649
    %v651 = vlaneseq
    %v652 = vshrl.u32 %v651, 7
    %v653 = vsub.s32 1, %v652
    %v654 = vrot.slane %v645, %v653
    %v657 = vadd.f32 %v637, %v650
    %v658 = vadd.f32 %v638, %v654
    %v659 = vadd.f32 %v639, %v650
    %v660 = vadd.f32 %v640, %v654
    %v661 = vadd.f32 %v641, %v650
    %v662 = vadd.f32 %v642, %v654
    %v663 = vadd.f32 %v643, %v650
    %v664 = vadd.f32 %v644, %v654
    %v665 = vsub.f32 0.0, %v657
    %v666 = vsub.f32 0.0, %v658
    %v667 = vsub.f32 0.0, %v659
    %v668 = vsub.f32 0.0, %v660
    %v669 = vsub.f32 0.0, %v661
    %v670 = vsub.f32 0.0, %v662
    %v671 = vsub.f32 0.0, %v663
    %v672 = vsub.f32 0.0, %v664
    %v673 = vmul.f32 %v665, 1.442695
    %v674 = vpow.pop %v673
    %v675 = vmul.f32 %v666, 1.442695
    %v676 = vpow.pop %v675
    %v677 = vmul.f32 %v667, 1.442695
    %v678 = vpow.pop %v677
    %v679 = vmul.f32 %v668, 1.442695
    %v680 = vpow.pop %v679
    %v681 = vmul.f32 %v669, 1.442695
    %v682 = vpow.pop %v681
    %v683 = vmul.f32 %v670, 1.442695
    %v684 = vpow.pop %v683
    %v685 = vmul.f32 %v671, 1.442695
    %v686 = vpow.pop %v685
    %v687 = vmul.f32 %v672, 1.442695
    %v688 = vpow.pop %v687
    %v689 = vadd.f32 %v674, 1.0
    %v690 = vadd.f32 %v676, 1.0
    %v691 = vadd.f32 %v678, 1.0
    %v692 = vadd.f32 %v680, 1.0
    %v693 = vadd.f32 %v682, 1.0
    %v694 = vadd.f32 %v684, 1.0
    %v695 = vadd.f32 %v686, 1.0
    %v696 = vadd.f32 %v688, 1.0
    %v697 = vrcp.pop %v689
    %v698 = vmul.f32 1.0, %v697
    %v699 = vrcp.pop %v690
    %v700 = vmul.f32 1.0, %v699
    %v701 = vrcp.pop %v691
    %v702 = vmul.f32 1.0, %v701
    %v703 = vrcp.pop %v692
    %v704 = vmul.f32 1.0, %v703
    %v705 = vrcp.pop %v693
    %v706 = vmul.f32 1.0, %v705
    %v707 = vrcp.pop %v694
    %v708 = vmul.f32 1.0, %v707
    %v709 = vrcp.pop %v695
    %v710 = vmul.f32 1.0, %v709
    %v711 = vrcp.pop %v696
    %v712 = vmul.f32 1.0, %v711
    %v713 = vld [vmem:[%s3] sm:$0xff]
    %v714 = vld [vmem:[%s3 + $0x8] sm:$0x3f]
    %vm715 = vcmask 228352
    %v717 = vsel %vm715, %v713, 0
    %v720 = vsel %vm715, %v714, 0
    %vm722 = vcmask 1043456
    %v724 = vsel %vm722, %v710, 0
    %v727 = vsel %vm722, %v712, 0
    %729 = vmatprep.subr.mxu0 %v700
    %730 = vmatpush1.msra.mxu0 %v698
    %731 = vmatprep.subr.mxu0 %v704
    %732 = vmatpush1.msra.mxu0 %v702
    %733 = vmatprep.subr.mxu0 %v708
    %734 = vmatpush1.msra.mxu0 %v706
    %735 = vmatprep.subr.mxu0 %v727
    %736 = vmatpush1.msra.mxu0 %v724
    %737 = vmatprep.subr.mxu0 0.0
    %738 = vmatpush1.msra.mxu0 0.0
    %739 = vmatprep.subr.mxu0 0.0
    %740 = vmatpush1.msra.mxu0 0.0
    %741 = vmatprep.subr.mxu0 0.0
    %742 = vmatpush1.msra.mxu0 0.0
    %743 = vmatprep.subr.mxu0 0.0
    %744 = vmatpush1.msra.mxu0 0.0
    %745 = vmatprep.subr.mxu0 0.0
    %746 = vmatpush1.msra.mxu0 0.0
    %747 = vmatprep.subr.mxu0 0.0
    %748 = vmatpush1.msra.mxu0 0.0
    %749 = vmatprep.subr.mxu0 0.0
    %750 = vmatpush1.msra.mxu0 0.0
    %751 = vmatprep.subr.mxu0 0.0
    %752 = vmatpush1.msra.mxu0 0.0
    %753 = vmatprep.subr.mxu0 0.0
    %754 = vmatpush1.msra.mxu0 0.0
    %755 = vmatprep.subr.mxu0 0.0
    %756 = vmatpush1.msra.mxu0 0.0
    %757 = vmatprep.subr.mxu0 0.0
    %758 = vmatpush1.msra.mxu0 0.0
    %759 = vmatprep.subr.mxu0 0.0
    %760 = vmatpush1.msra.mxu0 0.0
    %761 = vmatprep.subr.mxu0 0.0
    %762 = vmatpush1.msra.mxu0 0.0
    %763 = vmatprep.subr.mxu0 0.0
    %764 = vmatpush1.msra.mxu0 0.0
    %765 = vmatprep.subr.mxu0 0.0
    %766 = vmatpush1.msra.mxu0 0.0
    %767 = vmatprep.subr.mxu0 0.0
    %768 = vmatpush1.msra.mxu0 0.0
    %769 = vmatprep.subr.mxu0 0.0
    %770 = vmatpush1.msra.mxu0 0.0
    %771 = vmatprep.subr.mxu0 0.0
    %772 = vmatpush1.msra.mxu0 0.0
    %773 = vmatprep.subr.mxu0 0.0
    %774 = vmatpush1.msra.mxu0 0.0
    %775 = vmatprep.subr.mxu0 0.0
    %776 = vmatpush1.msra.mxu0 0.0
    %777 = vmatprep.subr.mxu0 0.0
    %778 = vmatpush1.msra.mxu0 0.0
    %779 = vmatprep.subr.mxu0 0.0
    %780 = vmatpush1.msra.mxu0 0.0
    %781 = vmatprep.subr.mxu0 0.0
    %782 = vmatpush1.msra.mxu0 0.0
    %783 = vmatprep.subr.mxu0 0.0
    %784 = vmatpush1.msra.mxu0 0.0
    %785 = vmatprep.subr.mxu0 0.0
    %786 = vmatpush1.msra.mxu0 0.0
    %787 = vmatprep.subr.mxu0 0.0
    %788 = vmatpush1.msra.mxu0 0.0
    %789 = vmatprep.subr.mxu0 0.0
    %790 = vmatpush1.msra.mxu0 0.0
    %791 = vmatprep.subr.mxu0 0.0
    %792 = vmatpush1.msra.mxu0 0.0
    %793 = vmatprep.mubr.f32.mxu0 0.0
    %794 = vmatmul.mubr.f32.gmra.mrb[0].mxu0 %v717
    %v795 = vpop.f32.mrb[0].mxu0
    %v796 = vadd.f32 0.0, %v795
    %v797 = vpop.f32.mrb[0].mxu0
    %v798 = vadd.f32 0.0, %v797
    %799 = vmatprep.mubr.f32.mxu0 0.0
    %800 = vmatmul.mubr.f32.gmra.mrb[0].mxu0 %v720
    %v801 = vpop.f32.mrb[0].mxu0
    %v802 = vadd.f32 0.0, %v801
    %v803 = vpop.f32.mrb[0].mxu0
    %v804 = vadd.f32 0.0, %v803
    %805 = vdwg.mxu0
    %v806 = vld [vmem:[%s4] sm:$0xff]
    %v807 = vld [vmem:[%s4 + $0x8] sm:$0xff]
    %v808 = vld [vmem:[%s4 + $0x10] sm:$0xff]
    %v809 = vld [vmem:[%s4 + $0x18] sm:$0xff]
    %v810 = vld [vmem:[%s4 + $0x20] sm:$0xff]
    %v811 = vld [vmem:[%s4 + $0x28] sm:$0xff]
    %v812 = vld [vmem:[%s4 + $0x30] sm:$0xff]
    %v813 = vld [vmem:[%s4 + $0x38] sm:$0xff]
    %v814 = vld [vmem:[%s4 + $0x40] sm:$0xff]
    %v815 = vld [vmem:[%s4 + $0x48] sm:$0xff]
    %v816 = vld [vmem:[%s4 + $0x50] sm:$0xff]
    %v817 = vld [vmem:[%s4 + $0x58] sm:$0xff]
    %v818 = vld [vmem:[%s4 + $0x60] sm:$0xff]
    %v819 = vld [vmem:[%s4 + $0x68] sm:$0xff]
    %v820 = vld [vmem:[%s4 + $0x70] sm:$0xff]
    %v821 = vld [vmem:[%s4 + $0x78] sm:$0xff]
    %v822 = vld [vmem:[%s4 + $0x80] sm:$0xff]
    %v823 = vld [vmem:[%s4 + $0x88] sm:$0xff]
    %v824 = vld [vmem:[%s4 + $0x90] sm:$0xff]
    %v825 = vld [vmem:[%s4 + $0x98] sm:$0xff]
    %v826 = vld [vmem:[%s4 + $0xa0] sm:$0xff]
    %vm827 = vcmask 326656
    %v829 = vsel %vm827, %v798, 0
    %v832 = vsel %vm827, %v804, 0
    %834 = vmatprep.subr.mxu0 0.0
    %835 = vmatpush1.msra.mxu0 %v806
    %836 = vmatprep.subr.mxu0 0.0
    %837 = vmatpush1.msra.mxu0 %v807
    %838 = vmatprep.subr.mxu0 0.0
    %839 = vmatpush1.msra.mxu0 %v808
    %840 = vmatprep.subr.mxu0 0.0
    %841 = vmatpush1.msra.mxu0 %v809
    %842 = vmatprep.subr.mxu0 0.0
    %843 = vmatpush1.msra.mxu0 %v810
    %844 = vmatprep.subr.mxu0 0.0
    %845 = vmatpush1.msra.mxu0 %v811
    %846 = vmatprep.subr.mxu0 0.0
    %847 = vmatpush1.msra.mxu0 %v812
    %848 = vmatprep.subr.mxu0 0.0
    %849 = vmatpush1.msra.mxu0 %v813
    %850 = vmatprep.subr.mxu0 0.0
    %851 = vmatpush1.msra.mxu0 %v814
    %852 = vmatprep.subr.mxu0 0.0
    %853 = vmatpush1.msra.mxu0 %v815
    %854 = vmatprep.subr.mxu0 0.0
    %855 = vmatpush1.msra.mxu0 %v816
    %856 = vmatprep.subr.mxu0 0.0
    %857 = vmatpush1.msra.mxu0 %v817
    %858 = vmatprep.subr.mxu0 0.0
    %859 = vmatpush1.msra.mxu0 %v818
    %860 = vmatprep.subr.mxu0 0.0
    %861 = vmatpush1.msra.mxu0 %v819
    %862 = vmatprep.subr.mxu0 0.0
    %863 = vmatpush1.msra.mxu0 %v820
    %864 = vmatprep.subr.mxu0 0.0
    %865 = vmatpush1.msra.mxu0 %v821
    %866 = vmatprep.subr.mxu0 0.0
    %867 = vmatpush1.msra.mxu0 %v822
    %868 = vmatprep.subr.mxu0 0.0
    %869 = vmatpush1.msra.mxu0 %v823
    %870 = vmatprep.subr.mxu0 0.0
    %871 = vmatpush1.msra.mxu0 %v824
    %872 = vmatprep.subr.mxu0 0.0
    %873 = vmatpush1.msra.mxu0 %v825
    %874 = vmatprep.subr.mxu0 0.0
    %875 = vmatpush1.msra.mxu0 %v826
    %876 = vmatprep.subr.mxu0 0.0
    %877 = vmatpush1.msra.mxu0 0.0
    %878 = vmatprep.subr.mxu0 0.0
    %879 = vmatpush1.msra.mxu0 0.0
    %880 = vmatprep.subr.mxu0 0.0
    %881 = vmatpush1.msra.mxu0 0.0
    %882 = vmatprep.subr.mxu0 0.0
    %883 = vmatpush1.msra.mxu0 0.0
    %884 = vmatprep.subr.mxu0 0.0
    %885 = vmatpush1.msra.mxu0 0.0
    %886 = vmatprep.subr.mxu0 0.0
    %887 = vmatpush1.msra.mxu0 0.0
    %888 = vmatprep.subr.mxu0 0.0
    %889 = vmatpush1.msra.mxu0 0.0
    %890 = vmatprep.subr.mxu0 0.0
    %891 = vmatpush1.msra.mxu0 0.0
    %892 = vmatprep.subr.mxu0 0.0
    %893 = vmatpush1.msra.mxu0 0.0
    %894 = vmatprep.subr.mxu0 0.0
    %895 = vmatpush1.msra.mxu0 0.0
    %896 = vmatprep.subr.mxu0 0.0
    %897 = vmatpush1.msra.mxu0 0.0
    %898 = vmatprep.mubr.f32.mxu0 %v829
    %899 = vmatmul.mubr.f32.gmra.mrb[0].mxu0 %v796
    %v900 = vpop.f32.mrb[0].mxu0
    %v901 = vadd.f32 0.0, %v900
    %v902 = vpop.f32.mrb[0].mxu0
    %903 = vmatprep.mubr.f32.mxu0 %v832
    %904 = vmatmul.mubr.f32.gmra.mrb[0].mxu0 %v802
    %v905 = vpop.f32.mrb[0].mxu0
    %v906 = vadd.f32 0.0, %v905
    %v907 = vpop.f32.mrb[0].mxu0
    %908 = vdwg.mxu0
    %vm909 = vcmask 687104
    %910 = vst.msk [vmem:[#allocation2] sm:$0xff] %vm909, %v901
    %vm911 = vcmask 685056
    %912 = vst.msk [vmem:[#allocation2 + $0x8] sm:$0x3f] %vm911, %v906
    %v913 = vld [vmem:[#allocation2] sm:$0xff]
    %v914 = vld [vmem:[#allocation2 + $0x8] sm:$0x3]
    %v915 = vld [vmem:[%s5] sm:$0xff]
    %v916 = vld [vmem:[%s5 + $0x8] sm:$0xff]
    %v917 = vld [vmem:[%s5 + $0x10] sm:$0xff]
    %v918 = vld [vmem:[%s5 + $0x18] sm:$0xff]
    %v919 = vld [vmem:[%s5 + $0x20] sm:$0xff]
    %v920 = vld [vmem:[%s5 + $0x28] sm:$0xff]
    %v921 = vld [vmem:[%s5 + $0x30] sm:$0xff]
    %v922 = vld [vmem:[%s5 + $0x38] sm:$0xff]
    %v923 = vld [vmem:[%s5 + $0x40] sm:$0xff]
    %v924 = vld [vmem:[%s5 + $0x48] sm:$0xff]
    %v925 = vld [vmem:[%s5 + $0x50] sm:$0xff]
    %v926 = vld [vmem:[%s5 + $0x58] sm:$0xff]
    %v927 = vld [vmem:[%s5 + $0x60] sm:$0xff]
    %v928 = vld [vmem:[%s5 + $0x68] sm:$0xff]
    %v929 = vld [vmem:[%s5 + $0x70] sm:$0xff]
    %v930 = vld [vmem:[%s5 + $0x78] sm:$0xff]
    %v931 = vld [vmem:[%s5 + $0x80] sm:$0xff]
    %v932 = vld [vmem:[%s5 + $0x88] sm:$0xff]
    %v933 = vld [vmem:[%s5 + $0x90] sm:$0xff]
    %v934 = vld [vmem:[%s5 + $0x98] sm:$0xff]
    %v935 = vld [vmem:[%s5 + $0xa0] sm:$0xf]
    %v936 = vld [vmem:[%s5 + $0xa8] sm:$0xf]
    %v937 = vld [vmem:[#allocation2 + $0x1] sm:$0xff]
    %v938 = vld [vmem:[#allocation2 + $0x9] sm:$0x3]
    %s939 = scalar_lea.vmem %s5, 176
    %v940 = vld [vmem:[%s939] sm:$0xff]
    %v941 = vld [vmem:[%s939 + $0x8] sm:$0xff]
    %v942 = vld [vmem:[%s939 + $0x10] sm:$0xff]
    %v943 = vld [vmem:[%s939 + $0x18] sm:$0xff]
    %v944 = vld [vmem:[%s939 + $0x20] sm:$0xff]
    %v945 = vld [vmem:[%s939 + $0x28] sm:$0xff]
    %v946 = vld [vmem:[%s939 + $0x30] sm:$0xff]
    %v947 = vld [vmem:[%s939 + $0x38] sm:$0xff]
    %v948 = vld [vmem:[%s939 + $0x40] sm:$0xff]
    %v949 = vld [vmem:[%s939 + $0x48] sm:$0xff]
    %v950 = vld [vmem:[%s939 + $0x50] sm:$0xff]
    %v951 = vld [vmem:[%s939 + $0x58] sm:$0xff]
    %v952 = vld [vmem:[%s939 + $0x60] sm:$0xff]
    %v953 = vld [vmem:[%s939 + $0x68] sm:$0xff]
    %v954 = vld [vmem:[%s939 + $0x70] sm:$0xff]
    %v955 = vld [vmem:[%s939 + $0x78] sm:$0xff]
    %v956 = vld [vmem:[%s939 + $0x80] sm:$0xff]
    %v957 = vld [vmem:[%s939 + $0x88] sm:$0xff]
    %v958 = vld [vmem:[%s939 + $0x90] sm:$0xff]
    %v959 = vld [vmem:[%s939 + $0x98] sm:$0xff]
    %v960 = vld [vmem:[%s939 + $0xa0] sm:$0xf]
    %v961 = vld [vmem:[%s939 + $0xa8] sm:$0xf]
    %v963 = vsel %vm909, %v937, 0
    %v966 = vsel %vm909, %v938, 0
    %v969 = vsel %vm722, %v960, 0
    %v972 = vsel %vm722, %v961, 0
    %974 = vmatprep.subr.mxu0 %v941
    %975 = vmatpush1.msra.mxu0 %v940
    %976 = vmatprep.subr.mxu0 %v943
    %977 = vmatpush1.msra.mxu0 %v942
    %978 = vmatprep.subr.mxu0 %v945
    %979 = vmatpush1.msra.mxu0 %v944
    %980 = vmatprep.subr.mxu0 %v947
    %981 = vmatpush1.msra.mxu0 %v946
    %982 = vmatprep.subr.mxu0 %v949
    %983 = vmatpush1.msra.mxu0 %v948
    %984 = vmatprep.subr.mxu0 %v951
    %985 = vmatpush1.msra.mxu0 %v950
    %986 = vmatprep.subr.mxu0 %v953
    %987 = vmatpush1.msra.mxu0 %v952
    %988 = vmatprep.subr.mxu0 %v955
    %989 = vmatpush1.msra.mxu0 %v954
    %990 = vmatprep.subr.mxu0 %v957
    %991 = vmatpush1.msra.mxu0 %v956
    %992 = vmatprep.subr.mxu0 %v959
    %993 = vmatpush1.msra.mxu0 %v958
    %994 = vmatprep.subr.mxu0 %v972
    %995 = vmatpush1.msra.mxu0 %v969
    %996 = vmatprep.subr.mxu0 0.0
    %997 = vmatpush1.msra.mxu0 0.0
    %998 = vmatprep.subr.mxu0 0.0
    %999 = vmatpush1.msra.mxu0 0.0
    %1000 = vmatprep.subr.mxu0 0.0
    %1001 = vmatpush1.msra.mxu0 0.0
    %1002 = vmatprep.subr.mxu0 0.0
    %1003 = vmatpush1.msra.mxu0 0.0
    %1004 = vmatprep.subr.mxu0 0.0
    %1005 = vmatpush1.msra.mxu0 0.0
    %1006 = vmatprep.subr.mxu0 0.0
    %1007 = vmatpush1.msra.mxu0 0.0
    %1008 = vmatprep.subr.mxu0 0.0
    %1009 = vmatpush1.msra.mxu0 0.0
    %1010 = vmatprep.subr.mxu0 0.0
    %1011 = vmatpush1.msra.mxu0 0.0
    %1012 = vmatprep.subr.mxu0 0.0
    %1013 = vmatpush1.msra.mxu0 0.0
    %1014 = vmatprep.subr.mxu0 0.0
    %1015 = vmatpush1.msra.mxu0 0.0
    %1016 = vmatprep.subr.mxu0 0.0
    %1017 = vmatpush1.msra.mxu0 0.0
    %1018 = vmatprep.subr.mxu0 0.0
    %1019 = vmatpush1.msra.mxu0 0.0
    %1020 = vmatprep.subr.mxu0 0.0
    %1021 = vmatpush1.msra.mxu0 0.0
    %1022 = vmatprep.subr.mxu0 0.0
    %1023 = vmatpush1.msra.mxu0 0.0
    %1024 = vmatprep.subr.mxu0 0.0
    %1025 = vmatpush1.msra.mxu0 0.0
    %1026 = vmatprep.subr.mxu0 0.0
    %1027 = vmatpush1.msra.mxu0 0.0
    %1028 = vmatprep.subr.mxu0 0.0
    %1029 = vmatpush1.msra.mxu0 0.0
    %1030 = vmatprep.subr.mxu0 0.0
    %1031 = vmatpush1.msra.mxu0 0.0
    %1032 = vmatprep.subr.mxu0 0.0
    %1033 = vmatpush1.msra.mxu0 0.0
    %1034 = vmatprep.subr.mxu0 0.0
    %1035 = vmatpush1.msra.mxu0 0.0
    %1036 = vmatprep.subr.mxu0 0.0
    %1037 = vmatpush1.msra.mxu0 0.0
    %1038 = vmatprep.mubr.f32.mxu0 0.0
    %1039 = vmatmul.mubr.f32.gmra.mrb[0].mxu0 %v963
    %v1040 = vpop.f32.mrb[0].mxu0
    %v1041 = vadd.f32 0.0, %v1040
    %v1042 = vpop.f32.mrb[0].mxu0
    %v1043 = vadd.f32 0.0, %v1042
    %1044 = vmatprep.mubr.f32.mxu0 0.0
    %1045 = vmatmul.mubr.f32.gmra.mrb[0].mxu0 %v966
    %v1046 = vpop.f32.mrb[0].mxu0
    %v1047 = vadd.f32 0.0, %v1046
    %v1048 = vpop.f32.mrb[0].mxu0
    %v1049 = vadd.f32 0.0, %v1048
    %1050 = vdwg.mxu0
    %v1052 = vsel %vm909, %v913, 0
    %v1055 = vsel %vm909, %v914, 0
    %v1058 = vsel %vm722, %v935, 0
    %v1061 = vsel %vm722, %v936, 0
    %1063 = vmatprep.subr.mxu0 %v916
    %1064 = vmatpush1.msra.mxu0 %v915
    %1065 = vmatprep.subr.mxu0 %v918
    %1066 = vmatpush1.msra.mxu0 %v917
    %1067 = vmatprep.subr.mxu0 %v920
    %1068 = vmatpush1.msra.mxu0 %v919
    %1069 = vmatprep.subr.mxu0 %v922
    %1070 = vmatpush1.msra.mxu0 %v921
    %1071 = vmatprep.subr.mxu0 %v924
    %1072 = vmatpush1.msra.mxu0 %v923
    %1073 = vmatprep.subr.mxu0 %v926
    %1074 = vmatpush1.msra.mxu0 %v925
    %1075 = vmatprep.subr.mxu0 %v928
    %1076 = vmatpush1.msra.mxu0 %v927
    %1077 = vmatprep.subr.mxu0 %v930
    %1078 = vmatpush1.msra.mxu0 %v929
    %1079 = vmatprep.subr.mxu0 %v932
    %1080 = vmatpush1.msra.mxu0 %v931
    %1081 = vmatprep.subr.mxu0 %v934
    %1082 = vmatpush1.msra.mxu0 %v933
    %1083 = vmatprep.subr.mxu0 %v1061
    %1084 = vmatpush1.msra.mxu0 %v1058
    %1085 = vmatprep.subr.mxu0 0.0
    %1086 = vmatpush1.msra.mxu0 0.0
    %1087 = vmatprep.subr.mxu0 0.0
    %1088 = vmatpush1.msra.mxu0 0.0
    %1089 = vmatprep.subr.mxu0 0.0
    %1090 = vmatpush1.msra.mxu0 0.0
    %1091 = vmatprep.subr.mxu0 0.0
    %1092 = vmatpush1.msra.mxu0 0.0
    %1093 = vmatprep.subr.mxu0 0.0
    %1094 = vmatpush1.msra.mxu0 0.0
    %1095 = vmatprep.subr.mxu0 0.0
    %1096 = vmatpush1.msra.mxu0 0.0
    %1097 = vmatprep.subr.mxu0 0.0
    %1098 = vmatpush1.msra.mxu0 0.0
    %1099 = vmatprep.subr.mxu0 0.0
    %1100 = vmatpush1.msra.mxu0 0.0
    %1101 = vmatprep.subr.mxu0 0.0
    %1102 = vmatpush1.msra.mxu0 0.0
    %1103 = vmatprep.subr.mxu0 0.0
    %1104 = vmatpush1.msra.mxu0 0.0
    %1105 = vmatprep.subr.mxu0 0.0
    %1106 = vmatpush1.msra.mxu0 0.0
    %1107 = vmatprep.subr.mxu0 0.0
    %1108 = vmatpush1.msra.mxu0 0.0
    %1109 = vmatprep.subr.mxu0 0.0
    %1110 = vmatpush1.msra.mxu0 0.0
    %1111 = vmatprep.subr.mxu0 0.0
    %1112 = vmatpush1.msra.mxu0 0.0
    %1113 = vmatprep.subr.mxu0 0.0
    %1114 = vmatpush1.msra.mxu0 0.0
    %1115 = vmatprep.subr.mxu0 0.0
    %1116 = vmatpush1.msra.mxu0 0.0
    %1117 = vmatprep.subr.mxu0 0.0
    %1118 = vmatpush1.msra.mxu0 0.0
    %1119 = vmatprep.subr.mxu0 0.0
    %1120 = vmatpush1.msra.mxu0 0.0
    %1121 = vmatprep.subr.mxu0 0.0
    %1122 = vmatpush1.msra.mxu0 0.0
    %1123 = vmatprep.subr.mxu0 0.0
    %1124 = vmatpush1.msra.mxu0 0.0
    %1125 = vmatprep.subr.mxu0 0.0
    %1126 = vmatpush1.msra.mxu0 0.0
    %1127 = vmatprep.mubr.f32.mxu0 0.0
    %1128 = vmatmul.mubr.f32.gmra.mrb[0].mxu0 %v1052
    %v1129 = vpop.f32.mrb[0].mxu0
    %v1130 = vadd.f32 %v1041, %v1129
    %v1131 = vpop.f32.mrb[0].mxu0
    %v1132 = vadd.f32 %v1043, %v1131
    %1133 = vmatprep.mubr.f32.mxu0 0.0
    %1134 = vmatmul.mubr.f32.gmra.mrb[0].mxu0 %v1055
    %v1135 = vpop.f32.mrb[0].mxu0
    %v1136 = vadd.f32 %v1047, %v1135
    %v1137 = vpop.f32.mrb[0].mxu0
    %v1138 = vadd.f32 %v1049, %v1137
    %1139 = vdwg.mxu0
    %v1140 = vld [vmem:[#allocation2 + $0x2] sm:$0xff]
    %v1141 = vld [vmem:[#allocation2 + $0xa] sm:$0x3]
    %s1142 = scalar_lea.vmem %s5, 352
    %v1143 = vld [vmem:[%s1142] sm:$0xff]
    %v1144 = vld [vmem:[%s1142 + $0x8] sm:$0xff]
    %v1145 = vld [vmem:[%s1142 + $0x10] sm:$0xff]
    %v1146 = vld [vmem:[%s1142 + $0x18] sm:$0xff]
    %v1147 = vld [vmem:[%s1142 + $0x20] sm:$0xff]
    %v1148 = vld [vmem:[%s1142 + $0x28] sm:$0xff]
    %v1149 = vld [vmem:[%s1142 + $0x30] sm:$0xff]
    %v1150 = vld [vmem:[%s1142 + $0x38] sm:$0xff]
    %v1151 = vld [vmem:[%s1142 + $0x40] sm:$0xff]
    %v1152 = vld [vmem:[%s1142 + $0x48] sm:$0xff]
    %v1153 = vld [vmem:[%s1142 + $0x50] sm:$0xff]
    %v1154 = vld [vmem:[%s1142 + $0x58] sm:$0xff]
    %v1155 = vld [vmem:[%s1142 + $0x60] sm:$0xff]
    %v1156 = vld [vmem:[%s1142 + $0x68] sm:$0xff]
    %v1157 = vld [vmem:[%s1142 + $0x70] sm:$0xff]
    %v1158 = vld [vmem:[%s1142 + $0x78] sm:$0xff]
    %v1159 = vld [vmem:[%s1142 + $0x80] sm:$0xff]
    %v1160 = vld [vmem:[%s1142 + $0x88] sm:$0xff]
    %v1161 = vld [vmem:[%s1142 + $0x90] sm:$0xff]
    %v1162 = vld [vmem:[%s1142 + $0x98] sm:$0xff]
    %v1163 = vld [vmem:[%s1142 + $0xa0] sm:$0xf]
    %v1164 = vld [vmem:[%s1142 + $0xa8] sm:$0xf]
    %v1166 = vsel %vm909, %v1140, 0
    %v1169 = vsel %vm909, %v1141, 0
    %v1172 = vsel %vm722, %v1163, 0
    %v1175 = vsel %vm722, %v1164, 0
    %1177 = vmatprep.subr.mxu0 %v1144
    %1178 = vmatpush1.msra.mxu0 %v1143
    %1179 = vmatprep.subr.mxu0 %v1146
    %1180 = vmatpush1.msra.mxu0 %v1145
    %1181 = vmatprep.subr.mxu0 %v1148
    %1182 = vmatpush1.msra.mxu0 %v1147
    %1183 = vmatprep.subr.mxu0 %v1150
    %1184 = vmatpush1.msra.mxu0 %v1149
    %1185 = vmatprep.subr.mxu0 %v1152
    %1186 = vmatpush1.msra.mxu0 %v1151
    %1187 = vmatprep.subr.mxu0 %v1154
    %1188 = vmatpush1.msra.mxu0 %v1153
    %1189 = vmatprep.subr.mxu0 %v1156
    %1190 = vmatpush1.msra.mxu0 %v1155
    %1191 = vmatprep.subr.mxu0 %v1158
    %1192 = vmatpush1.msra.mxu0 %v1157
    %1193 = vmatprep.subr.mxu0 %v1160
    %1194 = vmatpush1.msra.mxu0 %v1159
    %1195 = vmatprep.subr.mxu0 %v1162
    %1196 = vmatpush1.msra.mxu0 %v1161
    %1197 = vmatprep.subr.mxu0 %v1175
    %1198 = vmatpush1.msra.mxu0 %v1172
    %1199 = vmatprep.subr.mxu0 0.0
    %1200 = vmatpush1.msra.mxu0 0.0
    %1201 = vmatprep.subr.mxu0 0.0
    %1202 = vmatpush1.msra.mxu0 0.0
    %1203 = vmatprep.subr.mxu0 0.0
    %1204 = vmatpush1.msra.mxu0 0.0
    %1205 = vmatprep.subr.mxu0 0.0
    %1206 = vmatpush1.msra.mxu0 0.0
    %1207 = vmatprep.subr.mxu0 0.0
    %1208 = vmatpush1.msra.mxu0 0.0
    %1209 = vmatprep.subr.mxu0 0.0
    %1210 = vmatpush1.msra.mxu0 0.0
    %1211 = vmatprep.subr.mxu0 0.0
    %1212 = vmatpush1.msra.mxu0 0.0
    %1213 = vmatprep.subr.mxu0 0.0
    %1214 = vmatpush1.msra.mxu0 0.0
    %1215 = vmatprep.subr.mxu0 0.0
    %1216 = vmatpush1.msra.mxu0 0.0
    %1217 = vmatprep.subr.mxu0 0.0
    %1218 = vmatpush1.msra.mxu0 0.0
    %1219 = vmatprep.subr.mxu0 0.0
    %1220 = vmatpush1.msra.mxu0 0.0
    %1221 = vmatprep.subr.mxu0 0.0
    %1222 = vmatpush1.msra.mxu0 0.0
    %1223 = vmatprep.subr.mxu0 0.0
    %1224 = vmatpush1.msra.mxu0 0.0
    %1225 = vmatprep.subr.mxu0 0.0
    %1226 = vmatpush1.msra.mxu0 0.0
    %1227 = vmatprep.subr.mxu0 0.0
    %1228 = vmatpush1.msra.mxu0 0.0
    %1229 = vmatprep.subr.mxu0 0.0
    %1230 = vmatpush1.msra.mxu0 0.0
    %1231 = vmatprep.subr.mxu0 0.0
    %1232 = vmatpush1.msra.mxu0 0.0
    %1233 = vmatprep.subr.mxu0 0.0
    %1234 = vmatpush1.msra.mxu0 0.0
    %1235 = vmatprep.subr.mxu0 0.0
    %1236 = vmatpush1.msra.mxu0 0.0
    %1237 = vmatprep.subr.mxu0 0.0
    %1238 = vmatpush1.msra.mxu0 0.0
    %1239 = vmatprep.subr.mxu0 0.0
    %1240 = vmatpush1.msra.mxu0 0.0
    %1241 = vmatprep.mubr.f32.mxu0 0.0
    %1242 = vmatmul.mubr.f32.gmra.mrb[0].mxu0 %v1166
    %v1243 = vpop.f32.mrb[0].mxu0
    %v1244 = vadd.f32 0.0, %v1243
    %v1245 = vpop.f32.mrb[0].mxu0
    %v1246 = vadd.f32 0.0, %v1245
    %1247 = vmatprep.mubr.f32.mxu0 0.0
    %1248 = vmatmul.mubr.f32.gmra.mrb[0].mxu0 %v1169
    %v1249 = vpop.f32.mrb[0].mxu0
    %v1250 = vadd.f32 0.0, %v1249
    %v1251 = vpop.f32.mrb[0].mxu0
    %v1252 = vadd.f32 0.0, %v1251
    %1253 = vdwg.mxu0
    %v1254 = vadd.f32 %v1130, %v1244
    %v1255 = vadd.f32 %v1132, %v1246
    %v1256 = vadd.f32 %v1136, %v1250
    %v1257 = vadd.f32 %v1138, %v1252
    %v1258 = vld [vmem:[#allocation2 + $0x3] sm:$0xff]
    %v1259 = vld [vmem:[#allocation2 + $0xb] sm:$0x3]
    %s1260 = scalar_lea.vmem %s5, 528
    %v1261 = vld [vmem:[%s1260] sm:$0xff]
    %v1262 = vld [vmem:[%s1260 + $0x8] sm:$0xff]
    %v1263 = vld [vmem:[%s1260 + $0x10] sm:$0xff]
    %v1264 = vld [vmem:[%s1260 + $0x18] sm:$0xff]
    %v1265 = vld [vmem:[%s1260 + $0x20] sm:$0xff]
    %v1266 = vld [vmem:[%s1260 + $0x28] sm:$0xff]
    %v1267 = vld [vmem:[%s1260 + $0x30] sm:$0xff]
    %v1268 = vld [vmem:[%s1260 + $0x38] sm:$0xff]
    %v1269 = vld [vmem:[%s1260 + $0x40] sm:$0xff]
    %v1270 = vld [vmem:[%s1260 + $0x48] sm:$0xff]
    %v1271 = vld [vmem:[%s1260 + $0x50] sm:$0xff]
    %v1272 = vld [vmem:[%s1260 + $0x58] sm:$0xff]
    %v1273 = vld [vmem:[%s1260 + $0x60] sm:$0xff]
    %v1274 = vld [vmem:[%s1260 + $0x68] sm:$0xff]
    %v1275 = vld [vmem:[%s1260 + $0x70] sm:$0xff]
    %v1276 = vld [vmem:[%s1260 + $0x78] sm:$0xff]
    %v1277 = vld [vmem:[%s1260 + $0x80] sm:$0xff]
    %v1278 = vld [vmem:[%s1260 + $0x88] sm:$0xff]
    %v1279 = vld [vmem:[%s1260 + $0x90] sm:$0xff]
    %v1280 = vld [vmem:[%s1260 + $0x98] sm:$0xff]
    %v1281 = vld [vmem:[%s1260 + $0xa0] sm:$0xf]
    %v1282 = vld [vmem:[%s1260 + $0xa8] sm:$0xf]
    %v1284 = vsel %vm909, %v1258, 0
    %v1287 = vsel %vm909, %v1259, 0
    %v1290 = vsel %vm722, %v1281, 0
    %v1293 = vsel %vm722, %v1282, 0
    %1295 = vmatprep.subr.mxu0 %v1262
    %1296 = vmatpush1.msra.mxu0 %v1261
    %1297 = vmatprep.subr.mxu0 %v1264
    %1298 = vmatpush1.msra.mxu0 %v1263
    %1299 = vmatprep.subr.mxu0 %v1266
    %1300 = vmatpush1.msra.mxu0 %v1265
    %1301 = vmatprep.subr.mxu0 %v1268
    %1302 = vmatpush1.msra.mxu0 %v1267
    %1303 = vmatprep.subr.mxu0 %v1270
    %1304 = vmatpush1.msra.mxu0 %v1269
    %1305 = vmatprep.subr.mxu0 %v1272
    %1306 = vmatpush1.msra.mxu0 %v1271
    %1307 = vmatprep.subr.mxu0 %v1274
    %1308 = vmatpush1.msra.mxu0 %v1273
    %1309 = vmatprep.subr.mxu0 %v1276
    %1310 = vmatpush1.msra.mxu0 %v1275
    %1311 = vmatprep.subr.mxu0 %v1278
    %1312 = vmatpush1.msra.mxu0 %v1277
    %1313 = vmatprep.subr.mxu0 %v1280
    %1314 = vmatpush1.msra.mxu0 %v1279
    %1315 = vmatprep.subr.mxu0 %v1293
    %1316 = vmatpush1.msra.mxu0 %v1290
    %1317 = vmatprep.subr.mxu0 0.0
    %1318 = vmatpush1.msra.mxu0 0.0
    %1319 = vmatprep.subr.mxu0 0.0
    %1320 = vmatpush1.msra.mxu0 0.0
    %1321 = vmatprep.subr.mxu0 0.0
    %1322 = vmatpush1.msra.mxu0 0.0
    %1323 = vmatprep.subr.mxu0 0.0
    %1324 = vmatpush1.msra.mxu0 0.0
    %1325 = vmatprep.subr.mxu0 0.0
    %1326 = vmatpush1.msra.mxu0 0.0
    %1327 = vmatprep.subr.mxu0 0.0
    %1328 = vmatpush1.msra.mxu0 0.0
    %1329 = vmatprep.subr.mxu0 0.0
    %1330 = vmatpush1.msra.mxu0 0.0
    %1331 = vmatprep.subr.mxu0 0.0
    %1332 = vmatpush1.msra.mxu0 0.0
    %1333 = vmatprep.subr.mxu0 0.0
    %1334 = vmatpush1.msra.mxu0 0.0
    %1335 = vmatprep.subr.mxu0 0.0
    %1336 = vmatpush1.msra.mxu0 0.0
    %1337 = vmatprep.subr.mxu0 0.0
    %1338 = vmatpush1.msra.mxu0 0.0
    %1339 = vmatprep.subr.mxu0 0.0
    %1340 = vmatpush1.msra.mxu0 0.0
    %1341 = vmatprep.subr.mxu0 0.0
    %1342 = vmatpush1.msra.mxu0 0.0
    %1343 = vmatprep.subr.mxu0 0.0
    %1344 = vmatpush1.msra.mxu0 0.0
    %1345 = vmatprep.subr.mxu0 0.0
    %1346 = vmatpush1.msra.mxu0 0.0
    %1347 = vmatprep.subr.mxu0 0.0
    %1348 = vmatpush1.msra.mxu0 0.0
    %1349 = vmatprep.subr.mxu0 0.0
    %1350 = vmatpush1.msra.mxu0 0.0
    %1351 = vmatprep.subr.mxu0 0.0
    %1352 = vmatpush1.msra.mxu0 0.0
    %1353 = vmatprep.subr.mxu0 0.0
    %1354 = vmatpush1.msra.mxu0 0.0
    %1355 = vmatprep.subr.mxu0 0.0
    %1356 = vmatpush1.msra.mxu0 0.0
    %1357 = vmatprep.subr.mxu0 0.0
    %1358 = vmatpush1.msra.mxu0 0.0
    %1359 = vmatprep.mubr.f32.mxu0 0.0
    %1360 = vmatmul.mubr.f32.gmra.mrb[0].mxu0 %v1284
    %v1361 = vpop.f32.mrb[0].mxu0
    %v1362 = vadd.f32 0.0, %v1361
    %v1363 = vpop.f32.mrb[0].mxu0
    %v1364 = vadd.f32 0.0, %v1363
    %1365 = vmatprep.mubr.f32.mxu0 0.0
    %1366 = vmatmul.mubr.f32.gmra.mrb[0].mxu0 %v1287
    %v1367 = vpop.f32.mrb[0].mxu0
    %v1368 = vadd.f32 0.0, %v1367
    %v1369 = vpop.f32.mrb[0].mxu0
    %v1370 = vadd.f32 0.0, %v1369
    %1371 = vdwg.mxu0
    %v1372 = vadd.f32 %v1254, %v1362
    %v1373 = vadd.f32 %v1255, %v1364
    %v1374 = vadd.f32 %v1256, %v1368
    %v1375 = vadd.f32 %v1257, %v1370
    %v1376 = vld [vmem:[#allocation2 + $0x4] sm:$0xff]
    %v1377 = vld [vmem:[#allocation2 + $0xc] sm:$0x3]
    %s1378 = scalar_lea.vmem %s5, 704
    %v1379 = vld [vmem:[%s1378] sm:$0xff]
    %v1380 = vld [vmem:[%s1378 + $0x8] sm:$0xff]
    %v1381 = vld [vmem:[%s1378 + $0x10] sm:$0xff]
    %v1382 = vld [vmem:[%s1378 + $0x18] sm:$0xff]
    %v1383 = vld [vmem:[%s1378 + $0x20] sm:$0xff]
    %v1384 = vld [vmem:[%s1378 + $0x28] sm:$0xff]
    %v1385 = vld [vmem:[%s1378 + $0x30] sm:$0xff]
    %v1386 = vld [vmem:[%s1378 + $0x38] sm:$0xff]
    %v1387 = vld [vmem:[%s1378 + $0x40] sm:$0xff]
    %v1388 = vld [vmem:[%s1378 + $0x48] sm:$0xff]
    %v1389 = vld [vmem:[%s1378 + $0x50] sm:$0xff]
    %v1390 = vld [vmem:[%s1378 + $0x58] sm:$0xff]
    %v1391 = vld [vmem:[%s1378 + $0x60] sm:$0xff]
    %v1392 = vld [vmem:[%s1378 + $0x68] sm:$0xff]
    %v1393 = vld [vmem:[%s1378 + $0x70] sm:$0xff]
    %v1394 = vld [vmem:[%s1378 + $0x78] sm:$0xff]
    %v1395 = vld [vmem:[%s1378 + $0x80] sm:$0xff]
    %v1396 = vld [vmem:[%s1378 + $0x88] sm:$0xff]
    %v1397 = vld [vmem:[%s1378 + $0x90] sm:$0xff]
    %v1398 = vld [vmem:[%s1378 + $0x98] sm:$0xff]
    %v1399 = vld [vmem:[%s1378 + $0xa0] sm:$0xf]
    %v1400 = vld [vmem:[%s1378 + $0xa8] sm:$0xf]
    %v1402 = vsel %vm909, %v1376, 0
    %v1405 = vsel %vm909, %v1377, 0
    %v1408 = vsel %vm722, %v1399, 0
    %v1411 = vsel %vm722, %v1400, 0
    %1413 = vmatprep.subr.mxu0 %v1380
    %1414 = vmatpush1.msra.mxu0 %v1379
    %1415 = vmatprep.subr.mxu0 %v1382
    %1416 = vmatpush1.msra.mxu0 %v1381
    %1417 = vmatprep.subr.mxu0 %v1384
    %1418 = vmatpush1.msra.mxu0 %v1383
    %1419 = vmatprep.subr.mxu0 %v1386
    %1420 = vmatpush1.msra.mxu0 %v1385
    %1421 = vmatprep.subr.mxu0 %v1388
    %1422 = vmatpush1.msra.mxu0 %v1387
    %1423 = vmatprep.subr.mxu0 %v1390
    %1424 = vmatpush1.msra.mxu0 %v1389
    %1425 = vmatprep.subr.mxu0 %v1392
    %1426 = vmatpush1.msra.mxu0 %v1391
    %1427 = vmatprep.subr.mxu0 %v1394
    %1428 = vmatpush1.msra.mxu0 %v1393
    %1429 = vmatprep.subr.mxu0 %v1396
    %1430 = vmatpush1.msra.mxu0 %v1395
    %1431 = vmatprep.subr.mxu0 %v1398
    %1432 = vmatpush1.msra.mxu0 %v1397
    %1433 = vmatprep.subr.mxu0 %v1411
    %1434 = vmatpush1.msra.mxu0 %v1408
    %1435 = vmatprep.subr.mxu0 0.0
    %1436 = vmatpush1.msra.mxu0 0.0
    %1437 = vmatprep.subr.mxu0 0.0
    %1438 = vmatpush1.msra.mxu0 0.0
    %1439 = vmatprep.subr.mxu0 0.0
    %1440 = vmatpush1.msra.mxu0 0.0
    %1441 = vmatprep.subr.mxu0 0.0
    %1442 = vmatpush1.msra.mxu0 0.0
    %1443 = vmatprep.subr.mxu0 0.0
    %1444 = vmatpush1.msra.mxu0 0.0
    %1445 = vmatprep.subr.mxu0 0.0
    %1446 = vmatpush1.msra.mxu0 0.0
    %1447 = vmatprep.subr.mxu0 0.0
    %1448 = vmatpush1.msra.mxu0 0.0
    %1449 = vmatprep.subr.mxu0 0.0
    %1450 = vmatpush1.msra.mxu0 0.0
    %1451 = vmatprep.subr.mxu0 0.0
    %1452 = vmatpush1.msra.mxu0 0.0
    %1453 = vmatprep.subr.mxu0 0.0
    %1454 = vmatpush1.msra.mxu0 0.0
    %1455 = vmatprep.subr.mxu0 0.0
    %1456 = vmatpush1.msra.mxu0 0.0
    %1457 = vmatprep.subr.mxu0 0.0
    %1458 = vmatpush1.msra.mxu0 0.0
    %1459 = vmatprep.subr.mxu0 0.0
    %1460 = vmatpush1.msra.mxu0 0.0
    %1461 = vmatprep.subr.mxu0 0.0
    %1462 = vmatpush1.msra.mxu0 0.0
    %1463 = vmatprep.subr.mxu0 0.0
    %1464 = vmatpush1.msra.mxu0 0.0
    %1465 = vmatprep.subr.mxu0 0.0
    %1466 = vmatpush1.msra.mxu0 0.0
    %1467 = vmatprep.subr.mxu0 0.0
    %1468 = vmatpush1.msra.mxu0 0.0
    %1469 = vmatprep.subr.mxu0 0.0
    %1470 = vmatpush1.msra.mxu0 0.0
    %1471 = vmatprep.subr.mxu0 0.0
    %1472 = vmatpush1.msra.mxu0 0.0
    %1473 = vmatprep.subr.mxu0 0.0
    %1474 = vmatpush1.msra.mxu0 0.0
    %1475 = vmatprep.subr.mxu0 0.0
    %1476 = vmatpush1.msra.mxu0 0.0
    %1477 = vmatprep.mubr.f32.mxu0 0.0
    %1478 = vmatmul.mubr.f32.gmra.mrb[0].mxu0 %v1402
    %v1479 = vpop.f32.mrb[0].mxu0
    %v1480 = vadd.f32 0.0, %v1479
    %v1481 = vpop.f32.mrb[0].mxu0
    %v1482 = vadd.f32 0.0, %v1481
    %1483 = vmatprep.mubr.f32.mxu0 0.0
    %1484 = vmatmul.mubr.f32.gmra.mrb[0].mxu0 %v1405
    %v1485 = vpop.f32.mrb[0].mxu0
    %v1486 = vadd.f32 0.0, %v1485
    %v1487 = vpop.f32.mrb[0].mxu0
    %v1488 = vadd.f32 0.0, %v1487
    %1489 = vdwg.mxu0
    %v1490 = vadd.f32 %v1372, %v1480
    %v1491 = vadd.f32 %v1373, %v1482
    %v1492 = vadd.f32 %v1374, %v1486
    %v1493 = vadd.f32 %v1375, %v1488
    %v1494 = vld [vmem:[%s6] sm:$0x3]
    %v1496 = vlaneseq
    %v1497 = vshrl.u32 %v1496, 7
    %v1498 = vsub.s32 0, %v1497
    %v1499 = vrot.slane %v1494, %v1498
    %v1500 = vlaneseq
    %v1501 = vshrl.u32 %v1500, 7
    %v1502 = vsub.s32 1, %v1501
    %v1503 = vrot.slane %v1494, %v1502
    %v1506 = vadd.f32 %v1490, %v1499
    %v1507 = vadd.f32 %v1491, %v1503
    %v1508 = vadd.f32 %v1492, %v1499
    %v1509 = vadd.f32 %v1493, %v1503
    %v1510 = vsub.f32 0.0, %v1506
    %v1511 = vsub.f32 0.0, %v1507
    %v1512 = vsub.f32 0.0, %v1508
    %v1513 = vsub.f32 0.0, %v1509
    %v1514 = vmul.f32 %v1510, 1.442695
    %v1515 = vpow.pop %v1514
    %v1516 = vmul.f32 %v1511, 1.442695
    %v1517 = vpow.pop %v1516
    %v1518 = vmul.f32 %v1512, 1.442695
    %v1519 = vpow.pop %v1518
    %v1520 = vmul.f32 %v1513, 1.442695
    %v1521 = vpow.pop %v1520
    %v1522 = vadd.f32 %v1515, 1.0
    %v1523 = vadd.f32 %v1517, 1.0
    %v1524 = vadd.f32 %v1519, 1.0
    %v1525 = vadd.f32 %v1521, 1.0
    %v1526 = vrcp.pop %v1522
    %v1527 = vmul.f32 1.0, %v1526
    %v1528 = vrcp.pop %v1523
    %v1529 = vmul.f32 1.0, %v1528
    %v1530 = vrcp.pop %v1524
    %v1531 = vmul.f32 1.0, %v1530
    %v1532 = vrcp.pop %v1525
    %v1533 = vmul.f32 1.0, %v1532
    %v1534 = vld [vmem:[%s7] sm:$0x1f]
    %vm1535 = vcmask 80896
    %v1537 = vsel %vm1535, %v1534, 0
    %vm1539 = vcmask 1041408
    %v1541 = vsel %vm1539, %v1531, 0
    %v1544 = vsel %vm1539, %v1533, 0
    %1546 = vmatprep.subr.mxu0 %v1529
    %1547 = vmatpush1.msra.mxu0 %v1527
    %1548 = vmatprep.subr.mxu0 %v1544
    %1549 = vmatpush1.msra.mxu0 %v1541
    %1550 = vmatprep.subr.mxu0 0.0
    %1551 = vmatpush1.msra.mxu0 0.0
    %1552 = vmatprep.subr.mxu0 0.0
    %1553 = vmatpush1.msra.mxu0 0.0
    %1554 = vmatprep.subr.mxu0 0.0
    %1555 = vmatpush1.msra.mxu0 0.0
    %1556 = vmatprep.subr.mxu0 0.0
    %1557 = vmatpush1.msra.mxu0 0.0
    %1558 = vmatprep.subr.mxu0 0.0
    %1559 = vmatpush1.msra.mxu0 0.0
    %1560 = vmatprep.subr.mxu0 0.0
    %1561 = vmatpush1.msra.mxu0 0.0
    %1562 = vmatprep.subr.mxu0 0.0
    %1563 = vmatpush1.msra.mxu0 0.0
    %1564 = vmatprep.subr.mxu0 0.0
    %1565 = vmatpush1.msra.mxu0 0.0
    %1566 = vmatprep.subr.mxu0 0.0
    %1567 = vmatpush1.msra.mxu0 0.0
    %1568 = vmatprep.subr.mxu0 0.0
    %1569 = vmatpush1.msra.mxu0 0.0
    %1570 = vmatprep.subr.mxu0 0.0
    %1571 = vmatpush1.msra.mxu0 0.0
    %1572 = vmatprep.subr.mxu0 0.0
    %1573 = vmatpush1.msra.mxu0 0.0
    %1574 = vmatprep.subr.mxu0 0.0
    %1575 = vmatpush1.msra.mxu0 0.0
    %1576 = vmatprep.subr.mxu0 0.0
    %1577 = vmatpush1.msra.mxu0 0.0
    %1578 = vmatprep.subr.mxu0 0.0
    %1579 = vmatpush1.msra.mxu0 0.0
    %1580 = vmatprep.subr.mxu0 0.0
    %1581 = vmatpush1.msra.mxu0 0.0
    %1582 = vmatprep.subr.mxu0 0.0
    %1583 = vmatpush1.msra.mxu0 0.0
    %1584 = vmatprep.subr.mxu0 0.0
    %1585 = vmatpush1.msra.mxu0 0.0
    %1586 = vmatprep.subr.mxu0 0.0
    %1587 = vmatpush1.msra.mxu0 0.0
    %1588 = vmatprep.subr.mxu0 0.0
    %1589 = vmatpush1.msra.mxu0 0.0
    %1590 = vmatprep.subr.mxu0 0.0
    %1591 = vmatpush1.msra.mxu0 0.0
    %1592 = vmatprep.subr.mxu0 0.0
    %1593 = vmatpush1.msra.mxu0 0.0
    %1594 = vmatprep.subr.mxu0 0.0
    %1595 = vmatpush1.msra.mxu0 0.0
    %1596 = vmatprep.subr.mxu0 0.0
    %1597 = vmatpush1.msra.mxu0 0.0
    %1598 = vmatprep.subr.mxu0 0.0
    %1599 = vmatpush1.msra.mxu0 0.0
    %1600 = vmatprep.subr.mxu0 0.0
    %1601 = vmatpush1.msra.mxu0 0.0
    %1602 = vmatprep.subr.mxu0 0.0
    %1603 = vmatpush1.msra.mxu0 0.0
    %1604 = vmatprep.subr.mxu0 0.0
    %1605 = vmatpush1.msra.mxu0 0.0
    %1606 = vmatprep.subr.mxu0 0.0
    %1607 = vmatpush1.msra.mxu0 0.0
    %1608 = vmatprep.subr.mxu0 0.0
    %1609 = vmatpush1.msra.mxu0 0.0
    %1610 = vmatprep.mubr.f32.mxu0 0.0
    %1611 = vmatmul.mubr.f32.gmra.mrb[0].mxu0 %v1537
    %v1612 = vpop.f32.mrb[0].mxu0
    %v1613 = vadd.f32 0.0, %v1612
    %v1614 = vpop.f32.mrb[0].mxu0
    %v1615 = vadd.f32 0.0, %v1614
    %1616 = vdwg.mxu0
    %v1617 = vld [vmem:[%s8] sm:$0xff]
    %v1618 = vld [vmem:[%s8 + $0x8] sm:$0xff]
    %v1619 = vld [vmem:[%s8 + $0x10] sm:$0xff]
    %v1620 = vld [vmem:[%s8 + $0x18] sm:$0xff]
    %v1621 = vld [vmem:[%s8 + $0x20] sm:$0xff]
    %v1622 = vld [vmem:[%s8 + $0x28] sm:$0xff]
    %v1623 = vld [vmem:[%s8 + $0x30] sm:$0xff]
    %v1624 = vld [vmem:[%s8 + $0x38] sm:$0xff]
    %v1625 = vld [vmem:[%s8 + $0x40] sm:$0xff]
    %v1626 = vld [vmem:[%s8 + $0x48] sm:$0xff]
    %v1627 = vld [vmem:[%s8 + $0x50] sm:$0xff]
    %v1628 = vld [vmem:[%s8 + $0x58] sm:$0xff]
    %v1629 = vld [vmem:[%s8 + $0x60] sm:$0xff]
    %v1630 = vld [vmem:[%s8 + $0x68] sm:$0xff]
    %v1631 = vld [vmem:[%s8 + $0x70] sm:$0xff]
    %v1632 = vld [vmem:[%s8 + $0x78] sm:$0xff]
    %v1633 = vld [vmem:[%s8 + $0x80] sm:$0xff]
    %v1634 = vld [vmem:[%s8 + $0x88] sm:$0xff]
    %v1635 = vld [vmem:[%s8 + $0x90] sm:$0xff]
    %v1636 = vld [vmem:[%s8 + $0x98] sm:$0xff]
    %v1638 = vsel %vm76, %v1615, 0
    %1640 = vmatprep.subr.mxu0 0.0
    %1641 = vmatpush1.msra.mxu0 %v1617
    %1642 = vmatprep.subr.mxu0 0.0
    %1643 = vmatpush1.msra.mxu0 %v1618
    %1644 = vmatprep.subr.mxu0 0.0
    %1645 = vmatpush1.msra.mxu0 %v1619
    %1646 = vmatprep.subr.mxu0 0.0
    %1647 = vmatpush1.msra.mxu0 %v1620
    %1648 = vmatprep.subr.mxu0 0.0
    %1649 = vmatpush1.msra.mxu0 %v1621
    %1650 = vmatprep.subr.mxu0 0.0
    %1651 = vmatpush1.msra.mxu0 %v1622
    %1652 = vmatprep.subr.mxu0 0.0
    %1653 = vmatpush1.msra.mxu0 %v1623
    %1654 = vmatprep.subr.mxu0 0.0
    %1655 = vmatpush1.msra.mxu0 %v1624
    %1656 = vmatprep.subr.mxu0 0.0
    %1657 = vmatpush1.msra.mxu0 %v1625
    %1658 = vmatprep.subr.mxu0 0.0
    %1659 = vmatpush1.msra.mxu0 %v1626
    %1660 = vmatprep.subr.mxu0 0.0
    %1661 = vmatpush1.msra.mxu0 %v1627
    %1662 = vmatprep.subr.mxu0 0.0
    %1663 = vmatpush1.msra.mxu0 %v1628
    %1664 = vmatprep.subr.mxu0 0.0
    %1665 = vmatpush1.msra.mxu0 %v1629
    %1666 = vmatprep.subr.mxu0 0.0
    %1667 = vmatpush1.msra.mxu0 %v1630
    %1668 = vmatprep.subr.mxu0 0.0
    %1669 = vmatpush1.msra.mxu0 %v1631
    %1670 = vmatprep.subr.mxu0 0.0
    %1671 = vmatpush1.msra.mxu0 %v1632
    %1672 = vmatprep.subr.mxu0 0.0
    %1673 = vmatpush1.msra.mxu0 %v1633
    %1674 = vmatprep.subr.mxu0 0.0
    %1675 = vmatpush1.msra.mxu0 %v1634
    %1676 = vmatprep.subr.mxu0 0.0
    %1677 = vmatpush1.msra.mxu0 %v1635
    %1678 = vmatprep.subr.mxu0 0.0
    %1679 = vmatpush1.msra.mxu0 %v1636
    %1680 = vmatprep.subr.mxu0 0.0
    %1681 = vmatpush1.msra.mxu0 0.0
    %1682 = vmatprep.subr.mxu0 0.0
    %1683 = vmatpush1.msra.mxu0 0.0
    %1684 = vmatprep.subr.mxu0 0.0
    %1685 = vmatpush1.msra.mxu0 0.0
    %1686 = vmatprep.subr.mxu0 0.0
    %1687 = vmatpush1.msra.mxu0 0.0
    %1688 = vmatprep.subr.mxu0 0.0
    %1689 = vmatpush1.msra.mxu0 0.0
    %1690 = vmatprep.subr.mxu0 0.0
    %1691 = vmatpush1.msra.mxu0 0.0
    %1692 = vmatprep.subr.mxu0 0.0
    %1693 = vmatpush1.msra.mxu0 0.0
    %1694 = vmatprep.subr.mxu0 0.0
    %1695 = vmatpush1.msra.mxu0 0.0
    %1696 = vmatprep.subr.mxu0 0.0
    %1697 = vmatpush1.msra.mxu0 0.0
    %1698 = vmatprep.subr.mxu0 0.0
    %1699 = vmatpush1.msra.mxu0 0.0
    %1700 = vmatprep.subr.mxu0 0.0
    %1701 = vmatpush1.msra.mxu0 0.0
    %1702 = vmatprep.subr.mxu0 0.0
    %1703 = vmatpush1.msra.mxu0 0.0
    %1704 = vmatprep.mubr.f32.mxu0 %v1638
    %1705 = vmatmul.mubr.f32.gmra.mrb[0].mxu0 %v1613
    %v1706 = vpop.f32.mrb[0].mxu0
    %v1707 = vadd.f32 0.0, %v1706
    %v1708 = vpop.f32.mrb[0].mxu0
    %1709 = vdwg.mxu0
    %vm1710 = vcmask 651264
    %1711 = vst.msk [vmem:[#allocation3] sm:$0x1f] %vm1710, %v1707
    %v1712 = vld [vmem:[#allocation3] sm:$0x1]
    %v1713 = vld [vmem:[%s9] sm:$0xff]
    %v1714 = vld [vmem:[%s9 + $0x8] sm:$0xff]
    %v1715 = vld [vmem:[%s9 + $0x10] sm:$0xff]
    %v1716 = vld [vmem:[%s9 + $0x18] sm:$0xff]
    %v1717 = vld [vmem:[%s9 + $0x20] sm:$0xff]
    %v1718 = vld [vmem:[%s9 + $0x28] sm:$0xff]
    %v1719 = vld [vmem:[%s9 + $0x30] sm:$0xff]
    %v1720 = vld [vmem:[%s9 + $0x38] sm:$0xff]
    %v1721 = vld [vmem:[%s9 + $0x40] sm:$0xff]
    %v1722 = vld [vmem:[%s9 + $0x48] sm:$0xff]
    %v1723 = vld [vmem:[#allocation3 + $0x1] sm:$0x1]
    %s1724 = scalar_lea.vmem %s9, 80
    %v1725 = vld [vmem:[%s1724] sm:$0xff]
    %v1726 = vld [vmem:[%s1724 + $0x8] sm:$0xff]
    %v1727 = vld [vmem:[%s1724 + $0x10] sm:$0xff]
    %v1728 = vld [vmem:[%s1724 + $0x18] sm:$0xff]
    %v1729 = vld [vmem:[%s1724 + $0x20] sm:$0xff]
    %v1730 = vld [vmem:[%s1724 + $0x28] sm:$0xff]
    %v1731 = vld [vmem:[%s1724 + $0x30] sm:$0xff]
    %v1732 = vld [vmem:[%s1724 + $0x38] sm:$0xff]
    %v1733 = vld [vmem:[%s1724 + $0x40] sm:$0xff]
    %v1734 = vld [vmem:[%s1724 + $0x48] sm:$0xff]
    %vm1735 = vcmask 654336
    %v1737 = vsel %vm1735, %v1723, 0
    %1739 = vmatprep.subr.mxu0 0.0
    %1740 = vmatpush1.msra.mxu0 %v1725
    %1741 = vmatprep.subr.mxu0 0.0
    %1742 = vmatpush1.msra.mxu0 %v1726
    %1743 = vmatprep.subr.mxu0 0.0
    %1744 = vmatpush1.msra.mxu0 %v1727
    %1745 = vmatprep.subr.mxu0 0.0
    %1746 = vmatpush1.msra.mxu0 %v1728
    %1747 = vmatprep.subr.mxu0 0.0
    %1748 = vmatpush1.msra.mxu0 %v1729
    %1749 = vmatprep.subr.mxu0 0.0
    %1750 = vmatpush1.msra.mxu0 %v1730
    %1751 = vmatprep.subr.mxu0 0.0
    %1752 = vmatpush1.msra.mxu0 %v1731
    %1753 = vmatprep.subr.mxu0 0.0
    %1754 = vmatpush1.msra.mxu0 %v1732
    %1755 = vmatprep.subr.mxu0 0.0
    %1756 = vmatpush1.msra.mxu0 %v1733
    %1757 = vmatprep.subr.mxu0 0.0
    %1758 = vmatpush1.msra.mxu0 %v1734
    %1759 = vmatprep.subr.mxu0 0.0
    %1760 = vmatpush1.msra.mxu0 0.0
    %1761 = vmatprep.subr.mxu0 0.0
    %1762 = vmatpush1.msra.mxu0 0.0
    %1763 = vmatprep.subr.mxu0 0.0
    %1764 = vmatpush1.msra.mxu0 0.0
    %1765 = vmatprep.subr.mxu0 0.0
    %1766 = vmatpush1.msra.mxu0 0.0
    %1767 = vmatprep.subr.mxu0 0.0
    %1768 = vmatpush1.msra.mxu0 0.0
    %1769 = vmatprep.subr.mxu0 0.0
    %1770 = vmatpush1.msra.mxu0 0.0
    %1771 = vmatprep.subr.mxu0 0.0
    %1772 = vmatpush1.msra.mxu0 0.0
    %1773 = vmatprep.subr.mxu0 0.0
    %1774 = vmatpush1.msra.mxu0 0.0
    %1775 = vmatprep.subr.mxu0 0.0
    %1776 = vmatpush1.msra.mxu0 0.0
    %1777 = vmatprep.subr.mxu0 0.0
    %1778 = vmatpush1.msra.mxu0 0.0
    %1779 = vmatprep.subr.mxu0 0.0
    %1780 = vmatpush1.msra.mxu0 0.0
    %1781 = vmatprep.subr.mxu0 0.0
    %1782 = vmatpush1.msra.mxu0 0.0
    %1783 = vmatprep.subr.mxu0 0.0
    %1784 = vmatpush1.msra.mxu0 0.0
    %1785 = vmatprep.subr.mxu0 0.0
    %1786 = vmatpush1.msra.mxu0 0.0
    %1787 = vmatprep.subr.mxu0 0.0
    %1788 = vmatpush1.msra.mxu0 0.0
    %1789 = vmatprep.subr.mxu0 0.0
    %1790 = vmatpush1.msra.mxu0 0.0
    %1791 = vmatprep.subr.mxu0 0.0
    %1792 = vmatpush1.msra.mxu0 0.0
    %1793 = vmatprep.subr.mxu0 0.0
    %1794 = vmatpush1.msra.mxu0 0.0
    %1795 = vmatprep.subr.mxu0 0.0
    %1796 = vmatpush1.msra.mxu0 0.0
    %1797 = vmatprep.subr.mxu0 0.0
    %1798 = vmatpush1.msra.mxu0 0.0
    %1799 = vmatprep.subr.mxu0 0.0
    %1800 = vmatpush1.msra.mxu0 0.0
    %1801 = vmatprep.subr.mxu0 0.0
    %1802 = vmatpush1.msra.mxu0 0.0
    %1803 = vmatprep.mubr.f32.mxu0 0.0
    %1804 = vmatmul.mubr.f32.gmra.mrb[0].mxu0 %v1737
    %v1805 = vpop.f32.mrb[0].mxu0
    %v1806 = vadd.f32 0.0, %v1805
    %v1807 = vpop.f32.mrb[0].mxu0
    %1808 = vdwg.mxu0
    %v1810 = vsel %vm1735, %v1712, 0
    %1812 = vmatprep.subr.mxu0 0.0
    %1813 = vmatpush1.msra.mxu0 %v1713
    %1814 = vmatprep.subr.mxu0 0.0
    %1815 = vmatpush1.msra.mxu0 %v1714
    %1816 = vmatprep.subr.mxu0 0.0
    %1817 = vmatpush1.msra.mxu0 %v1715
    %1818 = vmatprep.subr.mxu0 0.0
    %1819 = vmatpush1.msra.mxu0 %v1716
    %1820 = vmatprep.subr.mxu0 0.0
    %1821 = vmatpush1.msra.mxu0 %v1717
    %1822 = vmatprep.subr.mxu0 0.0
    %1823 = vmatpush1.msra.mxu0 %v1718
    %1824 = vmatprep.subr.mxu0 0.0
    %1825 = vmatpush1.msra.mxu0 %v1719
    %1826 = vmatprep.subr.mxu0 0.0
    %1827 = vmatpush1.msra.mxu0 %v1720
    %1828 = vmatprep.subr.mxu0 0.0
    %1829 = vmatpush1.msra.mxu0 %v1721
    %1830 = vmatprep.subr.mxu0 0.0
    %1831 = vmatpush1.msra.mxu0 %v1722
    %1832 = vmatprep.subr.mxu0 0.0
    %1833 = vmatpush1.msra.mxu0 0.0
    %1834 = vmatprep.subr.mxu0 0.0
    %1835 = vmatpush1.msra.mxu0 0.0
    %1836 = vmatprep.subr.mxu0 0.0
    %1837 = vmatpush1.msra.mxu0 0.0
    %1838 = vmatprep.subr.mxu0 0.0
    %1839 = vmatpush1.msra.mxu0 0.0
    %1840 = vmatprep.subr.mxu0 0.0
    %1841 = vmatpush1.msra.mxu0 0.0
    %1842 = vmatprep.subr.mxu0 0.0
    %1843 = vmatpush1.msra.mxu0 0.0
    %1844 = vmatprep.subr.mxu0 0.0
    %1845 = vmatpush1.msra.mxu0 0.0
    %1846 = vmatprep.subr.mxu0 0.0
    %1847 = vmatpush1.msra.mxu0 0.0
    %1848 = vmatprep.subr.mxu0 0.0
    %1849 = vmatpush1.msra.mxu0 0.0
    %1850 = vmatprep.subr.mxu0 0.0
    %1851 = vmatpush1.msra.mxu0 0.0
    %1852 = vmatprep.subr.mxu0 0.0
    %1853 = vmatpush1.msra.mxu0 0.0
    %1854 = vmatprep.subr.mxu0 0.0
    %1855 = vmatpush1.msra.mxu0 0.0
    %1856 = vmatprep.subr.mxu0 0.0
    %1857 = vmatpush1.msra.mxu0 0.0
    %1858 = vmatprep.subr.mxu0 0.0
    %1859 = vmatpush1.msra.mxu0 0.0
    %1860 = vmatprep.subr.mxu0 0.0
    %1861 = vmatpush1.msra.mxu0 0.0
    %1862 = vmatprep.subr.mxu0 0.0
    %1863 = vmatpush1.msra.mxu0 0.0
    %1864 = vmatprep.subr.mxu0 0.0
    %1865 = vmatpush1.msra.mxu0 0.0
    %1866 = vmatprep.subr.mxu0 0.0
    %1867 = vmatpush1.msra.mxu0 0.0
    %1868 = vmatprep.subr.mxu0 0.0
    %1869 = vmatpush1.msra.mxu0 0.0
    %1870 = vmatprep.subr.mxu0 0.0
    %1871 = vmatpush1.msra.mxu0 0.0
    %1872 = vmatprep.subr.mxu0 0.0
    %1873 = vmatpush1.msra.mxu0 0.0
    %1874 = vmatprep.subr.mxu0 0.0
    %1875 = vmatpush1.msra.mxu0 0.0
    %1876 = vmatprep.mubr.f32.mxu0 0.0
    %1877 = vmatmul.mubr.f32.gmra.mrb[0].mxu0 %v1810
    %v1878 = vpop.f32.mrb[0].mxu0
    %v1879 = vadd.f32 %v1806, %v1878
    %v1880 = vpop.f32.mrb[0].mxu0
    %1881 = vdwg.mxu0
    %v1882 = vld [vmem:[#allocation3 + $0x2] sm:$0x1]
    %s1883 = scalar_lea.vmem %s9, 160
    %v1884 = vld [vmem:[%s1883] sm:$0xff]
    %v1885 = vld [vmem:[%s1883 + $0x8] sm:$0xff]
    %v1886 = vld [vmem:[%s1883 + $0x10] sm:$0xff]
    %v1887 = vld [vmem:[%s1883 + $0x18] sm:$0xff]
    %v1888 = vld [vmem:[%s1883 + $0x20] sm:$0xff]
    %v1889 = vld [vmem:[%s1883 + $0x28] sm:$0xff]
    %v1890 = vld [vmem:[%s1883 + $0x30] sm:$0xff]
    %v1891 = vld [vmem:[%s1883 + $0x38] sm:$0xff]
    %v1892 = vld [vmem:[%s1883 + $0x40] sm:$0xff]
    %v1893 = vld [vmem:[%s1883 + $0x48] sm:$0xff]
    %v1895 = vsel %vm1735, %v1882, 0
    %1897 = vmatprep.subr.mxu0 0.0
    %1898 = vmatpush1.msra.mxu0 %v1884
    %1899 = vmatprep.subr.mxu0 0.0
    %1900 = vmatpush1.msra.mxu0 %v1885
    %1901 = vmatprep.subr.mxu0 0.0
    %1902 = vmatpush1.msra.mxu0 %v1886
    %1903 = vmatprep.subr.mxu0 0.0
    %1904 = vmatpush1.msra.mxu0 %v1887
    %1905 = vmatprep.subr.mxu0 0.0
    %1906 = vmatpush1.msra.mxu0 %v1888
    %1907 = vmatprep.subr.mxu0 0.0
    %1908 = vmatpush1.msra.mxu0 %v1889
    %1909 = vmatprep.subr.mxu0 0.0
    %1910 = vmatpush1.msra.mxu0 %v1890
    %1911 = vmatprep.subr.mxu0 0.0
    %1912 = vmatpush1.msra.mxu0 %v1891
    %1913 = vmatprep.subr.mxu0 0.0
    %1914 = vmatpush1.msra.mxu0 %v1892
    %1915 = vmatprep.subr.mxu0 0.0
    %1916 = vmatpush1.msra.mxu0 %v1893
    %1917 = vmatprep.subr.mxu0 0.0
    %1918 = vmatpush1.msra.mxu0 0.0
    %1919 = vmatprep.subr.mxu0 0.0
    %1920 = vmatpush1.msra.mxu0 0.0
    %1921 = vmatprep.subr.mxu0 0.0
    %1922 = vmatpush1.msra.mxu0 0.0
    %1923 = vmatprep.subr.mxu0 0.0
    %1924 = vmatpush1.msra.mxu0 0.0
    %1925 = vmatprep.subr.mxu0 0.0
    %1926 = vmatpush1.msra.mxu0 0.0
    %1927 = vmatprep.subr.mxu0 0.0
    %1928 = vmatpush1.msra.mxu0 0.0
    %1929 = vmatprep.subr.mxu0 0.0
    %1930 = vmatpush1.msra.mxu0 0.0
    %1931 = vmatprep.subr.mxu0 0.0
    %1932 = vmatpush1.msra.mxu0 0.0
    %1933 = vmatprep.subr.mxu0 0.0
    %1934 = vmatpush1.msra.mxu0 0.0
    %1935 = vmatprep.subr.mxu0 0.0
    %1936 = vmatpush1.msra.mxu0 0.0
    %1937 = vmatprep.subr.mxu0 0.0
    %1938 = vmatpush1.msra.mxu0 0.0
    %1939 = vmatprep.subr.mxu0 0.0
    %1940 = vmatpush1.msra.mxu0 0.0
    %1941 = vmatprep.subr.mxu0 0.0
    %1942 = vmatpush1.msra.mxu0 0.0
    %1943 = vmatprep.subr.mxu0 0.0
    %1944 = vmatpush1.msra.mxu0 0.0
    %1945 = vmatprep.subr.mxu0 0.0
    %1946 = vmatpush1.msra.mxu0 0.0
    %1947 = vmatprep.subr.mxu0 0.0
    %1948 = vmatpush1.msra.mxu0 0.0
    %1949 = vmatprep.subr.mxu0 0.0
    %1950 = vmatpush1.msra.mxu0 0.0
    %1951 = vmatprep.subr.mxu0 0.0
    %1952 = vmatpush1.msra.mxu0 0.0
    %1953 = vmatprep.subr.mxu0 0.0
    %1954 = vmatpush1.msra.mxu0 0.0
    %1955 = vmatprep.subr.mxu0 0.0
    %1956 = vmatpush1.msra.mxu0 0.0
    %1957 = vmatprep.subr.mxu0 0.0
    %1958 = vmatpush1.msra.mxu0 0.0
    %1959 = vmatprep.subr.mxu0 0.0
    %1960 = vmatpush1.msra.mxu0 0.0
    %1961 = vmatprep.mubr.f32.mxu0 0.0
    %1962 = vmatmul.mubr.f32.gmra.mrb[0].mxu0 %v1895
    %v1963 = vpop.f32.mrb[0].mxu0
    %v1964 = vadd.f32 0.0, %v1963
    %v1965 = vpop.f32.mrb[0].mxu0
    %1966 = vdwg.mxu0
    %v1967 = vadd.f32 %v1879, %v1964
    %v1968 = vld [vmem:[#allocation3 + $0x3] sm:$0x1]
    %s1969 = scalar_lea.vmem %s9, 240
    %v1970 = vld [vmem:[%s1969] sm:$0xff]
    %v1971 = vld [vmem:[%s1969 + $0x8] sm:$0xff]
    %v1972 = vld [vmem:[%s1969 + $0x10] sm:$0xff]
    %v1973 = vld [vmem:[%s1969 + $0x18] sm:$0xff]
    %v1974 = vld [vmem:[%s1969 + $0x20] sm:$0xff]
    %v1975 = vld [vmem:[%s1969 + $0x28] sm:$0xff]
    %v1976 = vld [vmem:[%s1969 + $0x30] sm:$0xff]
    %v1977 = vld [vmem:[%s1969 + $0x38] sm:$0xff]
    %v1978 = vld [vmem:[%s1969 + $0x40] sm:$0xff]
    %v1979 = vld [vmem:[%s1969 + $0x48] sm:$0xff]
    %v1981 = vsel %vm1735, %v1968, 0
    %1983 = vmatprep.subr.mxu0 0.0
    %1984 = vmatpush1.msra.mxu0 %v1970
    %1985 = vmatprep.subr.mxu0 0.0
    %1986 = vmatpush1.msra.mxu0 %v1971
    %1987 = vmatprep.subr.mxu0 0.0
    %1988 = vmatpush1.msra.mxu0 %v1972
    %1989 = vmatprep.subr.mxu0 0.0
    %1990 = vmatpush1.msra.mxu0 %v1973
    %1991 = vmatprep.subr.mxu0 0.0
    %1992 = vmatpush1.msra.mxu0 %v1974
    %1993 = vmatprep.subr.mxu0 0.0
    %1994 = vmatpush1.msra.mxu0 %v1975
    %1995 = vmatprep.subr.mxu0 0.0
    %1996 = vmatpush1.msra.mxu0 %v1976
    %1997 = vmatprep.subr.mxu0 0.0
    %1998 = vmatpush1.msra.mxu0 %v1977
    %1999 = vmatprep.subr.mxu0 0.0
    %2000 = vmatpush1.msra.mxu0 %v1978
    %2001 = vmatprep.subr.mxu0 0.0
    %2002 = vmatpush1.msra.mxu0 %v1979
    %2003 = vmatprep.subr.mxu0 0.0
    %2004 = vmatpush1.msra.mxu0 0.0
    %2005 = vmatprep.subr.mxu0 0.0
    %2006 = vmatpush1.msra.mxu0 0.0
    %2007 = vmatprep.subr.mxu0 0.0
    %2008 = vmatpush1.msra.mxu0 0.0
    %2009 = vmatprep.subr.mxu0 0.0
    %2010 = vmatpush1.msra.mxu0 0.0
    %2011 = vmatprep.subr.mxu0 0.0
    %2012 = vmatpush1.msra.mxu0 0.0
    %2013 = vmatprep.subr.mxu0 0.0
    %2014 = vmatpush1.msra.mxu0 0.0
    %2015 = vmatprep.subr.mxu0 0.0
    %2016 = vmatpush1.msra.mxu0 0.0
    %2017 = vmatprep.subr.mxu0 0.0
    %2018 = vmatpush1.msra.mxu0 0.0
    %2019 = vmatprep.subr.mxu0 0.0
    %2020 = vmatpush1.msra.mxu0 0.0
    %2021 = vmatprep.subr.mxu0 0.0
    %2022 = vmatpush1.msra.mxu0 0.0
    %2023 = vmatprep.subr.mxu0 0.0
    %2024 = vmatpush1.msra.mxu0 0.0
    %2025 = vmatprep.subr.mxu0 0.0
    %2026 = vmatpush1.msra.mxu0 0.0
    %2027 = vmatprep.subr.mxu0 0.0
    %2028 = vmatpush1.msra.mxu0 0.0
    %2029 = vmatprep.subr.mxu0 0.0
    %2030 = vmatpush1.msra.mxu0 0.0
    %2031 = vmatprep.subr.mxu0 0.0
    %2032 = vmatpush1.msra.mxu0 0.0
    %2033 = vmatprep.subr.mxu0 0.0
    %2034 = vmatpush1.msra.mxu0 0.0
    %2035 = vmatprep.subr.mxu0 0.0
    %2036 = vmatpush1.msra.mxu0 0.0
    %2037 = vmatprep.subr.mxu0 0.0
    %2038 = vmatpush1.msra.mxu0 0.0
    %2039 = vmatprep.subr.mxu0 0.0
    %2040 = vmatpush1.msra.mxu0 0.0
    %2041 = vmatprep.subr.mxu0 0.0
    %2042 = vmatpush1.msra.mxu0 0.0
    %2043 = vmatprep.subr.mxu0 0.0
    %2044 = vmatpush1.msra.mxu0 0.0
    %2045 = vmatprep.subr.mxu0 0.0
    %2046 = vmatpush1.msra.mxu0 0.0
    %2047 = vmatprep.mubr.f32.mxu0 0.0
    %2048 = vmatmul.mubr.f32.gmra.mrb[0].mxu0 %v1981
    %v2049 = vpop.f32.mrb[0].mxu0
    %v2050 = vadd.f32 0.0, %v2049
    %v2051 = vpop.f32.mrb[0].mxu0
    %2052 = vdwg.mxu0
    %v2053 = vadd.f32 %v1967, %v2050
    %v2054 = vld [vmem:[#allocation3 + $0x4] sm:$0x1]
    %s2055 = scalar_lea.vmem %s9, 320
    %v2056 = vld [vmem:[%s2055] sm:$0xff]
    %v2057 = vld [vmem:[%s2055 + $0x8] sm:$0xff]
    %v2058 = vld [vmem:[%s2055 + $0x10] sm:$0xff]
    %v2059 = vld [vmem:[%s2055 + $0x18] sm:$0xff]
    %v2060 = vld [vmem:[%s2055 + $0x20] sm:$0xff]
    %v2061 = vld [vmem:[%s2055 + $0x28] sm:$0xff]
    %v2062 = vld [vmem:[%s2055 + $0x30] sm:$0xff]
    %v2063 = vld [vmem:[%s2055 + $0x38] sm:$0xff]
    %v2064 = vld [vmem:[%s2055 + $0x40] sm:$0xff]
    %v2065 = vld [vmem:[%s2055 + $0x48] sm:$0xff]
    %v2067 = vsel %vm1735, %v2054, 0
    %2069 = vmatprep.subr.mxu0 0.0
    %2070 = vmatpush1.msra.mxu0 %v2056
    %2071 = vmatprep.subr.mxu0 0.0
    %2072 = vmatpush1.msra.mxu0 %v2057
    %2073 = vmatprep.subr.mxu0 0.0
    %2074 = vmatpush1.msra.mxu0 %v2058
    %2075 = vmatprep.subr.mxu0 0.0
    %2076 = vmatpush1.msra.mxu0 %v2059
    %2077 = vmatprep.subr.mxu0 0.0
    %2078 = vmatpush1.msra.mxu0 %v2060
    %2079 = vmatprep.subr.mxu0 0.0
    %2080 = vmatpush1.msra.mxu0 %v2061
    %2081 = vmatprep.subr.mxu0 0.0
    %2082 = vmatpush1.msra.mxu0 %v2062
    %2083 = vmatprep.subr.mxu0 0.0
    %2084 = vmatpush1.msra.mxu0 %v2063
    %2085 = vmatprep.subr.mxu0 0.0
    %2086 = vmatpush1.msra.mxu0 %v2064
    %2087 = vmatprep.subr.mxu0 0.0
    %2088 = vmatpush1.msra.mxu0 %v2065
    %2089 = vmatprep.subr.mxu0 0.0
    %2090 = vmatpush1.msra.mxu0 0.0
    %2091 = vmatprep.subr.mxu0 0.0
    %2092 = vmatpush1.msra.mxu0 0.0
    %2093 = vmatprep.subr.mxu0 0.0
    %2094 = vmatpush1.msra.mxu0 0.0
    %2095 = vmatprep.subr.mxu0 0.0
    %2096 = vmatpush1.msra.mxu0 0.0
    %2097 = vmatprep.subr.mxu0 0.0
    %2098 = vmatpush1.msra.mxu0 0.0
    %2099 = vmatprep.subr.mxu0 0.0
    %2100 = vmatpush1.msra.mxu0 0.0
    %2101 = vmatprep.subr.mxu0 0.0
    %2102 = vmatpush1.msra.mxu0 0.0
    %2103 = vmatprep.subr.mxu0 0.0
    %2104 = vmatpush1.msra.mxu0 0.0
    %2105 = vmatprep.subr.mxu0 0.0
    %2106 = vmatpush1.msra.mxu0 0.0
    %2107 = vmatprep.subr.mxu0 0.0
    %2108 = vmatpush1.msra.mxu0 0.0
    %2109 = vmatprep.subr.mxu0 0.0
    %2110 = vmatpush1.msra.mxu0 0.0
    %2111 = vmatprep.subr.mxu0 0.0
    %2112 = vmatpush1.msra.mxu0 0.0
    %2113 = vmatprep.subr.mxu0 0.0
    %2114 = vmatpush1.msra.mxu0 0.0
    %2115 = vmatprep.subr.mxu0 0.0
    %2116 = vmatpush1.msra.mxu0 0.0
    %2117 = vmatprep.subr.mxu0 0.0
    %2118 = vmatpush1.msra.mxu0 0.0
    %2119 = vmatprep.subr.mxu0 0.0
    %2120 = vmatpush1.msra.mxu0 0.0
    %2121 = vmatprep.subr.mxu0 0.0
    %2122 = vmatpush1.msra.mxu0 0.0
    %2123 = vmatprep.subr.mxu0 0.0
    %2124 = vmatpush1.msra.mxu0 0.0
    %2125 = vmatprep.subr.mxu0 0.0
    %2126 = vmatpush1.msra.mxu0 0.0
    %2127 = vmatprep.subr.mxu0 0.0
    %2128 = vmatpush1.msra.mxu0 0.0
    %2129 = vmatprep.subr.mxu0 0.0
    %2130 = vmatpush1.msra.mxu0 0.0
    %2131 = vmatprep.subr.mxu0 0.0
    %2132 = vmatpush1.msra.mxu0 0.0
    %2133 = vmatprep.mubr.f32.mxu0 0.0
    %2134 = vmatmul.mubr.f32.gmra.mrb[0].mxu0 %v2067
    %v2135 = vpop.f32.mrb[0].mxu0
    %v2136 = vadd.f32 0.0, %v2135
    %v2137 = vpop.f32.mrb[0].mxu0
    %2138 = vdwg.mxu0
    %v2139 = vadd.f32 %v2053, %v2136
    %v2140 = vld [vmem:[%s10] sm:$0x1]
    %v2141 = vadd.f32 %v2139, %v2140
    %v2142 = vsub.f32 0.0, %v2141
    %v2143 = vmul.f32 %v2142, 1.442695
    %v2144 = vpow.pop %v2143
    %v2145 = vadd.f32 %v2144, 1.0
    %v2146 = vrcp.pop %v2145
    %v2147 = vmul.f32 1.0, %v2146
    %v2148 = vld [vmem:[%s11] sm:$0xff]
    %v2149 = vld [vmem:[%s11 + $0x8] sm:$0xff]
    %v2150 = vld [vmem:[%s11 + $0x10] sm:$0xff]
    %v2151 = vld [vmem:[%s11 + $0x18] sm:$0xff]
    %v2152 = vld [vmem:[%s11 + $0x20] sm:$0xff]
    %v2153 = vld [vmem:[%s11 + $0x28] sm:$0xff]
    %v2154 = vld [vmem:[%s11 + $0x30] sm:$0xff]
    %v2155 = vld [vmem:[%s11 + $0x38] sm:$0xff]
    %v2156 = vld [vmem:[%s11 + $0x40] sm:$0xff]
    %v2157 = vld [vmem:[%s11 + $0x48] sm:$0xff]
    %v2158 = vld [vmem:[%s11 + $0x50] sm:$0xff]
    %v2159 = vld [vmem:[%s11 + $0x58] sm:$0xff]
    %v2160 = vld [vmem:[%s11 + $0x60] sm:$0xff]
    %v2161 = vld [vmem:[%s11 + $0x68] sm:$0xff]
    %v2162 = vld [vmem:[%s11 + $0x70] sm:$0xff]
    %v2163 = vld [vmem:[%s12] sm:$0x1]
    %vm2164 = vcmask 982016
    %v2166 = vsel %vm2164, %v2147, 0
    %2168 = vmatprep.subr.mxu0 0.0
    %2169 = vmatpush1.msra.mxu0 %v2148
    %2170 = vmatprep.subr.mxu0 0.0
    %2171 = vmatpush1.msra.mxu0 %v2149
    %2172 = vmatprep.subr.mxu0 0.0
    %2173 = vmatpush1.msra.mxu0 %v2150
    %2174 = vmatprep.subr.mxu0 0.0
    %2175 = vmatpush1.msra.mxu0 %v2151
    %2176 = vmatprep.subr.mxu0 0.0
    %2177 = vmatpush1.msra.mxu0 %v2152
    %2178 = vmatprep.subr.mxu0 0.0
    %2179 = vmatpush1.msra.mxu0 %v2153
    %2180 = vmatprep.subr.mxu0 0.0
    %2181 = vmatpush1.msra.mxu0 %v2154
    %2182 = vmatprep.subr.mxu0 0.0
    %2183 = vmatpush1.msra.mxu0 %v2155
    %2184 = vmatprep.subr.mxu0 0.0
    %2185 = vmatpush1.msra.mxu0 %v2156
    %2186 = vmatprep.subr.mxu0 0.0
    %2187 = vmatpush1.msra.mxu0 %v2157
    %2188 = vmatprep.subr.mxu0 0.0
    %2189 = vmatpush1.msra.mxu0 %v2158
    %2190 = vmatprep.subr.mxu0 0.0
    %2191 = vmatpush1.msra.mxu0 %v2159
    %2192 = vmatprep.subr.mxu0 0.0
    %2193 = vmatpush1.msra.mxu0 %v2160
    %2194 = vmatprep.subr.mxu0 0.0
    %2195 = vmatpush1.msra.mxu0 %v2161
    %2196 = vmatprep.subr.mxu0 0.0
    %2197 = vmatpush1.msra.mxu0 %v2162
    %2198 = vmatprep.subr.mxu0 0.0
    %2199 = vmatpush1.msra.mxu0 0.0
    %2200 = vmatprep.subr.mxu0 0.0
    %2201 = vmatpush1.msra.mxu0 0.0
    %2202 = vmatprep.subr.mxu0 0.0
    %2203 = vmatpush1.msra.mxu0 0.0
    %2204 = vmatprep.subr.mxu0 0.0
    %2205 = vmatpush1.msra.mxu0 0.0
    %2206 = vmatprep.subr.mxu0 0.0
    %2207 = vmatpush1.msra.mxu0 0.0
    %2208 = vmatprep.subr.mxu0 0.0
    %2209 = vmatpush1.msra.mxu0 0.0
    %2210 = vmatprep.subr.mxu0 0.0
    %2211 = vmatpush1.msra.mxu0 0.0
    %2212 = vmatprep.subr.mxu0 0.0
    %2213 = vmatpush1.msra.mxu0 0.0
    %2214 = vmatprep.subr.mxu0 0.0
    %2215 = vmatpush1.msra.mxu0 0.0
    %2216 = vmatprep.subr.mxu0 0.0
    %2217 = vmatpush1.msra.mxu0 0.0
    %2218 = vmatprep.subr.mxu0 0.0
    %2219 = vmatpush1.msra.mxu0 0.0
    %2220 = vmatprep.subr.mxu0 0.0
    %2221 = vmatpush1.msra.mxu0 0.0
    %2222 = vmatprep.subr.mxu0 0.0
    %2223 = vmatpush1.msra.mxu0 0.0
    %2224 = vmatprep.subr.mxu0 0.0
    %2225 = vmatpush1.msra.mxu0 0.0
    %2226 = vmatprep.subr.mxu0 0.0
    %2227 = vmatpush1.msra.mxu0 0.0
    %2228 = vmatprep.subr.mxu0 0.0
    %2229 = vmatpush1.msra.mxu0 0.0
    %2230 = vmatprep.subr.mxu0 0.0
    %2231 = vmatpush1.msra.mxu0 0.0
    %2232 = vmatprep.mubr.f32.mxu0 0.0
    %2233 = vmatmul.mubr.f32.gmra.mrb[0].mxu0 %v2166
    %v2234 = vpop.f32.mrb[0].mxu0
    %v2235 = vadd.f32 %v2163, %v2234
    %v2236 = vpop.f32.mrb[0].mxu0
    %2237 = vdwg.mxu0
    %v2238 = vsub.f32 0.0, %v2235
    %v2239 = vmul.f32 %v2238, 1.442695
    %v2240 = vpow.pop %v2239
    %v2241 = vadd.f32 %v2240, 1.0
    %v2242 = vrcp.pop %v2241
    %v2243 = vmul.f32 1.0, %v2242
    %v2244 = vld [vmem:[%s13] sm:$0xff]
    %v2245 = vld [vmem:[%s13 + $0x8] sm:$0xff]
    %v2246 = vld [vmem:[%s13 + $0x10] sm:$0xff]
    %v2247 = vld [vmem:[%s13 + $0x18] sm:$0xff]
    %v2248 = vld [vmem:[%s13 + $0x20] sm:$0xff]
    %v2249 = vld [vmem:[%s13 + $0x28] sm:$0xff]
    %v2250 = vld [vmem:[%s13 + $0x30] sm:$0xff]
    %v2251 = vld [vmem:[%s13 + $0x38] sm:$0xff]
    %v2252 = vld [vmem:[%s13 + $0x40] sm:$0xff]
    %v2253 = vld [vmem:[%s13 + $0x48] sm:$0xff]
    %v2254 = vld [vmem:[%s13 + $0x50] sm:$0xf]
    %v2255 = vld [vmem:[%s14] sm:$0x1]
    %v2257 = vsel %vm909, %v2243, 0
    %v2260 = vsel %vm722, %v2254, 0
    %2262 = vmatprep.subr.mxu0 0.0
    %2263 = vmatpush1.msra.mxu0 %v2244
    %2264 = vmatprep.subr.mxu0 0.0
    %2265 = vmatpush1.msra.mxu0 %v2245
    %2266 = vmatprep.subr.mxu0 0.0
    %2267 = vmatpush1.msra.mxu0 %v2246
    %2268 = vmatprep.subr.mxu0 0.0
    %2269 = vmatpush1.msra.mxu0 %v2247
    %2270 = vmatprep.subr.mxu0 0.0
    %2271 = vmatpush1.msra.mxu0 %v2248
    %2272 = vmatprep.subr.mxu0 0.0
    %2273 = vmatpush1.msra.mxu0 %v2249
    %2274 = vmatprep.subr.mxu0 0.0
    %2275 = vmatpush1.msra.mxu0 %v2250
    %2276 = vmatprep.subr.mxu0 0.0
    %2277 = vmatpush1.msra.mxu0 %v2251
    %2278 = vmatprep.subr.mxu0 0.0
    %2279 = vmatpush1.msra.mxu0 %v2252
    %2280 = vmatprep.subr.mxu0 0.0
    %2281 = vmatpush1.msra.mxu0 %v2253
    %2282 = vmatprep.subr.mxu0 0.0
    %2283 = vmatpush1.msra.mxu0 %v2260
    %2284 = vmatprep.subr.mxu0 0.0
    %2285 = vmatpush1.msra.mxu0 0.0
    %2286 = vmatprep.subr.mxu0 0.0
    %2287 = vmatpush1.msra.mxu0 0.0
    %2288 = vmatprep.subr.mxu0 0.0
    %2289 = vmatpush1.msra.mxu0 0.0
    %2290 = vmatprep.subr.mxu0 0.0
    %2291 = vmatpush1.msra.mxu0 0.0
    %2292 = vmatprep.subr.mxu0 0.0
    %2293 = vmatpush1.msra.mxu0 0.0
    %2294 = vmatprep.subr.mxu0 0.0
    %2295 = vmatpush1.msra.mxu0 0.0
    %2296 = vmatprep.subr.mxu0 0.0
    %2297 = vmatpush1.msra.mxu0 0.0
    %2298 = vmatprep.subr.mxu0 0.0
    %2299 = vmatpush1.msra.mxu0 0.0
    %2300 = vmatprep.subr.mxu0 0.0
    %2301 = vmatpush1.msra.mxu0 0.0
    %2302 = vmatprep.subr.mxu0 0.0
    %2303 = vmatpush1.msra.mxu0 0.0
    %2304 = vmatprep.subr.mxu0 0.0
    %2305 = vmatpush1.msra.mxu0 0.0
    %2306 = vmatprep.subr.mxu0 0.0
    %2307 = vmatpush1.msra.mxu0 0.0
    %2308 = vmatprep.subr.mxu0 0.0
    %2309 = vmatpush1.msra.mxu0 0.0
    %2310 = vmatprep.subr.mxu0 0.0
    %2311 = vmatpush1.msra.mxu0 0.0
    %2312 = vmatprep.subr.mxu0 0.0
    %2313 = vmatpush1.msra.mxu0 0.0
    %2314 = vmatprep.subr.mxu0 0.0
    %2315 = vmatpush1.msra.mxu0 0.0
    %2316 = vmatprep.subr.mxu0 0.0
    %2317 = vmatpush1.msra.mxu0 0.0
    %2318 = vmatprep.subr.mxu0 0.0
    %2319 = vmatpush1.msra.mxu0 0.0
    %2320 = vmatprep.subr.mxu0 0.0
    %2321 = vmatpush1.msra.mxu0 0.0
    %2322 = vmatprep.subr.mxu0 0.0
    %2323 = vmatpush1.msra.mxu0 0.0
    %2324 = vmatprep.subr.mxu0 0.0
    %2325 = vmatpush1.msra.mxu0 0.0
    %2326 = vmatprep.mubr.f32.mxu0 0.0
    %2327 = vmatmul.mubr.f32.gmra.mrb[0].mxu0 %v2257
    %v2328 = vpop.f32.mrb[0].mxu0
    %v2329 = vadd.f32 %v2255, %v2328
    %v2330 = vpop.f32.mrb[0].mxu0
    %2331 = vdwg.mxu0
    %vm2332 = vcmask 73728
    %2333 = vst.msk [vmem:[#allocation4] sm:$0x1] %vm2332, %v2329
    %s2334 = scalar_lea.vmem %s0, 32
    %v2335 = vld [vmem:[%s2334] sm:$0xff]
    %v2336 = vld [vmem:[%s2334 + $0x8] sm:$0xff]
    %v2337 = vld [vmem:[%s2334 + $0x10] sm:$0xff]
    %v2338 = vld [vmem:[%s2334 + $0x18] sm:$0xf]
    %v2339 = vld [vmem:[%s1] sm:$0xff]
    %v2340 = vld [vmem:[%s1 + $0x8] sm:$0xff]
    %v2341 = vld [vmem:[%s1 + $0x10] sm:$0xff]
    %v2342 = vld [vmem:[%s1 + $0x18] sm:$0xff]
    %v2343 = vld [vmem:[%s1 + $0x20] sm:$0xff]
    %v2344 = vld [vmem:[%s1 + $0x28] sm:$0xff]
    %v2345 = vld [vmem:[%s1 + $0x30] sm:$0xff]
    %v2346 = vld [vmem:[%s1 + $0x38] sm:$0xff]
    %v2347 = vld [vmem:[%s2334 + $0x1] sm:$0xff]
    %v2348 = vld [vmem:[%s2334 + $0x9] sm:$0xff]
    %v2349 = vld [vmem:[%s2334 + $0x11] sm:$0xff]
    %v2350 = vld [vmem:[%s2334 + $0x19] sm:$0xf]
    %v2351 = vld [vmem:[%s67] sm:$0xff]
    %v2352 = vld [vmem:[%s67 + $0x8] sm:$0xff]
    %v2353 = vld [vmem:[%s67 + $0x10] sm:$0xff]
    %v2354 = vld [vmem:[%s67 + $0x18] sm:$0xff]
    %v2355 = vld [vmem:[%s67 + $0x20] sm:$0xff]
    %v2356 = vld [vmem:[%s67 + $0x28] sm:$0xff]
    %v2357 = vld [vmem:[%s67 + $0x30] sm:$0xff]
    %v2358 = vld [vmem:[%s67 + $0x38] sm:$0xff]
    %v2360 = vsel %vm76, %v2347, 0
    %v2363 = vsel %vm76, %v2348, 0
    %v2366 = vsel %vm76, %v2349, 0
    %v2369 = vsel %vm76, %v2350, 0
    %2371 = vmatprep.subr.mxu0 %v2352
    %2372 = vmatpush1.msra.mxu0 %v2351
    %2373 = vmatprep.subr.mxu0 %v2354
    %2374 = vmatpush1.msra.mxu0 %v2353
    %2375 = vmatprep.subr.mxu0 %v2356
    %2376 = vmatpush1.msra.mxu0 %v2355
    %2377 = vmatprep.subr.mxu0 %v2358
    %2378 = vmatpush1.msra.mxu0 %v2357
    %2379 = vmatprep.subr.mxu0 0.0
    %2380 = vmatpush1.msra.mxu0 0.0
    %2381 = vmatprep.subr.mxu0 0.0
    %2382 = vmatpush1.msra.mxu0 0.0
    %2383 = vmatprep.subr.mxu0 0.0
    %2384 = vmatpush1.msra.mxu0 0.0
    %2385 = vmatprep.subr.mxu0 0.0
    %2386 = vmatpush1.msra.mxu0 0.0
    %2387 = vmatprep.subr.mxu0 0.0
    %2388 = vmatpush1.msra.mxu0 0.0
    %2389 = vmatprep.subr.mxu0 0.0
    %2390 = vmatpush1.msra.mxu0 0.0
    %2391 = vmatprep.subr.mxu0 0.0
    %2392 = vmatpush1.msra.mxu0 0.0
    %2393 = vmatprep.subr.mxu0 0.0
    %2394 = vmatpush1.msra.mxu0 0.0
    %2395 = vmatprep.subr.mxu0 0.0
    %2396 = vmatpush1.msra.mxu0 0.0
    %2397 = vmatprep.subr.mxu0 0.0
    %2398 = vmatpush1.msra.mxu0 0.0
    %2399 = vmatprep.subr.mxu0 0.0
    %2400 = vmatpush1.msra.mxu0 0.0
    %2401 = vmatprep.subr.mxu0 0.0
    %2402 = vmatpush1.msra.mxu0 0.0
    %2403 = vmatprep.subr.mxu0 0.0
    %2404 = vmatpush1.msra.mxu0 0.0
    %2405 = vmatprep.subr.mxu0 0.0
    %2406 = vmatpush1.msra.mxu0 0.0
    %2407 = vmatprep.subr.mxu0 0.0
    %2408 = vmatpush1.msra.mxu0 0.0
    %2409 = vmatprep.subr.mxu0 0.0
    %2410 = vmatpush1.msra.mxu0 0.0
    %2411 = vmatprep.subr.mxu0 0.0
    %2412 = vmatpush1.msra.mxu0 0.0
    %2413 = vmatprep.subr.mxu0 0.0
    %2414 = vmatpush1.msra.mxu0 0.0
    %2415 = vmatprep.subr.mxu0 0.0
    %2416 = vmatpush1.msra.mxu0 0.0
    %2417 = vmatprep.subr.mxu0 0.0
    %2418 = vmatpush1.msra.mxu0 0.0
    %2419 = vmatprep.subr.mxu0 0.0
    %2420 = vmatpush1.msra.mxu0 0.0
    %2421 = vmatprep.subr.mxu0 0.0
    %2422 = vmatpush1.msra.mxu0 0.0
    %2423 = vmatprep.subr.mxu0 0.0
    %2424 = vmatpush1.msra.mxu0 0.0
    %2425 = vmatprep.subr.mxu0 0.0
    %2426 = vmatpush1.msra.mxu0 0.0
    %2427 = vmatprep.subr.mxu0 0.0
    %2428 = vmatpush1.msra.mxu0 0.0
    %2429 = vmatprep.subr.mxu0 0.0
    %2430 = vmatpush1.msra.mxu0 0.0
    %2431 = vmatprep.subr.mxu0 0.0
    %2432 = vmatpush1.msra.mxu0 0.0
    %2433 = vmatprep.subr.mxu0 0.0
    %2434 = vmatpush1.msra.mxu0 0.0
    %2435 = vmatprep.mubr.f32.mxu0 0.0
    %2436 = vmatmul.mubr.f32.gmra.mrb[0].mxu0 %v2360
    %v2437 = vpop.f32.mrb[0].mxu0
    %v2438 = vadd.f32 0.0, %v2437
    %v2439 = vpop.f32.mrb[0].mxu0
    %v2440 = vadd.f32 0.0, %v2439
    %2441 = vmatprep.mubr.f32.mxu0 0.0
    %2442 = vmatmul.mubr.f32.gmra.mrb[0].mxu0 %v2363
    %v2443 = vpop.f32.mrb[0].mxu0
    %v2444 = vadd.f32 0.0, %v2443
    %v2445 = vpop.f32.mrb[0].mxu0
    %v2446 = vadd.f32 0.0, %v2445
    %2447 = vmatprep.mubr.f32.mxu0 0.0
    %2448 = vmatmul.mubr.f32.gmra.mrb[0].mxu0 %v2366
    %v2449 = vpop.f32.mrb[0].mxu0
    %v2450 = vadd.f32 0.0, %v2449
    %v2451 = vpop.f32.mrb[0].mxu0
    %v2452 = vadd.f32 0.0, %v2451
    %2453 = vmatprep.mubr.f32.mxu0 0.0
    %2454 = vmatmul.mubr.f32.gmra.mrb[0].mxu0 %v2369
    %v2455 = vpop.f32.mrb[0].mxu0
    %v2456 = vadd.f32 0.0, %v2455
    %v2457 = vpop.f32.mrb[0].mxu0
    %v2458 = vadd.f32 0.0, %v2457
    %2459 = vdwg.mxu0
    %v2461 = vsel %vm76, %v2335, 0
    %v2464 = vsel %vm76, %v2336, 0
    %v2467 = vsel %vm76, %v2337, 0
    %v2470 = vsel %vm76, %v2338, 0
    %2472 = vmatprep.subr.mxu0 %v2340
    %2473 = vmatpush1.msra.mxu0 %v2339
    %2474 = vmatprep.subr.mxu0 %v2342
    %2475 = vmatpush1.msra.mxu0 %v2341
    %2476 = vmatprep.subr.mxu0 %v2344
    %2477 = vmatpush1.msra.mxu0 %v2343
    %2478 = vmatprep.subr.mxu0 %v2346
    %2479 = vmatpush1.msra.mxu0 %v2345
    %2480 = vmatprep.subr.mxu0 0.0
    %2481 = vmatpush1.msra.mxu0 0.0
    %2482 = vmatprep.subr.mxu0 0.0
    %2483 = vmatpush1.msra.mxu0 0.0
    %2484 = vmatprep.subr.mxu0 0.0
    %2485 = vmatpush1.msra.mxu0 0.0
    %2486 = vmatprep.subr.mxu0 0.0
    %2487 = vmatpush1.msra.mxu0 0.0
    %2488 = vmatprep.subr.mxu0 0.0
    %2489 = vmatpush1.msra.mxu0 0.0
    %2490 = vmatprep.subr.mxu0 0.0
    %2491 = vmatpush1.msra.mxu0 0.0
    %2492 = vmatprep.subr.mxu0 0.0
    %2493 = vmatpush1.msra.mxu0 0.0
    %2494 = vmatprep.subr.mxu0 0.0
    %2495 = vmatpush1.msra.mxu0 0.0
    %2496 = vmatprep.subr.mxu0 0.0
    %2497 = vmatpush1.msra.mxu0 0.0
    %2498 = vmatprep.subr.mxu0 0.0
    %2499 = vmatpush1.msra.mxu0 0.0
    %2500 = vmatprep.subr.mxu0 0.0
    %2501 = vmatpush1.msra.mxu0 0.0
    %2502 = vmatprep.subr.mxu0 0.0
    %2503 = vmatpush1.msra.mxu0 0.0
    %2504 = vmatprep.subr.mxu0 0.0
    %2505 = vmatpush1.msra.mxu0 0.0
    %2506 = vmatprep.subr.mxu0 0.0
    %2507 = vmatpush1.msra.mxu0 0.0
    %2508 = vmatprep.subr.mxu0 0.0
    %2509 = vmatpush1.msra.mxu0 0.0
    %2510 = vmatprep.subr.mxu0 0.0
    %2511 = vmatpush1.msra.mxu0 0.0
    %2512 = vmatprep.subr.mxu0 0.0
    %2513 = vmatpush1.msra.mxu0 0.0
    %2514 = vmatprep.subr.mxu0 0.0
    %2515 = vmatpush1.msra.mxu0 0.0
    %2516 = vmatprep.subr.mxu0 0.0
    %2517 = vmatpush1.msra.mxu0 0.0
    %2518 = vmatprep.subr.mxu0 0.0
    %2519 = vmatpush1.msra.mxu0 0.0
    %2520 = vmatprep.subr.mxu0 0.0
    %2521 = vmatpush1.msra.mxu0 0.0
    %2522 = vmatprep.subr.mxu0 0.0
    %2523 = vmatpush1.msra.mxu0 0.0
    %2524 = vmatprep.subr.mxu0 0.0
    %2525 = vmatpush1.msra.mxu0 0.0
    %2526 = vmatprep.subr.mxu0 0.0
    %2527 = vmatpush1.msra.mxu0 0.0
    %2528 = vmatprep.subr.mxu0 0.0
    %2529 = vmatpush1.msra.mxu0 0.0
    %2530 = vmatprep.subr.mxu0 0.0
    %2531 = vmatpush1.msra.mxu0 0.0
    %2532 = vmatprep.subr.mxu0 0.0
    %2533 = vmatpush1.msra.mxu0 0.0
    %2534 = vmatprep.subr.mxu0 0.0
    %2535 = vmatpush1.msra.mxu0 0.0
    %2536 = vmatprep.mubr.f32.mxu0 0.0
    %2537 = vmatmul.mubr.f32.gmra.mrb[0].mxu0 %v2461
    %v2538 = vpop.f32.mrb[0].mxu0
    %v2539 = vadd.f32 %v2438, %v2538
    %v2540 = vpop.f32.mrb[0].mxu0
    %v2541 = vadd.f32 %v2440, %v2540
    %2542 = vmatprep.mubr.f32.mxu0 0.0
    %2543 = vmatmul.mubr.f32.gmra.mrb[0].mxu0 %v2464
    %v2544 = vpop.f32.mrb[0].mxu0
    %v2545 = vadd.f32 %v2444, %v2544
    %v2546 = vpop.f32.mrb[0].mxu0
    %v2547 = vadd.f32 %v2446, %v2546
    %2548 = vmatprep.mubr.f32.mxu0 0.0
    %2549 = vmatmul.mubr.f32.gmra.mrb[0].mxu0 %v2467
    %v2550 = vpop.f32.mrb[0].mxu0
    %v2551 = vadd.f32 %v2450, %v2550
    %v2552 = vpop.f32.mrb[0].mxu0
    %v2553 = vadd.f32 %v2452, %v2552
    %2554 = vmatprep.mubr.f32.mxu0 0.0
    %2555 = vmatmul.mubr.f32.gmra.mrb[0].mxu0 %v2470
    %v2556 = vpop.f32.mrb[0].mxu0
    %v2557 = vadd.f32 %v2456, %v2556
    %v2558 = vpop.f32.mrb[0].mxu0
    %v2559 = vadd.f32 %v2458, %v2558
    %2560 = vdwg.mxu0
    %v2561 = vld [vmem:[%s2334 + $0x2] sm:$0xff]
    %v2562 = vld [vmem:[%s2334 + $0xa] sm:$0xff]
    %v2563 = vld [vmem:[%s2334 + $0x12] sm:$0xff]
    %v2564 = vld [vmem:[%s2334 + $0x1a] sm:$0xf]
    %v2565 = vld [vmem:[%s283] sm:$0xff]
    %v2566 = vld [vmem:[%s283 + $0x8] sm:$0xff]
    %v2567 = vld [vmem:[%s283 + $0x10] sm:$0xff]
    %v2568 = vld [vmem:[%s283 + $0x18] sm:$0xff]
    %v2569 = vld [vmem:[%s283 + $0x20] sm:$0xff]
    %v2570 = vld [vmem:[%s283 + $0x28] sm:$0xff]
    %v2571 = vld [vmem:[%s283 + $0x30] sm:$0xff]
    %v2572 = vld [vmem:[%s283 + $0x38] sm:$0xff]
    %v2574 = vsel %vm76, %v2561, 0
    %v2577 = vsel %vm76, %v2562, 0
    %v2580 = vsel %vm76, %v2563, 0
    %v2583 = vsel %vm76, %v2564, 0
    %2585 = vmatprep.subr.mxu0 %v2566
    %2586 = vmatpush1.msra.mxu0 %v2565
    %2587 = vmatprep.subr.mxu0 %v2568
    %2588 = vmatpush1.msra.mxu0 %v2567
    %2589 = vmatprep.subr.mxu0 %v2570
    %2590 = vmatpush1.msra.mxu0 %v2569
    %2591 = vmatprep.subr.mxu0 %v2572
    %2592 = vmatpush1.msra.mxu0 %v2571
    %2593 = vmatprep.subr.mxu0 0.0
    %2594 = vmatpush1.msra.mxu0 0.0
    %2595 = vmatprep.subr.mxu0 0.0
    %2596 = vmatpush1.msra.mxu0 0.0
    %2597 = vmatprep.subr.mxu0 0.0
    %2598 = vmatpush1.msra.mxu0 0.0
    %2599 = vmatprep.subr.mxu0 0.0
    %2600 = vmatpush1.msra.mxu0 0.0
    %2601 = vmatprep.subr.mxu0 0.0
    %2602 = vmatpush1.msra.mxu0 0.0
    %2603 = vmatprep.subr.mxu0 0.0
    %2604 = vmatpush1.msra.mxu0 0.0
    %2605 = vmatprep.subr.mxu0 0.0
    %2606 = vmatpush1.msra.mxu0 0.0
    %2607 = vmatprep.subr.mxu0 0.0
    %2608 = vmatpush1.msra.mxu0 0.0
    %2609 = vmatprep.subr.mxu0 0.0
    %2610 = vmatpush1.msra.mxu0 0.0
    %2611 = vmatprep.subr.mxu0 0.0
    %2612 = vmatpush1.msra.mxu0 0.0
    %2613 = vmatprep.subr.mxu0 0.0
    %2614 = vmatpush1.msra.mxu0 0.0
    %2615 = vmatprep.subr.mxu0 0.0
    %2616 = vmatpush1.msra.mxu0 0.0
    %2617 = vmatprep.subr.mxu0 0.0
    %2618 = vmatpush1.msra.mxu0 0.0
    %2619 = vmatprep.subr.mxu0 0.0
    %2620 = vmatpush1.msra.mxu0 0.0
    %2621 = vmatprep.subr.mxu0 0.0
    %2622 = vmatpush1.msra.mxu0 0.0
    %2623 = vmatprep.subr.mxu0 0.0
    %2624 = vmatpush1.msra.mxu0 0.0
    %2625 = vmatprep.subr.mxu0 0.0
    %2626 = vmatpush1.msra.mxu0 0.0
    %2627 = vmatprep.subr.mxu0 0.0
    %2628 = vmatpush1.msra.mxu0 0.0
    %2629 = vmatprep.subr.mxu0 0.0
    %2630 = vmatpush1.msra.mxu0 0.0
    %2631 = vmatprep.subr.mxu0 0.0
    %2632 = vmatpush1.msra.mxu0 0.0
    %2633 = vmatprep.subr.mxu0 0.0
    %2634 = vmatpush1.msra.mxu0 0.0
    %2635 = vmatprep.subr.mxu0 0.0
    %2636 = vmatpush1.msra.mxu0 0.0
    %2637 = vmatprep.subr.mxu0 0.0
    %2638 = vmatpush1.msra.mxu0 0.0
    %2639 = vmatprep.subr.mxu0 0.0
    %2640 = vmatpush1.msra.mxu0 0.0
    %2641 = vmatprep.subr.mxu0 0.0
    %2642 = vmatpush1.msra.mxu0 0.0
    %2643 = vmatprep.subr.mxu0 0.0
    %2644 = vmatpush1.msra.mxu0 0.0
    %2645 = vmatprep.subr.mxu0 0.0
    %2646 = vmatpush1.msra.mxu0 0.0
    %2647 = vmatprep.subr.mxu0 0.0
    %2648 = vmatpush1.msra.mxu0 0.0
    %2649 = vmatprep.mubr.f32.mxu0 0.0
    %2650 = vmatmul.mubr.f32.gmra.mrb[0].mxu0 %v2574
    %v2651 = vpop.f32.mrb[0].mxu0
    %v2652 = vadd.f32 0.0, %v2651
    %v2653 = vpop.f32.mrb[0].mxu0
    %v2654 = vadd.f32 0.0, %v2653
    %2655 = vmatprep.mubr.f32.mxu0 0.0
    %2656 = vmatmul.mubr.f32.gmra.mrb[0].mxu0 %v2577
    %v2657 = vpop.f32.mrb[0].mxu0
    %v2658 = vadd.f32 0.0, %v2657
    %v2659 = vpop.f32.mrb[0].mxu0
    %v2660 = vadd.f32 0.0, %v2659
    %2661 = vmatprep.mubr.f32.mxu0 0.0
    %2662 = vmatmul.mubr.f32.gmra.mrb[0].mxu0 %v2580
    %v2663 = vpop.f32.mrb[0].mxu0
    %v2664 = vadd.f32 0.0, %v2663
    %v2665 = vpop.f32.mrb[0].mxu0
    %v2666 = vadd.f32 0.0, %v2665
    %2667 = vmatprep.mubr.f32.mxu0 0.0
    %2668 = vmatmul.mubr.f32.gmra.mrb[0].mxu0 %v2583
    %v2669 = vpop.f32.mrb[0].mxu0
    %v2670 = vadd.f32 0.0, %v2669
    %v2671 = vpop.f32.mrb[0].mxu0
    %v2672 = vadd.f32 0.0, %v2671
    %2673 = vdwg.mxu0
    %v2674 = vadd.f32 %v2539, %v2652
    %v2675 = vadd.f32 %v2541, %v2654
    %v2676 = vadd.f32 %v2545, %v2658
    %v2677 = vadd.f32 %v2547, %v2660
    %v2678 = vadd.f32 %v2551, %v2664
    %v2679 = vadd.f32 %v2553, %v2666
    %v2680 = vadd.f32 %v2557, %v2670
    %v2681 = vadd.f32 %v2559, %v2672
    %v2682 = vld [vmem:[%s2334 + $0x3] sm:$0xff]
    %v2683 = vld [vmem:[%s2334 + $0xb] sm:$0xff]
    %v2684 = vld [vmem:[%s2334 + $0x13] sm:$0xff]
    %v2685 = vld [vmem:[%s2334 + $0x1b] sm:$0xf]
    %v2686 = vld [vmem:[%s405] sm:$0xff]
    %v2687 = vld [vmem:[%s405 + $0x8] sm:$0xff]
    %v2688 = vld [vmem:[%s405 + $0x10] sm:$0xff]
    %v2689 = vld [vmem:[%s405 + $0x18] sm:$0xff]
    %v2690 = vld [vmem:[%s405 + $0x20] sm:$0xff]
    %v2691 = vld [vmem:[%s405 + $0x28] sm:$0xff]
    %v2692 = vld [vmem:[%s405 + $0x30] sm:$0xff]
    %v2693 = vld [vmem:[%s405 + $0x38] sm:$0xff]
    %v2695 = vsel %vm76, %v2682, 0
    %v2698 = vsel %vm76, %v2683, 0
    %v2701 = vsel %vm76, %v2684, 0
    %v2704 = vsel %vm76, %v2685, 0
    %2706 = vmatprep.subr.mxu0 %v2687
    %2707 = vmatpush1.msra.mxu0 %v2686
    %2708 = vmatprep.subr.mxu0 %v2689
    %2709 = vmatpush1.msra.mxu0 %v2688
    %2710 = vmatprep.subr.mxu0 %v2691
    %2711 = vmatpush1.msra.mxu0 %v2690
    %2712 = vmatprep.subr.mxu0 %v2693
    %2713 = vmatpush1.msra.mxu0 %v2692
    %2714 = vmatprep.subr.mxu0 0.0
    %2715 = vmatpush1.msra.mxu0 0.0
    %2716 = vmatprep.subr.mxu0 0.0
    %2717 = vmatpush1.msra.mxu0 0.0
    %2718 = vmatprep.subr.mxu0 0.0
    %2719 = vmatpush1.msra.mxu0 0.0
    %2720 = vmatprep.subr.mxu0 0.0
    %2721 = vmatpush1.msra.mxu0 0.0
    %2722 = vmatprep.subr.mxu0 0.0
    %2723 = vmatpush1.msra.mxu0 0.0
    %2724 = vmatprep.subr.mxu0 0.0
    %2725 = vmatpush1.msra.mxu0 0.0
    %2726 = vmatprep.subr.mxu0 0.0
    %2727 = vmatpush1.msra.mxu0 0.0
    %2728 = vmatprep.subr.mxu0 0.0
    %2729 = vmatpush1.msra.mxu0 0.0
    %2730 = vmatprep.subr.mxu0 0.0
    %2731 = vmatpush1.msra.mxu0 0.0
    %2732 = vmatprep.subr.mxu0 0.0
    %2733 = vmatpush1.msra.mxu0 0.0
    %2734 = vmatprep.subr.mxu0 0.0
    %2735 = vmatpush1.msra.mxu0 0.0
    %2736 = vmatprep.subr.mxu0 0.0
    %2737 = vmatpush1.msra.mxu0 0.0
    %2738 = vmatprep.subr.mxu0 0.0
    %2739 = vmatpush1.msra.mxu0 0.0
    %2740 = vmatprep.subr.mxu0 0.0
    %2741 = vmatpush1.msra.mxu0 0.0
    %2742 = vmatprep.subr.mxu0 0.0
    %2743 = vmatpush1.msra.mxu0 0.0
    %2744 = vmatprep.subr.mxu0 0.0
    %2745 = vmatpush1.msra.mxu0 0.0
    %2746 = vmatprep.subr.mxu0 0.0
    %2747 = vmatpush1.msra.mxu0 0.0
    %2748 = vmatprep.subr.mxu0 0.0
    %2749 = vmatpush1.msra.mxu0 0.0
    %2750 = vmatprep.subr.mxu0 0.0
    %2751 = vmatpush1.msra.mxu0 0.0
    %2752 = vmatprep.subr.mxu0 0.0
    %2753 = vmatpush1.msra.mxu0 0.0
    %2754 = vmatprep.subr.mxu0 0.0
    %2755 = vmatpush1.msra.mxu0 0.0
    %2756 = vmatprep.subr.mxu0 0.0
    %2757 = vmatpush1.msra.mxu0 0.0
    %2758 = vmatprep.subr.mxu0 0.0
    %2759 = vmatpush1.msra.mxu0 0.0
    %2760 = vmatprep.subr.mxu0 0.0
    %2761 = vmatpush1.msra.mxu0 0.0
    %2762 = vmatprep.subr.mxu0 0.0
    %2763 = vmatpush1.msra.mxu0 0.0
    %2764 = vmatprep.subr.mxu0 0.0
    %2765 = vmatpush1.msra.mxu0 0.0
    %2766 = vmatprep.subr.mxu0 0.0
    %2767 = vmatpush1.msra.mxu0 0.0
    %2768 = vmatprep.subr.mxu0 0.0
    %2769 = vmatpush1.msra.mxu0 0.0
    %2770 = vmatprep.mubr.f32.mxu0 0.0
    %2771 = vmatmul.mubr.f32.gmra.mrb[0].mxu0 %v2695
    %v2772 = vpop.f32.mrb[0].mxu0
    %v2773 = vadd.f32 0.0, %v2772
    %v2774 = vpop.f32.mrb[0].mxu0
    %v2775 = vadd.f32 0.0, %v2774
    %2776 = vmatprep.mubr.f32.mxu0 0.0
    %2777 = vmatmul.mubr.f32.gmra.mrb[0].mxu0 %v2698
    %v2778 = vpop.f32.mrb[0].mxu0
    %v2779 = vadd.f32 0.0, %v2778
    %v2780 = vpop.f32.mrb[0].mxu0
    %v2781 = vadd.f32 0.0, %v2780
    %2782 = vmatprep.mubr.f32.mxu0 0.0
    %2783 = vmatmul.mubr.f32.gmra.mrb[0].mxu0 %v2701
    %v2784 = vpop.f32.mrb[0].mxu0
    %v2785 = vadd.f32 0.0, %v2784
    %v2786 = vpop.f32.mrb[0].mxu0
    %v2787 = vadd.f32 0.0, %v2786
    %2788 = vmatprep.mubr.f32.mxu0 0.0
    %2789 = vmatmul.mubr.f32.gmra.mrb[0].mxu0 %v2704
    %v2790 = vpop.f32.mrb[0].mxu0
    %v2791 = vadd.f32 0.0, %v2790
    %v2792 = vpop.f32.mrb[0].mxu0
    %v2793 = vadd.f32 0.0, %v2792
    %2794 = vdwg.mxu0
    %v2795 = vadd.f32 %v2674, %v2773
    %v2796 = vadd.f32 %v2675, %v2775
    %v2797 = vadd.f32 %v2676, %v2779
    %v2798 = vadd.f32 %v2677, %v2781
    %v2799 = vadd.f32 %v2678, %v2785
    %v2800 = vadd.f32 %v2679, %v2787
    %v2801 = vadd.f32 %v2680, %v2791
    %v2802 = vadd.f32 %v2681, %v2793
    %v2803 = vld [vmem:[%s2334 + $0x4] sm:$0xff]
    %v2804 = vld [vmem:[%s2334 + $0xc] sm:$0xff]
    %v2805 = vld [vmem:[%s2334 + $0x14] sm:$0xff]
    %v2806 = vld [vmem:[%s2334 + $0x1c] sm:$0xf]
    %v2807 = vld [vmem:[%s527] sm:$0xff]
    %v2808 = vld [vmem:[%s527 + $0x8] sm:$0xff]
    %v2809 = vld [vmem:[%s527 + $0x10] sm:$0xff]
    %v2810 = vld [vmem:[%s527 + $0x18] sm:$0xff]
    %v2811 = vld [vmem:[%s527 + $0x20] sm:$0xff]
    %v2812 = vld [vmem:[%s527 + $0x28] sm:$0xff]
    %v2813 = vld [vmem:[%s527 + $0x30] sm:$0xff]
    %v2814 = vld [vmem:[%s527 + $0x38] sm:$0xff]
    %v2816 = vsel %vm76, %v2803, 0
    %v2819 = vsel %vm76, %v2804, 0
    %v2822 = vsel %vm76, %v2805, 0
    %v2825 = vsel %vm76, %v2806, 0
    %2827 = vmatprep.subr.mxu0 %v2808
    %2828 = vmatpush1.msra.mxu0 %v2807
    %2829 = vmatprep.subr.mxu0 %v2810
    %2830 = vmatpush1.msra.mxu0 %v2809
    %2831 = vmatprep.subr.mxu0 %v2812
    %2832 = vmatpush1.msra.mxu0 %v2811
    %2833 = vmatprep.subr.mxu0 %v2814
    %2834 = vmatpush1.msra.mxu0 %v2813
    %2835 = vmatprep.subr.mxu0 0.0
    %2836 = vmatpush1.msra.mxu0 0.0
    %2837 = vmatprep.subr.mxu0 0.0
    %2838 = vmatpush1.msra.mxu0 0.0
    %2839 = vmatprep.subr.mxu0 0.0
    %2840 = vmatpush1.msra.mxu0 0.0
    %2841 = vmatprep.subr.mxu0 0.0
    %2842 = vmatpush1.msra.mxu0 0.0
    %2843 = vmatprep.subr.mxu0 0.0
    %2844 = vmatpush1.msra.mxu0 0.0
    %2845 = vmatprep.subr.mxu0 0.0
    %2846 = vmatpush1.msra.mxu0 0.0
    %2847 = vmatprep.subr.mxu0 0.0
    %2848 = vmatpush1.msra.mxu0 0.0
    %2849 = vmatprep.subr.mxu0 0.0
    %2850 = vmatpush1.msra.mxu0 0.0
    %2851 = vmatprep.subr.mxu0 0.0
    %2852 = vmatpush1.msra.mxu0 0.0
    %2853 = vmatprep.subr.mxu0 0.0
    %2854 = vmatpush1.msra.mxu0 0.0
    %2855 = vmatprep.subr.mxu0 0.0
    %2856 = vmatpush1.msra.mxu0 0.0
    %2857 = vmatprep.subr.mxu0 0.0
    %2858 = vmatpush1.msra.mxu0 0.0
    %2859 = vmatprep.subr.mxu0 0.0
    %2860 = vmatpush1.msra.mxu0 0.0
    %2861 = vmatprep.subr.mxu0 0.0
    %2862 = vmatpush1.msra.mxu0 0.0
    %2863 = vmatprep.subr.mxu0 0.0
    %2864 = vmatpush1.msra.mxu0 0.0
    %2865 = vmatprep.subr.mxu0 0.0
    %2866 = vmatpush1.msra.mxu0 0.0
    %2867 = vmatprep.subr.mxu0 0.0
    %2868 = vmatpush1.msra.mxu0 0.0
    %2869 = vmatprep.subr.mxu0 0.0
    %2870 = vmatpush1.msra.mxu0 0.0
    %2871 = vmatprep.subr.mxu0 0.0
    %2872 = vmatpush1.msra.mxu0 0.0
    %2873 = vmatprep.subr.mxu0 0.0
    %2874 = vmatpush1.msra.mxu0 0.0
    %2875 = vmatprep.subr.mxu0 0.0
    %2876 = vmatpush1.msra.mxu0 0.0
    %2877 = vmatprep.subr.mxu0 0.0
    %2878 = vmatpush1.msra.mxu0 0.0
    %2879 = vmatprep.subr.mxu0 0.0
    %2880 = vmatpush1.msra.mxu0 0.0
    %2881 = vmatprep.subr.mxu0 0.0
    %2882 = vmatpush1.msra.mxu0 0.0
    %2883 = vmatprep.subr.mxu0 0.0
    %2884 = vmatpush1.msra.mxu0 0.0
    %2885 = vmatprep.subr.mxu0 0.0
    %2886 = vmatpush1.msra.mxu0 0.0
    %2887 = vmatprep.subr.mxu0 0.0
    %2888 = vmatpush1.msra.mxu0 0.0
    %2889 = vmatprep.subr.mxu0 0.0
    %2890 = vmatpush1.msra.mxu0 0.0
    %2891 = vmatprep.mubr.f32.mxu0 0.0
    %2892 = vmatmul.mubr.f32.gmra.mrb[0].mxu0 %v2816
    %v2893 = vpop.f32.mrb[0].mxu0
    %v2894 = vadd.f32 0.0, %v2893
    %v2895 = vpop.f32.mrb[0].mxu0
    %v2896 = vadd.f32 0.0, %v2895
    %2897 = vmatprep.mubr.f32.mxu0 0.0
    %2898 = vmatmul.mubr.f32.gmra.mrb[0].mxu0 %v2819
    %v2899 = vpop.f32.mrb[0].mxu0
    %v2900 = vadd.f32 0.0, %v2899
    %v2901 = vpop.f32.mrb[0].mxu0
    %v2902 = vadd.f32 0.0, %v2901
    %2903 = vmatprep.mubr.f32.mxu0 0.0
    %2904 = vmatmul.mubr.f32.gmra.mrb[0].mxu0 %v2822
    %v2905 = vpop.f32.mrb[0].mxu0
    %v2906 = vadd.f32 0.0, %v2905
    %v2907 = vpop.f32.mrb[0].mxu0
    %v2908 = vadd.f32 0.0, %v2907
    %2909 = vmatprep.mubr.f32.mxu0 0.0
    %2910 = vmatmul.mubr.f32.gmra.mrb[0].mxu0 %v2825
    %v2911 = vpop.f32.mrb[0].mxu0
    %v2912 = vadd.f32 0.0, %v2911
    %v2913 = vpop.f32.mrb[0].mxu0
    %v2914 = vadd.f32 0.0, %v2913
    %2915 = vdwg.mxu0
    %v2916 = vadd.f32 %v2795, %v2894
    %v2917 = vadd.f32 %v2796, %v2896
    %v2918 = vadd.f32 %v2797, %v2900
    %v2919 = vadd.f32 %v2798, %v2902
    %v2920 = vadd.f32 %v2799, %v2906
    %v2921 = vadd.f32 %v2800, %v2908
    %v2922 = vadd.f32 %v2801, %v2912
    %v2923 = vadd.f32 %v2802, %v2914
    %v2924 = vld [vmem:[%s2] sm:$0x3]
    %v2926 = vlaneseq
    %v2927 = vshrl.u32 %v2926, 7
    %v2928 = vsub.s32 0, %v2927
    %v2929 = vrot.slane %v2924, %v2928
    %v2930 = vlaneseq
    %v2931 = vshrl.u32 %v2930, 7
    %v2932 = vsub.s32 1, %v2931
    %v2933 = vrot.slane %v2924, %v2932
    %v2936 = vadd.f32 %v2916, %v2929
    %v2937 = vadd.f32 %v2917, %v2933
    %v2938 = vadd.f32 %v2918, %v2929
    %v2939 = vadd.f32 %v2919, %v2933
    %v2940 = vadd.f32 %v2920, %v2929
    %v2941 = vadd.f32 %v2921, %v2933
    %v2942 = vadd.f32 %v2922, %v2929
    %v2943 = vadd.f32 %v2923, %v2933
    %v2944 = vsub.f32 0.0, %v2936
    %v2945 = vsub.f32 0.0, %v2937
    %v2946 = vsub.f32 0.0, %v2938
    %v2947 = vsub.f32 0.0, %v2939
    %v2948 = vsub.f32 0.0, %v2940
    %v2949 = vsub.f32 0.0, %v2941
    %v2950 = vsub.f32 0.0, %v2942
    %v2951 = vsub.f32 0.0, %v2943
    %v2952 = vmul.f32 %v2944, 1.442695
    %v2953 = vpow.pop %v2952
    %v2954 = vmul.f32 %v2945, 1.442695
    %v2955 = vpow.pop %v2954
    %v2956 = vmul.f32 %v2946, 1.442695
    %v2957 = vpow.pop %v2956
    %v2958 = vmul.f32 %v2947, 1.442695
    %v2959 = vpow.pop %v2958
    %v2960 = vmul.f32 %v2948, 1.442695
    %v2961 = vpow.pop %v2960
    %v2962 = vmul.f32 %v2949, 1.442695
    %v2963 = vpow.pop %v2962
    %v2964 = vmul.f32 %v2950, 1.442695
    %v2965 = vpow.pop %v2964
    %v2966 = vmul.f32 %v2951, 1.442695
    %v2967 = vpow.pop %v2966
    %v2968 = vadd.f32 %v2953, 1.0
    %v2969 = vadd.f32 %v2955, 1.0
    %v2970 = vadd.f32 %v2957, 1.0
    %v2971 = vadd.f32 %v2959, 1.0
    %v2972 = vadd.f32 %v2961, 1.0
    %v2973 = vadd.f32 %v2963, 1.0
    %v2974 = vadd.f32 %v2965, 1.0
    %v2975 = vadd.f32 %v2967, 1.0
    %v2976 = vrcp.pop %v2968
    %v2977 = vmul.f32 1.0, %v2976
    %v2978 = vrcp.pop %v2969
    %v2979 = vmul.f32 1.0, %v2978
    %v2980 = vrcp.pop %v2970
    %v2981 = vmul.f32 1.0, %v2980
    %v2982 = vrcp.pop %v2971
    %v2983 = vmul.f32 1.0, %v2982
    %v2984 = vrcp.pop %v2972
    %v2985 = vmul.f32 1.0, %v2984
    %v2986 = vrcp.pop %v2973
    %v2987 = vmul.f32 1.0, %v2986
    %v2988 = vrcp.pop %v2974
    %v2989 = vmul.f32 1.0, %v2988
    %v2990 = vrcp.pop %v2975
    %v2991 = vmul.f32 1.0, %v2990
    %v2992 = vld [vmem:[%s3] sm:$0xff]
    %v2993 = vld [vmem:[%s3 + $0x8] sm:$0x3f]
    %v2995 = vsel %vm715, %v2992, 0
    %v2998 = vsel %vm715, %v2993, 0
    %v3001 = vsel %vm722, %v2989, 0
    %v3004 = vsel %vm722, %v2991, 0
    %3006 = vmatprep.subr.mxu0 %v2979
    %3007 = vmatpush1.msra.mxu0 %v2977
    %3008 = vmatprep.subr.mxu0 %v2983
    %3009 = vmatpush1.msra.mxu0 %v2981
    %3010 = vmatprep.subr.mxu0 %v2987
    %3011 = vmatpush1.msra.mxu0 %v2985
    %3012 = vmatprep.subr.mxu0 %v3004
    %3013 = vmatpush1.msra.mxu0 %v3001
    %3014 = vmatprep.subr.mxu0 0.0
    %3015 = vmatpush1.msra.mxu0 0.0
    %3016 = vmatprep.subr.mxu0 0.0
    %3017 = vmatpush1.msra.mxu0 0.0
    %3018 = vmatprep.subr.mxu0 0.0
    %3019 = vmatpush1.msra.mxu0 0.0
    %3020 = vmatprep.subr.mxu0 0.0
    %3021 = vmatpush1.msra.mxu0 0.0
    %3022 = vmatprep.subr.mxu0 0.0
    %3023 = vmatpush1.msra.mxu0 0.0
    %3024 = vmatprep.subr.mxu0 0.0
    %3025 = vmatpush1.msra.mxu0 0.0
    %3026 = vmatprep.subr.mxu0 0.0
    %3027 = vmatpush1.msra.mxu0 0.0
    %3028 = vmatprep.subr.mxu0 0.0
    %3029 = vmatpush1.msra.mxu0 0.0
    %3030 = vmatprep.subr.mxu0 0.0
    %3031 = vmatpush1.msra.mxu0 0.0
    %3032 = vmatprep.subr.mxu0 0.0
    %3033 = vmatpush1.msra.mxu0 0.0
    %3034 = vmatprep.subr.mxu0 0.0
    %3035 = vmatpush1.msra.mxu0 0.0
    %3036 = vmatprep.subr.mxu0 0.0
    %3037 = vmatpush1.msra.mxu0 0.0
    %3038 = vmatprep.subr.mxu0 0.0
    %3039 = vmatpush1.msra.mxu0 0.0
    %3040 = vmatprep.subr.mxu0 0.0
    %3041 = vmatpush1.msra.mxu0 0.0
    %3042 = vmatprep.subr.mxu0 0.0
    %3043 = vmatpush1.msra.mxu0 0.0
    %3044 = vmatprep.subr.mxu0 0.0
    %3045 = vmatpush1.msra.mxu0 0.0
    %3046 = vmatprep.subr.mxu0 0.0
    %3047 = vmatpush1.msra.mxu0 0.0
    %3048 = vmatprep.subr.mxu0 0.0
    %3049 = vmatpush1.msra.mxu0 0.0
    %3050 = vmatprep.subr.mxu0 0.0
    %3051 = vmatpush1.msra.mxu0 0.0
    %3052 = vmatprep.subr.mxu0 0.0
    %3053 = vmatpush1.msra.mxu0 0.0
    %3054 = vmatprep.subr.mxu0 0.0
    %3055 = vmatpush1.msra.mxu0 0.0
    %3056 = vmatprep.subr.mxu0 0.0
    %3057 = vmatpush1.msra.mxu0 0.0
    %3058 = vmatprep.subr.mxu0 0.0
    %3059 = vmatpush1.msra.mxu0 0.0
    %3060 = vmatprep.subr.mxu0 0.0
    %3061 = vmatpush1.msra.mxu0 0.0
    %3062 = vmatprep.subr.mxu0 0.0
    %3063 = vmatpush1.msra.mxu0 0.0
    %3064 = vmatprep.subr.mxu0 0.0
    %3065 = vmatpush1.msra.mxu0 0.0
    %3066 = vmatprep.subr.mxu0 0.0
    %3067 = vmatpush1.msra.mxu0 0.0
    %3068 = vmatprep.subr.mxu0 0.0
    %3069 = vmatpush1.msra.mxu0 0.0
    %3070 = vmatprep.mubr.f32.mxu0 0.0
    %3071 = vmatmul.mubr.f32.gmra.mrb[0].mxu0 %v2995
    %v3072 = vpop.f32.mrb[0].mxu0
    %v3073 = vadd.f32 0.0, %v3072
    %v3074 = vpop.f32.mrb[0].mxu0
    %v3075 = vadd.f32 0.0, %v3074
    %3076 = vmatprep.mubr.f32.mxu0 0.0
    %3077 = vmatmul.mubr.f32.gmra.mrb[0].mxu0 %v2998
    %v3078 = vpop.f32.mrb[0].mxu0
    %v3079 = vadd.f32 0.0, %v3078
    %v3080 = vpop.f32.mrb[0].mxu0
    %v3081 = vadd.f32 0.0, %v3080
    %3082 = vdwg.mxu0
    %v3083 = vld [vmem:[%s4] sm:$0xff]
    %v3084 = vld [vmem:[%s4 + $0x8] sm:$0xff]
    %v3085 = vld [vmem:[%s4 + $0x10] sm:$0xff]
    %v3086 = vld [vmem:[%s4 + $0x18] sm:$0xff]
    %v3087 = vld [vmem:[%s4 + $0x20] sm:$0xff]
    %v3088 = vld [vmem:[%s4 + $0x28] sm:$0xff]
    %v3089 = vld [vmem:[%s4 + $0x30] sm:$0xff]
    %v3090 = vld [vmem:[%s4 + $0x38] sm:$0xff]
    %v3091 = vld [vmem:[%s4 + $0x40] sm:$0xff]
    %v3092 = vld [vmem:[%s4 + $0x48] sm:$0xff]
    %v3093 = vld [vmem:[%s4 + $0x50] sm:$0xff]
    %v3094 = vld [vmem:[%s4 + $0x58] sm:$0xff]
    %v3095 = vld [vmem:[%s4 + $0x60] sm:$0xff]
    %v3096 = vld [vmem:[%s4 + $0x68] sm:$0xff]
    %v3097 = vld [vmem:[%s4 + $0x70] sm:$0xff]
    %v3098 = vld [vmem:[%s4 + $0x78] sm:$0xff]
    %v3099 = vld [vmem:[%s4 + $0x80] sm:$0xff]
    %v3100 = vld [vmem:[%s4 + $0x88] sm:$0xff]
    %v3101 = vld [vmem:[%s4 + $0x90] sm:$0xff]
    %v3102 = vld [vmem:[%s4 + $0x98] sm:$0xff]
    %v3103 = vld [vmem:[%s4 + $0xa0] sm:$0xff]
    %v3105 = vsel %vm827, %v3075, 0
    %v3108 = vsel %vm827, %v3081, 0
    %3110 = vmatprep.subr.mxu0 0.0
    %3111 = vmatpush1.msra.mxu0 %v3083
    %3112 = vmatprep.subr.mxu0 0.0
    %3113 = vmatpush1.msra.mxu0 %v3084
    %3114 = vmatprep.subr.mxu0 0.0
    %3115 = vmatpush1.msra.mxu0 %v3085
    %3116 = vmatprep.subr.mxu0 0.0
    %3117 = vmatpush1.msra.mxu0 %v3086
    %3118 = vmatprep.subr.mxu0 0.0
    %3119 = vmatpush1.msra.mxu0 %v3087
    %3120 = vmatprep.subr.mxu0 0.0
    %3121 = vmatpush1.msra.mxu0 %v3088
    %3122 = vmatprep.subr.mxu0 0.0
    %3123 = vmatpush1.msra.mxu0 %v3089
    %3124 = vmatprep.subr.mxu0 0.0
    %3125 = vmatpush1.msra.mxu0 %v3090
    %3126 = vmatprep.subr.mxu0 0.0
    %3127 = vmatpush1.msra.mxu0 %v3091
    %3128 = vmatprep.subr.mxu0 0.0
    %3129 = vmatpush1.msra.mxu0 %v3092
    %3130 = vmatprep.subr.mxu0 0.0
    %3131 = vmatpush1.msra.mxu0 %v3093
    %3132 = vmatprep.subr.mxu0 0.0
    %3133 = vmatpush1.msra.mxu0 %v3094
    %3134 = vmatprep.subr.mxu0 0.0
    %3135 = vmatpush1.msra.mxu0 %v3095
    %3136 = vmatprep.subr.mxu0 0.0
    %3137 = vmatpush1.msra.mxu0 %v3096
    %3138 = vmatprep.subr.mxu0 0.0
    %3139 = vmatpush1.msra.mxu0 %v3097
    %3140 = vmatprep.subr.mxu0 0.0
    %3141 = vmatpush1.msra.mxu0 %v3098
    %3142 = vmatprep.subr.mxu0 0.0
    %3143 = vmatpush1.msra.mxu0 %v3099
    %3144 = vmatprep.subr.mxu0 0.0
    %3145 = vmatpush1.msra.mxu0 %v3100
    %3146 = vmatprep.subr.mxu0 0.0
    %3147 = vmatpush1.msra.mxu0 %v3101
    %3148 = vmatprep.subr.mxu0 0.0
    %3149 = vmatpush1.msra.mxu0 %v3102
    %3150 = vmatprep.subr.mxu0 0.0
    %3151 = vmatpush1.msra.mxu0 %v3103
    %3152 = vmatprep.subr.mxu0 0.0
    %3153 = vmatpush1.msra.mxu0 0.0
    %3154 = vmatprep.subr.mxu0 0.0
    %3155 = vmatpush1.msra.mxu0 0.0
    %3156 = vmatprep.subr.mxu0 0.0
    %3157 = vmatpush1.msra.mxu0 0.0
    %3158 = vmatprep.subr.mxu0 0.0
    %3159 = vmatpush1.msra.mxu0 0.0
    %3160 = vmatprep.subr.mxu0 0.0
    %3161 = vmatpush1.msra.mxu0 0.0
    %3162 = vmatprep.subr.mxu0 0.0
    %3163 = vmatpush1.msra.mxu0 0.0
    %3164 = vmatprep.subr.mxu0 0.0
    %3165 = vmatpush1.msra.mxu0 0.0
    %3166 = vmatprep.subr.mxu0 0.0
    %3167 = vmatpush1.msra.mxu0 0.0
    %3168 = vmatprep.subr.mxu0 0.0
    %3169 = vmatpush1.msra.mxu0 0.0
    %3170 = vmatprep.subr.mxu0 0.0
    %3171 = vmatpush1.msra.mxu0 0.0
    %3172 = vmatprep.subr.mxu0 0.0
    %3173 = vmatpush1.msra.mxu0 0.0
    %3174 = vmatprep.mubr.f32.mxu0 %v3105
    %3175 = vmatmul.mubr.f32.gmra.mrb[0].mxu0 %v3073
    %v3176 = vpop.f32.mrb[0].mxu0
    %v3177 = vadd.f32 0.0, %v3176
    %v3178 = vpop.f32.mrb[0].mxu0
    %3179 = vmatprep.mubr.f32.mxu0 %v3108
    %3180 = vmatmul.mubr.f32.gmra.mrb[0].mxu0 %v3079
    %v3181 = vpop.f32.mrb[0].mxu0
    %v3182 = vadd.f32 0.0, %v3181
    %v3183 = vpop.f32.mrb[0].mxu0
    %3184 = vdwg.mxu0
    %3185 = vst.msk [vmem:[#allocation2] sm:$0xff] %vm909, %v3177
    %3186 = vst.msk [vmem:[#allocation2 + $0x8] sm:$0x3f] %vm911, %v3182
    %v3187 = vld [vmem:[#allocation2] sm:$0xff]
    %v3188 = vld [vmem:[#allocation2 + $0x8] sm:$0x3]
    %v3189 = vld [vmem:[%s5] sm:$0xff]
    %v3190 = vld [vmem:[%s5 + $0x8] sm:$0xff]
    %v3191 = vld [vmem:[%s5 + $0x10] sm:$0xff]
    %v3192 = vld [vmem:[%s5 + $0x18] sm:$0xff]
    %v3193 = vld [vmem:[%s5 + $0x20] sm:$0xff]
    %v3194 = vld [vmem:[%s5 + $0x28] sm:$0xff]
    %v3195 = vld [vmem:[%s5 + $0x30] sm:$0xff]
    %v3196 = vld [vmem:[%s5 + $0x38] sm:$0xff]
    %v3197 = vld [vmem:[%s5 + $0x40] sm:$0xff]
    %v3198 = vld [vmem:[%s5 + $0x48] sm:$0xff]
    %v3199 = vld [vmem:[%s5 + $0x50] sm:$0xff]
    %v3200 = vld [vmem:[%s5 + $0x58] sm:$0xff]
    %v3201 = vld [vmem:[%s5 + $0x60] sm:$0xff]
    %v3202 = vld [vmem:[%s5 + $0x68] sm:$0xff]
    %v3203 = vld [vmem:[%s5 + $0x70] sm:$0xff]
    %v3204 = vld [vmem:[%s5 + $0x78] sm:$0xff]
    %v3205 = vld [vmem:[%s5 + $0x80] sm:$0xff]
    %v3206 = vld [vmem:[%s5 + $0x88] sm:$0xff]
    %v3207 = vld [vmem:[%s5 + $0x90] sm:$0xff]
    %v3208 = vld [vmem:[%s5 + $0x98] sm:$0xff]
    %v3209 = vld [vmem:[%s5 + $0xa0] sm:$0xf]
    %v3210 = vld [vmem:[%s5 + $0xa8] sm:$0xf]
    %v3211 = vld [vmem:[#allocation2 + $0x1] sm:$0xff]
    %v3212 = vld [vmem:[#allocation2 + $0x9] sm:$0x3]
    %v3213 = vld [vmem:[%s939] sm:$0xff]
    %v3214 = vld [vmem:[%s939 + $0x8] sm:$0xff]
    %v3215 = vld [vmem:[%s939 + $0x10] sm:$0xff]
    %v3216 = vld [vmem:[%s939 + $0x18] sm:$0xff]
    %v3217 = vld [vmem:[%s939 + $0x20] sm:$0xff]
    %v3218 = vld [vmem:[%s939 + $0x28] sm:$0xff]
    %v3219 = vld [vmem:[%s939 + $0x30] sm:$0xff]
    %v3220 = vld [vmem:[%s939 + $0x38] sm:$0xff]
    %v3221 = vld [vmem:[%s939 + $0x40] sm:$0xff]
    %v3222 = vld [vmem:[%s939 + $0x48] sm:$0xff]
    %v3223 = vld [vmem:[%s939 + $0x50] sm:$0xff]
    %v3224 = vld [vmem:[%s939 + $0x58] sm:$0xff]
    %v3225 = vld [vmem:[%s939 + $0x60] sm:$0xff]
    %v3226 = vld [vmem:[%s939 + $0x68] sm:$0xff]
    %v3227 = vld [vmem:[%s939 + $0x70] sm:$0xff]
    %v3228 = vld [vmem:[%s939 + $0x78] sm:$0xff]
    %v3229 = vld [vmem:[%s939 + $0x80] sm:$0xff]
    %v3230 = vld [vmem:[%s939 + $0x88] sm:$0xff]
    %v3231 = vld [vmem:[%s939 + $0x90] sm:$0xff]
    %v3232 = vld [vmem:[%s939 + $0x98] sm:$0xff]
    %v3233 = vld [vmem:[%s939 + $0xa0] sm:$0xf]
    %v3234 = vld [vmem:[%s939 + $0xa8] sm:$0xf]
    %v3236 = vsel %vm909, %v3211, 0
    %v3239 = vsel %vm909, %v3212, 0
    %v3242 = vsel %vm722, %v3233, 0
    %v3245 = vsel %vm722, %v3234, 0
    %3247 = vmatprep.subr.mxu0 %v3214
    %3248 = vmatpush1.msra.mxu0 %v3213
    %3249 = vmatprep.subr.mxu0 %v3216
    %3250 = vmatpush1.msra.mxu0 %v3215
    %3251 = vmatprep.subr.mxu0 %v3218
    %3252 = vmatpush1.msra.mxu0 %v3217
    %3253 = vmatprep.subr.mxu0 %v3220
    %3254 = vmatpush1.msra.mxu0 %v3219
    %3255 = vmatprep.subr.mxu0 %v3222
    %3256 = vmatpush1.msra.mxu0 %v3221
    %3257 = vmatprep.subr.mxu0 %v3224
    %3258 = vmatpush1.msra.mxu0 %v3223
    %3259 = vmatprep.subr.mxu0 %v3226
    %3260 = vmatpush1.msra.mxu0 %v3225
    %3261 = vmatprep.subr.mxu0 %v3228
    %3262 = vmatpush1.msra.mxu0 %v3227
    %3263 = vmatprep.subr.mxu0 %v3230
    %3264 = vmatpush1.msra.mxu0 %v3229
    %3265 = vmatprep.subr.mxu0 %v3232
    %3266 = vmatpush1.msra.mxu0 %v3231
    %3267 = vmatprep.subr.mxu0 %v3245
    %3268 = vmatpush1.msra.mxu0 %v3242
    %3269 = vmatprep.subr.mxu0 0.0
    %3270 = vmatpush1.msra.mxu0 0.0
    %3271 = vmatprep.subr.mxu0 0.0
    %3272 = vmatpush1.msra.mxu0 0.0
    %3273 = vmatprep.subr.mxu0 0.0
    %3274 = vmatpush1.msra.mxu0 0.0
    %3275 = vmatprep.subr.mxu0 0.0
    %3276 = vmatpush1.msra.mxu0 0.0
    %3277 = vmatprep.subr.mxu0 0.0
    %3278 = vmatpush1.msra.mxu0 0.0
    %3279 = vmatprep.subr.mxu0 0.0
    %3280 = vmatpush1.msra.mxu0 0.0
    %3281 = vmatprep.subr.mxu0 0.0
    %3282 = vmatpush1.msra.mxu0 0.0
    %3283 = vmatprep.subr.mxu0 0.0
    %3284 = vmatpush1.msra.mxu0 0.0
    %3285 = vmatprep.subr.mxu0 0.0
    %3286 = vmatpush1.msra.mxu0 0.0
    %3287 = vmatprep.subr.mxu0 0.0
    %3288 = vmatpush1.msra.mxu0 0.0
    %3289 = vmatprep.subr.mxu0 0.0
    %3290 = vmatpush1.msra.mxu0 0.0
    %3291 = vmatprep.subr.mxu0 0.0
    %3292 = vmatpush1.msra.mxu0 0.0
    %3293 = vmatprep.subr.mxu0 0.0
    %3294 = vmatpush1.msra.mxu0 0.0
    %3295 = vmatprep.subr.mxu0 0.0
    %3296 = vmatpush1.msra.mxu0 0.0
    %3297 = vmatprep.subr.mxu0 0.0
    %3298 = vmatpush1.msra.mxu0 0.0
    %3299 = vmatprep.subr.mxu0 0.0
    %3300 = vmatpush1.msra.mxu0 0.0
    %3301 = vmatprep.subr.mxu0 0.0
    %3302 = vmatpush1.msra.mxu0 0.0
    %3303 = vmatprep.subr.mxu0 0.0
    %3304 = vmatpush1.msra.mxu0 0.0
    %3305 = vmatprep.subr.mxu0 0.0
    %3306 = vmatpush1.msra.mxu0 0.0
    %3307 = vmatprep.subr.mxu0 0.0
    %3308 = vmatpush1.msra.mxu0 0.0
    %3309 = vmatprep.subr.mxu0 0.0
    %3310 = vmatpush1.msra.mxu0 0.0
    %3311 = vmatprep.mubr.f32.mxu0 0.0
    %3312 = vmatmul.mubr.f32.gmra.mrb[0].mxu0 %v3236
    %v3313 = vpop.f32.mrb[0].mxu0
    %v3314 = vadd.f32 0.0, %v3313
    %v3315 = vpop.f32.mrb[0].mxu0
    %v3316 = vadd.f32 0.0, %v3315
    %3317 = vmatprep.mubr.f32.mxu0 0.0
    %3318 = vmatmul.mubr.f32.gmra.mrb[0].mxu0 %v3239
    %v3319 = vpop.f32.mrb[0].mxu0
    %v3320 = vadd.f32 0.0, %v3319
    %v3321 = vpop.f32.mrb[0].mxu0
    %v3322 = vadd.f32 0.0, %v3321
    %3323 = vdwg.mxu0
    %v3325 = vsel %vm909, %v3187, 0
    %v3328 = vsel %vm909, %v3188, 0
    %v3331 = vsel %vm722, %v3209, 0
    %v3334 = vsel %vm722, %v3210, 0
    %3336 = vmatprep.subr.mxu0 %v3190
    %3337 = vmatpush1.msra.mxu0 %v3189
    %3338 = vmatprep.subr.mxu0 %v3192
    %3339 = vmatpush1.msra.mxu0 %v3191
    %3340 = vmatprep.subr.mxu0 %v3194
    %3341 = vmatpush1.msra.mxu0 %v3193
    %3342 = vmatprep.subr.mxu0 %v3196
    %3343 = vmatpush1.msra.mxu0 %v3195
    %3344 = vmatprep.subr.mxu0 %v3198
    %3345 = vmatpush1.msra.mxu0 %v3197
    %3346 = vmatprep.subr.mxu0 %v3200
    %3347 = vmatpush1.msra.mxu0 %v3199
    %3348 = vmatprep.subr.mxu0 %v3202
    %3349 = vmatpush1.msra.mxu0 %v3201
    %3350 = vmatprep.subr.mxu0 %v3204
    %3351 = vmatpush1.msra.mxu0 %v3203
    %3352 = vmatprep.subr.mxu0 %v3206
    %3353 = vmatpush1.msra.mxu0 %v3205
    %3354 = vmatprep.subr.mxu0 %v3208
    %3355 = vmatpush1.msra.mxu0 %v3207
    %3356 = vmatprep.subr.mxu0 %v3334
    %3357 = vmatpush1.msra.mxu0 %v3331
    %3358 = vmatprep.subr.mxu0 0.0
    %3359 = vmatpush1.msra.mxu0 0.0
    %3360 = vmatprep.subr.mxu0 0.0
    %3361 = vmatpush1.msra.mxu0 0.0
    %3362 = vmatprep.subr.mxu0 0.0
    %3363 = vmatpush1.msra.mxu0 0.0
    %3364 = vmatprep.subr.mxu0 0.0
    %3365 = vmatpush1.msra.mxu0 0.0
    %3366 = vmatprep.subr.mxu0 0.0
    %3367 = vmatpush1.msra.mxu0 0.0
    %3368 = vmatprep.subr.mxu0 0.0
    %3369 = vmatpush1.msra.mxu0 0.0
    %3370 = vmatprep.subr.mxu0 0.0
    %3371 = vmatpush1.msra.mxu0 0.0
    %3372 = vmatprep.subr.mxu0 0.0
    %3373 = vmatpush1.msra.mxu0 0.0
    %3374 = vmatprep.subr.mxu0 0.0
    %3375 = vmatpush1.msra.mxu0 0.0
    %3376 = vmatprep.subr.mxu0 0.0
    %3377 = vmatpush1.msra.mxu0 0.0
    %3378 = vmatprep.subr.mxu0 0.0
    %3379 = vmatpush1.msra.mxu0 0.0
    %3380 = vmatprep.subr.mxu0 0.0
    %3381 = vmatpush1.msra.mxu0 0.0
    %3382 = vmatprep.subr.mxu0 0.0
    %3383 = vmatpush1.msra.mxu0 0.0
    %3384 = vmatprep.subr.mxu0 0.0
    %3385 = vmatpush1.msra.mxu0 0.0
    %3386 = vmatprep.subr.mxu0 0.0
    %3387 = vmatpush1.msra.mxu0 0.0
    %3388 = vmatprep.subr.mxu0 0.0
    %3389 = vmatpush1.msra.mxu0 0.0
    %3390 = vmatprep.subr.mxu0 0.0
    %3391 = vmatpush1.msra.mxu0 0.0
    %3392 = vmatprep.subr.mxu0 0.0
    %3393 = vmatpush1.msra.mxu0 0.0
    %3394 = vmatprep.subr.mxu0 0.0
    %3395 = vmatpush1.msra.mxu0 0.0
    %3396 = vmatprep.subr.mxu0 0.0
    %3397 = vmatpush1.msra.mxu0 0.0
    %3398 = vmatprep.subr.mxu0 0.0
    %3399 = vmatpush1.msra.mxu0 0.0
    %3400 = vmatprep.mubr.f32.mxu0 0.0
    %3401 = vmatmul.mubr.f32.gmra.mrb[0].mxu0 %v3325
    %v3402 = vpop.f32.mrb[0].mxu0
    %v3403 = vadd.f32 %v3314, %v3402
    %v3404 = vpop.f32.mrb[0].mxu0
    %v3405 = vadd.f32 %v3316, %v3404
    %3406 = vmatprep.mubr.f32.mxu0 0.0
    %3407 = vmatmul.mubr.f32.gmra.mrb[0].mxu0 %v3328
    %v3408 = vpop.f32.mrb[0].mxu0
    %v3409 = vadd.f32 %v3320, %v3408
    %v3410 = vpop.f32.mrb[0].mxu0
    %v3411 = vadd.f32 %v3322, %v3410
    %3412 = vdwg.mxu0
    %v3413 = vld [vmem:[#allocation2 + $0x2] sm:$0xff]
    %v3414 = vld [vmem:[#allocation2 + $0xa] sm:$0x3]
    %v3415 = vld [vmem:[%s1142] sm:$0xff]
    %v3416 = vld [vmem:[%s1142 + $0x8] sm:$0xff]
    %v3417 = vld [vmem:[%s1142 + $0x10] sm:$0xff]
    %v3418 = vld [vmem:[%s1142 + $0x18] sm:$0xff]
    %v3419 = vld [vmem:[%s1142 + $0x20] sm:$0xff]
    %v3420 = vld [vmem:[%s1142 + $0x28] sm:$0xff]
    %v3421 = vld [vmem:[%s1142 + $0x30] sm:$0xff]
    %v3422 = vld [vmem:[%s1142 + $0x38] sm:$0xff]
    %v3423 = vld [vmem:[%s1142 + $0x40] sm:$0xff]
    %v3424 = vld [vmem:[%s1142 + $0x48] sm:$0xff]
    %v3425 = vld [vmem:[%s1142 + $0x50] sm:$0xff]
    %v3426 = vld [vmem:[%s1142 + $0x58] sm:$0xff]
    %v3427 = vld [vmem:[%s1142 + $0x60] sm:$0xff]
    %v3428 = vld [vmem:[%s1142 + $0x68] sm:$0xff]
    %v3429 = vld [vmem:[%s1142 + $0x70] sm:$0xff]
    %v3430 = vld [vmem:[%s1142 + $0x78] sm:$0xff]
    %v3431 = vld [vmem:[%s1142 + $0x80] sm:$0xff]
    %v3432 = vld [vmem:[%s1142 + $0x88] sm:$0xff]
    %v3433 = vld [vmem:[%s1142 + $0x90] sm:$0xff]
    %v3434 = vld [vmem:[%s1142 + $0x98] sm:$0xff]
    %v3435 = vld [vmem:[%s1142 + $0xa0] sm:$0xf]
    %v3436 = vld [vmem:[%s1142 + $0xa8] sm:$0xf]
    %v3438 = vsel %vm909, %v3413, 0
    %v3441 = vsel %vm909, %v3414, 0
    %v3444 = vsel %vm722, %v3435, 0
    %v3447 = vsel %vm722, %v3436, 0
    %3449 = vmatprep.subr.mxu0 %v3416
    %3450 = vmatpush1.msra.mxu0 %v3415
    %3451 = vmatprep.subr.mxu0 %v3418
    %3452 = vmatpush1.msra.mxu0 %v3417
    %3453 = vmatprep.subr.mxu0 %v3420
    %3454 = vmatpush1.msra.mxu0 %v3419
    %3455 = vmatprep.subr.mxu0 %v3422
    %3456 = vmatpush1.msra.mxu0 %v3421
    %3457 = vmatprep.subr.mxu0 %v3424
    %3458 = vmatpush1.msra.mxu0 %v3423
    %3459 = vmatprep.subr.mxu0 %v3426
    %3460 = vmatpush1.msra.mxu0 %v3425
    %3461 = vmatprep.subr.mxu0 %v3428
    %3462 = vmatpush1.msra.mxu0 %v3427
    %3463 = vmatprep.subr.mxu0 %v3430
    %3464 = vmatpush1.msra.mxu0 %v3429
    %3465 = vmatprep.subr.mxu0 %v3432
    %3466 = vmatpush1.msra.mxu0 %v3431
    %3467 = vmatprep.subr.mxu0 %v3434
    %3468 = vmatpush1.msra.mxu0 %v3433
    %3469 = vmatprep.subr.mxu0 %v3447
    %3470 = vmatpush1.msra.mxu0 %v3444
    %3471 = vmatprep.subr.mxu0 0.0
    %3472 = vmatpush1.msra.mxu0 0.0
    %3473 = vmatprep.subr.mxu0 0.0
    %3474 = vmatpush1.msra.mxu0 0.0
    %3475 = vmatprep.subr.mxu0 0.0
    %3476 = vmatpush1.msra.mxu0 0.0
    %3477 = vmatprep.subr.mxu0 0.0
    %3478 = vmatpush1.msra.mxu0 0.0
    %3479 = vmatprep.subr.mxu0 0.0
    %3480 = vmatpush1.msra.mxu0 0.0
    %3481 = vmatprep.subr.mxu0 0.0
    %3482 = vmatpush1.msra.mxu0 0.0
    %3483 = vmatprep.subr.mxu0 0.0
    %3484 = vmatpush1.msra.mxu0 0.0
    %3485 = vmatprep.subr.mxu0 0.0
    %3486 = vmatpush1.msra.mxu0 0.0
    %3487 = vmatprep.subr.mxu0 0.0
    %3488 = vmatpush1.msra.mxu0 0.0
    %3489 = vmatprep.subr.mxu0 0.0
    %3490 = vmatpush1.msra.mxu0 0.0
    %3491 = vmatprep.subr.mxu0 0.0
    %3492 = vmatpush1.msra.mxu0 0.0
    %3493 = vmatprep.subr.mxu0 0.0
    %3494 = vmatpush1.msra.mxu0 0.0
    %3495 = vmatprep.subr.mxu0 0.0
    %3496 = vmatpush1.msra.mxu0 0.0
    %3497 = vmatprep.subr.mxu0 0.0
    %3498 = vmatpush1.msra.mxu0 0.0
    %3499 = vmatprep.subr.mxu0 0.0
    %3500 = vmatpush1.msra.mxu0 0.0
    %3501 = vmatprep.subr.mxu0 0.0
    %3502 = vmatpush1.msra.mxu0 0.0
    %3503 = vmatprep.subr.mxu0 0.0
    %3504 = vmatpush1.msra.mxu0 0.0
    %3505 = vmatprep.subr.mxu0 0.0
    %3506 = vmatpush1.msra.mxu0 0.0
    %3507 = vmatprep.subr.mxu0 0.0
    %3508 = vmatpush1.msra.mxu0 0.0
    %3509 = vmatprep.subr.mxu0 0.0
    %3510 = vmatpush1.msra.mxu0 0.0
    %3511 = vmatprep.subr.mxu0 0.0
    %3512 = vmatpush1.msra.mxu0 0.0
    %3513 = vmatprep.mubr.f32.mxu0 0.0
    %3514 = vmatmul.mubr.f32.gmra.mrb[0].mxu0 %v3438
    %v3515 = vpop.f32.mrb[0].mxu0
    %v3516 = vadd.f32 0.0, %v3515
    %v3517 = vpop.f32.mrb[0].mxu0
    %v3518 = vadd.f32 0.0, %v3517
    %3519 = vmatprep.mubr.f32.mxu0 0.0
    %3520 = vmatmul.mubr.f32.gmra.mrb[0].mxu0 %v3441
    %v3521 = vpop.f32.mrb[0].mxu0
    %v3522 = vadd.f32 0.0, %v3521
    %v3523 = vpop.f32.mrb[0].mxu0
    %v3524 = vadd.f32 0.0, %v3523
    %3525 = vdwg.mxu0
    %v3526 = vadd.f32 %v3403, %v3516
    %v3527 = vadd.f32 %v3405, %v3518
    %v3528 = vadd.f32 %v3409, %v3522
    %v3529 = vadd.f32 %v3411, %v3524
    %v3530 = vld [vmem:[#allocation2 + $0x3] sm:$0xff]
    %v3531 = vld [vmem:[#allocation2 + $0xb] sm:$0x3]
    %v3532 = vld [vmem:[%s1260] sm:$0xff]
    %v3533 = vld [vmem:[%s1260 + $0x8] sm:$0xff]
    %v3534 = vld [vmem:[%s1260 + $0x10] sm:$0xff]
    %v3535 = vld [vmem:[%s1260 + $0x18] sm:$0xff]
    %v3536 = vld [vmem:[%s1260 + $0x20] sm:$0xff]
    %v3537 = vld [vmem:[%s1260 + $0x28] sm:$0xff]
    %v3538 = vld [vmem:[%s1260 + $0x30] sm:$0xff]
    %v3539 = vld [vmem:[%s1260 + $0x38] sm:$0xff]
    %v3540 = vld [vmem:[%s1260 + $0x40] sm:$0xff]
    %v3541 = vld [vmem:[%s1260 + $0x48] sm:$0xff]
    %v3542 = vld [vmem:[%s1260 + $0x50] sm:$0xff]
    %v3543 = vld [vmem:[%s1260 + $0x58] sm:$0xff]
    %v3544 = vld [vmem:[%s1260 + $0x60] sm:$0xff]
    %v3545 = vld [vmem:[%s1260 + $0x68] sm:$0xff]
    %v3546 = vld [vmem:[%s1260 + $0x70] sm:$0xff]
    %v3547 = vld [vmem:[%s1260 + $0x78] sm:$0xff]
    %v3548 = vld [vmem:[%s1260 + $0x80] sm:$0xff]
    %v3549 = vld [vmem:[%s1260 + $0x88] sm:$0xff]
    %v3550 = vld [vmem:[%s1260 + $0x90] sm:$0xff]
    %v3551 = vld [vmem:[%s1260 + $0x98] sm:$0xff]
    %v3552 = vld [vmem:[%s1260 + $0xa0] sm:$0xf]
    %v3553 = vld [vmem:[%s1260 + $0xa8] sm:$0xf]
    %v3555 = vsel %vm909, %v3530, 0
    %v3558 = vsel %vm909, %v3531, 0
    %v3561 = vsel %vm722, %v3552, 0
    %v3564 = vsel %vm722, %v3553, 0
    %3566 = vmatprep.subr.mxu0 %v3533
    %3567 = vmatpush1.msra.mxu0 %v3532
    %3568 = vmatprep.subr.mxu0 %v3535
    %3569 = vmatpush1.msra.mxu0 %v3534
    %3570 = vmatprep.subr.mxu0 %v3537
    %3571 = vmatpush1.msra.mxu0 %v3536
    %3572 = vmatprep.subr.mxu0 %v3539
    %3573 = vmatpush1.msra.mxu0 %v3538
    %3574 = vmatprep.subr.mxu0 %v3541
    %3575 = vmatpush1.msra.mxu0 %v3540
    %3576 = vmatprep.subr.mxu0 %v3543
    %3577 = vmatpush1.msra.mxu0 %v3542
    %3578 = vmatprep.subr.mxu0 %v3545
    %3579 = vmatpush1.msra.mxu0 %v3544
    %3580 = vmatprep.subr.mxu0 %v3547
    %3581 = vmatpush1.msra.mxu0 %v3546
    %3582 = vmatprep.subr.mxu0 %v3549
    %3583 = vmatpush1.msra.mxu0 %v3548
    %3584 = vmatprep.subr.mxu0 %v3551
    %3585 = vmatpush1.msra.mxu0 %v3550
    %3586 = vmatprep.subr.mxu0 %v3564
    %3587 = vmatpush1.msra.mxu0 %v3561
    %3588 = vmatprep.subr.mxu0 0.0
    %3589 = vmatpush1.msra.mxu0 0.0
    %3590 = vmatprep.subr.mxu0 0.0
    %3591 = vmatpush1.msra.mxu0 0.0
    %3592 = vmatprep.subr.mxu0 0.0
    %3593 = vmatpush1.msra.mxu0 0.0
    %3594 = vmatprep.subr.mxu0 0.0
    %3595 = vmatpush1.msra.mxu0 0.0
    %3596 = vmatprep.subr.mxu0 0.0
    %3597 = vmatpush1.msra.mxu0 0.0
    %3598 = vmatprep.subr.mxu0 0.0
    %3599 = vmatpush1.msra.mxu0 0.0
    %3600 = vmatprep.subr.mxu0 0.0
    %3601 = vmatpush1.msra.mxu0 0.0
    %3602 = vmatprep.subr.mxu0 0.0
    %3603 = vmatpush1.msra.mxu0 0.0
    %3604 = vmatprep.subr.mxu0 0.0
    %3605 = vmatpush1.msra.mxu0 0.0
    %3606 = vmatprep.subr.mxu0 0.0
    %3607 = vmatpush1.msra.mxu0 0.0
    %3608 = vmatprep.subr.mxu0 0.0
    %3609 = vmatpush1.msra.mxu0 0.0
    %3610 = vmatprep.subr.mxu0 0.0
    %3611 = vmatpush1.msra.mxu0 0.0
    %3612 = vmatprep.subr.mxu0 0.0
    %3613 = vmatpush1.msra.mxu0 0.0
    %3614 = vmatprep.subr.mxu0 0.0
    %3615 = vmatpush1.msra.mxu0 0.0
    %3616 = vmatprep.subr.mxu0 0.0
    %3617 = vmatpush1.msra.mxu0 0.0
    %3618 = vmatprep.subr.mxu0 0.0
    %3619 = vmatpush1.msra.mxu0 0.0
    %3620 = vmatprep.subr.mxu0 0.0
    %3621 = vmatpush1.msra.mxu0 0.0
    %3622 = vmatprep.subr.mxu0 0.0
    %3623 = vmatpush1.msra.mxu0 0.0
    %3624 = vmatprep.subr.mxu0 0.0
    %3625 = vmatpush1.msra.mxu0 0.0
    %3626 = vmatprep.subr.mxu0 0.0
    %3627 = vmatpush1.msra.mxu0 0.0
    %3628 = vmatprep.subr.mxu0 0.0
    %3629 = vmatpush1.msra.mxu0 0.0
    %3630 = vmatprep.mubr.f32.mxu0 0.0
    %3631 = vmatmul.mubr.f32.gmra.mrb[0].mxu0 %v3555
    %v3632 = vpop.f32.mrb[0].mxu0
    %v3633 = vadd.f32 0.0, %v3632
    %v3634 = vpop.f32.mrb[0].mxu0
    %v3635 = vadd.f32 0.0, %v3634
    %3636 = vmatprep.mubr.f32.mxu0 0.0
    %3637 = vmatmul.mubr.f32.gmra.mrb[0].mxu0 %v3558
    %v3638 = vpop.f32.mrb[0].mxu0
    %v3639 = vadd.f32 0.0, %v3638
    %v3640 = vpop.f32.mrb[0].mxu0
    %v3641 = vadd.f32 0.0, %v3640
    %3642 = vdwg.mxu0
    %v3643 = vadd.f32 %v3526, %v3633
    %v3644 = vadd.f32 %v3527, %v3635
    %v3645 = vadd.f32 %v3528, %v3639
    %v3646 = vadd.f32 %v3529, %v3641
    %v3647 = vld [vmem:[#allocation2 + $0x4] sm:$0xff]
    %v3648 = vld [vmem:[#allocation2 + $0xc] sm:$0x3]
    %v3649 = vld [vmem:[%s1378] sm:$0xff]
    %v3650 = vld [vmem:[%s1378 + $0x8] sm:$0xff]
    %v3651 = vld [vmem:[%s1378 + $0x10] sm:$0xff]
    %v3652 = vld [vmem:[%s1378 + $0x18] sm:$0xff]
    %v3653 = vld [vmem:[%s1378 + $0x20] sm:$0xff]
    %v3654 = vld [vmem:[%s1378 + $0x28] sm:$0xff]
    %v3655 = vld [vmem:[%s1378 + $0x30] sm:$0xff]
    %v3656 = vld [vmem:[%s1378 + $0x38] sm:$0xff]
    %v3657 = vld [vmem:[%s1378 + $0x40] sm:$0xff]
    %v3658 = vld [vmem:[%s1378 + $0x48] sm:$0xff]
    %v3659 = vld [vmem:[%s1378 + $0x50] sm:$0xff]
    %v3660 = vld [vmem:[%s1378 + $0x58] sm:$0xff]
    %v3661 = vld [vmem:[%s1378 + $0x60] sm:$0xff]
    %v3662 = vld [vmem:[%s1378 + $0x68] sm:$0xff]
    %v3663 = vld [vmem:[%s1378 + $0x70] sm:$0xff]
    %v3664 = vld [vmem:[%s1378 + $0x78] sm:$0xff]
    %v3665 = vld [vmem:[%s1378 + $0x80] sm:$0xff]
    %v3666 = vld [vmem:[%s1378 + $0x88] sm:$0xff]
    %v3667 = vld [vmem:[%s1378 + $0x90] sm:$0xff]
    %v3668 = vld [vmem:[%s1378 + $0x98] sm:$0xff]
    %v3669 = vld [vmem:[%s1378 + $0xa0] sm:$0xf]
    %v3670 = vld [vmem:[%s1378 + $0xa8] sm:$0xf]
    %v3672 = vsel %vm909, %v3647, 0
    %v3675 = vsel %vm909, %v3648, 0
    %v3678 = vsel %vm722, %v3669, 0
    %v3681 = vsel %vm722, %v3670, 0
    %3683 = vmatprep.subr.mxu0 %v3650
    %3684 = vmatpush1.msra.mxu0 %v3649
    %3685 = vmatprep.subr.mxu0 %v3652
    %3686 = vmatpush1.msra.mxu0 %v3651
    %3687 = vmatprep.subr.mxu0 %v3654
    %3688 = vmatpush1.msra.mxu0 %v3653
    %3689 = vmatprep.subr.mxu0 %v3656
    %3690 = vmatpush1.msra.mxu0 %v3655
    %3691 = vmatprep.subr.mxu0 %v3658
    %3692 = vmatpush1.msra.mxu0 %v3657
    %3693 = vmatprep.subr.mxu0 %v3660
    %3694 = vmatpush1.msra.mxu0 %v3659
    %3695 = vmatprep.subr.mxu0 %v3662
    %3696 = vmatpush1.msra.mxu0 %v3661
    %3697 = vmatprep.subr.mxu0 %v3664
    %3698 = vmatpush1.msra.mxu0 %v3663
    %3699 = vmatprep.subr.mxu0 %v3666
    %3700 = vmatpush1.msra.mxu0 %v3665
    %3701 = vmatprep.subr.mxu0 %v3668
    %3702 = vmatpush1.msra.mxu0 %v3667
    %3703 = vmatprep.subr.mxu0 %v3681
    %3704 = vmatpush1.msra.mxu0 %v3678
    %3705 = vmatprep.subr.mxu0 0.0
    %3706 = vmatpush1.msra.mxu0 0.0
    %3707 = vmatprep.subr.mxu0 0.0
    %3708 = vmatpush1.msra.mxu0 0.0
    %3709 = vmatprep.subr.mxu0 0.0
    %3710 = vmatpush1.msra.mxu0 0.0
    %3711 = vmatprep.subr.mxu0 0.0
    %3712 = vmatpush1.msra.mxu0 0.0
    %3713 = vmatprep.subr.mxu0 0.0
    %3714 = vmatpush1.msra.mxu0 0.0
    %3715 = vmatprep.subr.mxu0 0.0
    %3716 = vmatpush1.msra.mxu0 0.0
    %3717 = vmatprep.subr.mxu0 0.0
    %3718 = vmatpush1.msra.mxu0 0.0
    %3719 = vmatprep.subr.mxu0 0.0
    %3720 = vmatpush1.msra.mxu0 0.0
    %3721 = vmatprep.subr.mxu0 0.0
    %3722 = vmatpush1.msra.mxu0 0.0
    %3723 = vmatprep.subr.mxu0 0.0
    %3724 = vmatpush1.msra.mxu0 0.0
    %3725 = vmatprep.subr.mxu0 0.0
    %3726 = vmatpush1.msra.mxu0 0.0
    %3727 = vmatprep.subr.mxu0 0.0
    %3728 = vmatpush1.msra.mxu0 0.0
    %3729 = vmatprep.subr.mxu0 0.0
    %3730 = vmatpush1.msra.mxu0 0.0
    %3731 = vmatprep.subr.mxu0 0.0
    %3732 = vmatpush1.msra.mxu0 0.0
    %3733 = vmatprep.subr.mxu0 0.0
    %3734 = vmatpush1.msra.mxu0 0.0
    %3735 = vmatprep.subr.mxu0 0.0
    %3736 = vmatpush1.msra.mxu0 0.0
    %3737 = vmatprep.subr.mxu0 0.0
    %3738 = vmatpush1.msra.mxu0 0.0
    %3739 = vmatprep.subr.mxu0 0.0
    %3740 = vmatpush1.msra.mxu0 0.0
    %3741 = vmatprep.subr.mxu0 0.0
    %3742 = vmatpush1.msra.mxu0 0.0
    %3743 = vmatprep.subr.mxu0 0.0
    %3744 = vmatpush1.msra.mxu0 0.0
    %3745 = vmatprep.subr.mxu0 0.0
    %3746 = vmatpush1.msra.mxu0 0.0
    %3747 = vmatprep.mubr.f32.mxu0 0.0
    %3748 = vmatmul.mubr.f32.gmra.mrb[0].mxu0 %v3672
    %v3749 = vpop.f32.mrb[0].mxu0
    %v3750 = vadd.f32 0.0, %v3749
    %v3751 = vpop.f32.mrb[0].mxu0
    %v3752 = vadd.f32 0.0, %v3751
    %3753 = vmatprep.mubr.f32.mxu0 0.0
    %3754 = vmatmul.mubr.f32.gmra.mrb[0].mxu0 %v3675
    %v3755 = vpop.f32.mrb[0].mxu0
    %v3756 = vadd.f32 0.0, %v3755
    %v3757 = vpop.f32.mrb[0].mxu0
    %v3758 = vadd.f32 0.0, %v3757
    %3759 = vdwg.mxu0
    %v3760 = vadd.f32 %v3643, %v3750
    %v3761 = vadd.f32 %v3644, %v3752
    %v3762 = vadd.f32 %v3645, %v3756
    %v3763 = vadd.f32 %v3646, %v3758
    %v3764 = vld [vmem:[%s6] sm:$0x3]
    %v3766 = vlaneseq
    %v3767 = vshrl.u32 %v3766, 7
    %v3768 = vsub.s32 0, %v3767
    %v3769 = vrot.slane %v3764, %v3768
    %v3770 = vlaneseq
    %v3771 = vshrl.u32 %v3770, 7
    %v3772 = vsub.s32 1, %v3771
    %v3773 = vrot.slane %v3764, %v3772
    %v3776 = vadd.f32 %v3760, %v3769
    %v3777 = vadd.f32 %v3761, %v3773
    %v3778 = vadd.f32 %v3762, %v3769
    %v3779 = vadd.f32 %v3763, %v3773
    %v3780 = vsub.f32 0.0, %v3776
    %v3781 = vsub.f32 0.0, %v3777
    %v3782 = vsub.f32 0.0, %v3778
    %v3783 = vsub.f32 0.0, %v3779
    %v3784 = vmul.f32 %v3780, 1.442695
    %v3785 = vpow.pop %v3784
    %v3786 = vmul.f32 %v3781, 1.442695
    %v3787 = vpow.pop %v3786
    %v3788 = vmul.f32 %v3782, 1.442695
    %v3789 = vpow.pop %v3788
    %v3790 = vmul.f32 %v3783, 1.442695
    %v3791 = vpow.pop %v3790
    %v3792 = vadd.f32 %v3785, 1.0
    %v3793 = vadd.f32 %v3787, 1.0
    %v3794 = vadd.f32 %v3789, 1.0
    %v3795 = vadd.f32 %v3791, 1.0
    %v3796 = vrcp.pop %v3792
    %v3797 = vmul.f32 1.0, %v3796
    %v3798 = vrcp.pop %v3793
    %v3799 = vmul.f32 1.0, %v3798
    %v3800 = vrcp.pop %v3794
    %v3801 = vmul.f32 1.0, %v3800
    %v3802 = vrcp.pop %v3795
    %v3803 = vmul.f32 1.0, %v3802
    %v3804 = vld [vmem:[%s7] sm:$0x1f]
    %v3806 = vsel %vm1535, %v3804, 0
    %v3809 = vsel %vm1539, %v3801, 0
    %v3812 = vsel %vm1539, %v3803, 0
    %3814 = vmatprep.subr.mxu0 %v3799
    %3815 = vmatpush1.msra.mxu0 %v3797
    %3816 = vmatprep.subr.mxu0 %v3812
    %3817 = vmatpush1.msra.mxu0 %v3809
    %3818 = vmatprep.subr.mxu0 0.0
    %3819 = vmatpush1.msra.mxu0 0.0
    %3820 = vmatprep.subr.mxu0 0.0
    %3821 = vmatpush1.msra.mxu0 0.0
    %3822 = vmatprep.subr.mxu0 0.0
    %3823 = vmatpush1.msra.mxu0 0.0
    %3824 = vmatprep.subr.mxu0 0.0
    %3825 = vmatpush1.msra.mxu0 0.0
    %3826 = vmatprep.subr.mxu0 0.0
    %3827 = vmatpush1.msra.mxu0 0.0
    %3828 = vmatprep.subr.mxu0 0.0
    %3829 = vmatpush1.msra.mxu0 0.0
    %3830 = vmatprep.subr.mxu0 0.0
    %3831 = vmatpush1.msra.mxu0 0.0
    %3832 = vmatprep.subr.mxu0 0.0
    %3833 = vmatpush1.msra.mxu0 0.0
    %3834 = vmatprep.subr.mxu0 0.0
    %3835 = vmatpush1.msra.mxu0 0.0
    %3836 = vmatprep.subr.mxu0 0.0
    %3837 = vmatpush1.msra.mxu0 0.0
    %3838 = vmatprep.subr.mxu0 0.0
    %3839 = vmatpush1.msra.mxu0 0.0
    %3840 = vmatprep.subr.mxu0 0.0
    %3841 = vmatpush1.msra.mxu0 0.0
    %3842 = vmatprep.subr.mxu0 0.0
    %3843 = vmatpush1.msra.mxu0 0.0
    %3844 = vmatprep.subr.mxu0 0.0
    %3845 = vmatpush1.msra.mxu0 0.0
    %3846 = vmatprep.subr.mxu0 0.0
    %3847 = vmatpush1.msra.mxu0 0.0
    %3848 = vmatprep.subr.mxu0 0.0
    %3849 = vmatpush1.msra.mxu0 0.0
    %3850 = vmatprep.subr.mxu0 0.0
    %3851 = vmatpush1.msra.mxu0 0.0
    %3852 = vmatprep.subr.mxu0 0.0
    %3853 = vmatpush1.msra.mxu0 0.0
    %3854 = vmatprep.subr.mxu0 0.0
    %3855 = vmatpush1.msra.mxu0 0.0
    %3856 = vmatprep.subr.mxu0 0.0
    %3857 = vmatpush1.msra.mxu0 0.0
    %3858 = vmatprep.subr.mxu0 0.0
    %3859 = vmatpush1.msra.mxu0 0.0
    %3860 = vmatprep.subr.mxu0 0.0
    %3861 = vmatpush1.msra.mxu0 0.0
    %3862 = vmatprep.subr.mxu0 0.0
    %3863 = vmatpush1.msra.mxu0 0.0
    %3864 = vmatprep.subr.mxu0 0.0
    %3865 = vmatpush1.msra.mxu0 0.0
    %3866 = vmatprep.subr.mxu0 0.0
    %3867 = vmatpush1.msra.mxu0 0.0
    %3868 = vmatprep.subr.mxu0 0.0
    %3869 = vmatpush1.msra.mxu0 0.0
    %3870 = vmatprep.subr.mxu0 0.0
    %3871 = vmatpush1.msra.mxu0 0.0
    %3872 = vmatprep.subr.mxu0 0.0
    %3873 = vmatpush1.msra.mxu0 0.0
    %3874 = vmatprep.subr.mxu0 0.0
    %3875 = vmatpush1.msra.mxu0 0.0
    %3876 = vmatprep.subr.mxu0 0.0
    %3877 = vmatpush1.msra.mxu0 0.0
    %3878 = vmatprep.mubr.f32.mxu0 0.0
    %3879 = vmatmul.mubr.f32.gmra.mrb[0].mxu0 %v3806
    %v3880 = vpop.f32.mrb[0].mxu0
    %v3881 = vadd.f32 0.0, %v3880
    %v3882 = vpop.f32.mrb[0].mxu0
    %v3883 = vadd.f32 0.0, %v3882
    %3884 = vdwg.mxu0
    %v3885 = vld [vmem:[%s8] sm:$0xff]
    %v3886 = vld [vmem:[%s8 + $0x8] sm:$0xff]
    %v3887 = vld [vmem:[%s8 + $0x10] sm:$0xff]
    %v3888 = vld [vmem:[%s8 + $0x18] sm:$0xff]
    %v3889 = vld [vmem:[%s8 + $0x20] sm:$0xff]
    %v3890 = vld [vmem:[%s8 + $0x28] sm:$0xff]
    %v3891 = vld [vmem:[%s8 + $0x30] sm:$0xff]
    %v3892 = vld [vmem:[%s8 + $0x38] sm:$0xff]
    %v3893 = vld [vmem:[%s8 + $0x40] sm:$0xff]
    %v3894 = vld [vmem:[%s8 + $0x48] sm:$0xff]
    %v3895 = vld [vmem:[%s8 + $0x50] sm:$0xff]
    %v3896 = vld [vmem:[%s8 + $0x58] sm:$0xff]
    %v3897 = vld [vmem:[%s8 + $0x60] sm:$0xff]
    %v3898 = vld [vmem:[%s8 + $0x68] sm:$0xff]
    %v3899 = vld [vmem:[%s8 + $0x70] sm:$0xff]
    %v3900 = vld [vmem:[%s8 + $0x78] sm:$0xff]
    %v3901 = vld [vmem:[%s8 + $0x80] sm:$0xff]
    %v3902 = vld [vmem:[%s8 + $0x88] sm:$0xff]
    %v3903 = vld [vmem:[%s8 + $0x90] sm:$0xff]
    %v3904 = vld [vmem:[%s8 + $0x98] sm:$0xff]
    %v3906 = vsel %vm76, %v3883, 0
    %3908 = vmatprep.subr.mxu0 0.0
    %3909 = vmatpush1.msra.mxu0 %v3885
    %3910 = vmatprep.subr.mxu0 0.0
    %3911 = vmatpush1.msra.mxu0 %v3886
    %3912 = vmatprep.subr.mxu0 0.0
    %3913 = vmatpush1.msra.mxu0 %v3887
    %3914 = vmatprep.subr.mxu0 0.0
    %3915 = vmatpush1.msra.mxu0 %v3888
    %3916 = vmatprep.subr.mxu0 0.0
    %3917 = vmatpush1.msra.mxu0 %v3889
    %3918 = vmatprep.subr.mxu0 0.0
    %3919 = vmatpush1.msra.mxu0 %v3890
    %3920 = vmatprep.subr.mxu0 0.0
    %3921 = vmatpush1.msra.mxu0 %v3891
    %3922 = vmatprep.subr.mxu0 0.0
    %3923 = vmatpush1.msra.mxu0 %v3892
    %3924 = vmatprep.subr.mxu0 0.0
    %3925 = vmatpush1.msra.mxu0 %v3893
    %3926 = vmatprep.subr.mxu0 0.0
    %3927 = vmatpush1.msra.mxu0 %v3894
    %3928 = vmatprep.subr.mxu0 0.0
    %3929 = vmatpush1.msra.mxu0 %v3895
    %3930 = vmatprep.subr.mxu0 0.0
    %3931 = vmatpush1.msra.mxu0 %v3896
    %3932 = vmatprep.subr.mxu0 0.0
    %3933 = vmatpush1.msra.mxu0 %v3897
    %3934 = vmatprep.subr.mxu0 0.0
    %3935 = vmatpush1.msra.mxu0 %v3898
    %3936 = vmatprep.subr.mxu0 0.0
    %3937 = vmatpush1.msra.mxu0 %v3899
    %3938 = vmatprep.subr.mxu0 0.0
    %3939 = vmatpush1.msra.mxu0 %v3900
    %3940 = vmatprep.subr.mxu0 0.0
    %3941 = vmatpush1.msra.mxu0 %v3901
    %3942 = vmatprep.subr.mxu0 0.0
    %3943 = vmatpush1.msra.mxu0 %v3902
    %3944 = vmatprep.subr.mxu0 0.0
    %3945 = vmatpush1.msra.mxu0 %v3903
    %3946 = vmatprep.subr.mxu0 0.0
    %3947 = vmatpush1.msra.mxu0 %v3904
    %3948 = vmatprep.subr.mxu0 0.0
    %3949 = vmatpush1.msra.mxu0 0.0
    %3950 = vmatprep.subr.mxu0 0.0
    %3951 = vmatpush1.msra.mxu0 0.0
    %3952 = vmatprep.subr.mxu0 0.0
    %3953 = vmatpush1.msra.mxu0 0.0
    %3954 = vmatprep.subr.mxu0 0.0
    %3955 = vmatpush1.msra.mxu0 0.0
    %3956 = vmatprep.subr.mxu0 0.0
    %3957 = vmatpush1.msra.mxu0 0.0
    %3958 = vmatprep.subr.mxu0 0.0
    %3959 = vmatpush1.msra.mxu0 0.0
    %3960 = vmatprep.subr.mxu0 0.0
    %3961 = vmatpush1.msra.mxu0 0.0
    %3962 = vmatprep.subr.mxu0 0.0
    %3963 = vmatpush1.msra.mxu0 0.0
    %3964 = vmatprep.subr.mxu0 0.0
    %3965 = vmatpush1.msra.mxu0 0.0
    %3966 = vmatprep.subr.mxu0 0.0
    %3967 = vmatpush1.msra.mxu0 0.0
    %3968 = vmatprep.subr.mxu0 0.0
    %3969 = vmatpush1.msra.mxu0 0.0
    %3970 = vmatprep.subr.mxu0 0.0
    %3971 = vmatpush1.msra.mxu0 0.0
    %3972 = vmatprep.mubr.f32.mxu0 %v3906
    %3973 = vmatmul.mubr.f32.gmra.mrb[0].mxu0 %v3881
    %v3974 = vpop.f32.mrb[0].mxu0
    %v3975 = vadd.f32 0.0, %v3974
    %v3976 = vpop.f32.mrb[0].mxu0
    %3977 = vdwg.mxu0
    %3978 = vst.msk [vmem:[#allocation3] sm:$0x1f] %vm1710, %v3975
    %v3979 = vld [vmem:[#allocation3] sm:$0x1]
    %v3980 = vld [vmem:[%s9] sm:$0xff]
    %v3981 = vld [vmem:[%s9 + $0x8] sm:$0xff]
    %v3982 = vld [vmem:[%s9 + $0x10] sm:$0xff]
    %v3983 = vld [vmem:[%s9 + $0x18] sm:$0xff]
    %v3984 = vld [vmem:[%s9 + $0x20] sm:$0xff]
    %v3985 = vld [vmem:[%s9 + $0x28] sm:$0xff]
    %v3986 = vld [vmem:[%s9 + $0x30] sm:$0xff]
    %v3987 = vld [vmem:[%s9 + $0x38] sm:$0xff]
    %v3988 = vld [vmem:[%s9 + $0x40] sm:$0xff]
    %v3989 = vld [vmem:[%s9 + $0x48] sm:$0xff]
    %v3990 = vld [vmem:[#allocation3 + $0x1] sm:$0x1]
    %v3991 = vld [vmem:[%s1724] sm:$0xff]
    %v3992 = vld [vmem:[%s1724 + $0x8] sm:$0xff]
    %v3993 = vld [vmem:[%s1724 + $0x10] sm:$0xff]
    %v3994 = vld [vmem:[%s1724 + $0x18] sm:$0xff]
    %v3995 = vld [vmem:[%s1724 + $0x20] sm:$0xff]
    %v3996 = vld [vmem:[%s1724 + $0x28] sm:$0xff]
    %v3997 = vld [vmem:[%s1724 + $0x30] sm:$0xff]
    %v3998 = vld [vmem:[%s1724 + $0x38] sm:$0xff]
    %v3999 = vld [vmem:[%s1724 + $0x40] sm:$0xff]
    %v4000 = vld [vmem:[%s1724 + $0x48] sm:$0xff]
    %v4002 = vsel %vm1735, %v3990, 0
    %4004 = vmatprep.subr.mxu0 0.0
    %4005 = vmatpush1.msra.mxu0 %v3991
    %4006 = vmatprep.subr.mxu0 0.0
    %4007 = vmatpush1.msra.mxu0 %v3992
    %4008 = vmatprep.subr.mxu0 0.0
    %4009 = vmatpush1.msra.mxu0 %v3993
    %4010 = vmatprep.subr.mxu0 0.0
    %4011 = vmatpush1.msra.mxu0 %v3994
    %4012 = vmatprep.subr.mxu0 0.0
    %4013 = vmatpush1.msra.mxu0 %v3995
    %4014 = vmatprep.subr.mxu0 0.0
    %4015 = vmatpush1.msra.mxu0 %v3996
    %4016 = vmatprep.subr.mxu0 0.0
    %4017 = vmatpush1.msra.mxu0 %v3997
    %4018 = vmatprep.subr.mxu0 0.0
    %4019 = vmatpush1.msra.mxu0 %v3998
    %4020 = vmatprep.subr.mxu0 0.0
    %4021 = vmatpush1.msra.mxu0 %v3999
    %4022 = vmatprep.subr.mxu0 0.0
    %4023 = vmatpush1.msra.mxu0 %v4000
    %4024 = vmatprep.subr.mxu0 0.0
    %4025 = vmatpush1.msra.mxu0 0.0
    %4026 = vmatprep.subr.mxu0 0.0
    %4027 = vmatpush1.msra.mxu0 0.0
    %4028 = vmatprep.subr.mxu0 0.0
    %4029 = vmatpush1.msra.mxu0 0.0
    %4030 = vmatprep.subr.mxu0 0.0
    %4031 = vmatpush1.msra.mxu0 0.0
    %4032 = vmatprep.subr.mxu0 0.0
    %4033 = vmatpush1.msra.mxu0 0.0
    %4034 = vmatprep.subr.mxu0 0.0
    %4035 = vmatpush1.msra.mxu0 0.0
    %4036 = vmatprep.subr.mxu0 0.0
    %4037 = vmatpush1.msra.mxu0 0.0
    %4038 = vmatprep.subr.mxu0 0.0
    %4039 = vmatpush1.msra.mxu0 0.0
    %4040 = vmatprep.subr.mxu0 0.0
    %4041 = vmatpush1.msra.mxu0 0.0
    %4042 = vmatprep.subr.mxu0 0.0
    %4043 = vmatpush1.msra.mxu0 0.0
    %4044 = vmatprep.subr.mxu0 0.0
    %4045 = vmatpush1.msra.mxu0 0.0
    %4046 = vmatprep.subr.mxu0 0.0
    %4047 = vmatpush1.msra.mxu0 0.0
    %4048 = vmatprep.subr.mxu0 0.0
    %4049 = vmatpush1.msra.mxu0 0.0
    %4050 = vmatprep.subr.mxu0 0.0
    %4051 = vmatpush1.msra.mxu0 0.0
    %4052 = vmatprep.subr.mxu0 0.0
    %4053 = vmatpush1.msra.mxu0 0.0
    %4054 = vmatprep.subr.mxu0 0.0
    %4055 = vmatpush1.msra.mxu0 0.0
    %4056 = vmatprep.subr.mxu0 0.0
    %4057 = vmatpush1.msra.mxu0 0.0
    %4058 = vmatprep.subr.mxu0 0.0
    %4059 = vmatpush1.msra.mxu0 0.0
    %4060 = vmatprep.subr.mxu0 0.0
    %4061 = vmatpush1.msra.mxu0 0.0
    %4062 = vmatprep.subr.mxu0 0.0
    %4063 = vmatpush1.msra.mxu0 0.0
    %4064 = vmatprep.subr.mxu0 0.0
    %4065 = vmatpush1.msra.mxu0 0.0
    %4066 = vmatprep.subr.mxu0 0.0
    %4067 = vmatpush1.msra.mxu0 0.0
    %4068 = vmatprep.mubr.f32.mxu0 0.0
    %4069 = vmatmul.mubr.f32.gmra.mrb[0].mxu0 %v4002
    %v4070 = vpop.f32.mrb[0].mxu0
    %v4071 = vadd.f32 0.0, %v4070
    %v4072 = vpop.f32.mrb[0].mxu0
    %4073 = vdwg.mxu0
    %v4075 = vsel %vm1735, %v3979, 0
    %4077 = vmatprep.subr.mxu0 0.0
    %4078 = vmatpush1.msra.mxu0 %v3980
    %4079 = vmatprep.subr.mxu0 0.0
    %4080 = vmatpush1.msra.mxu0 %v3981
    %4081 = vmatprep.subr.mxu0 0.0
    %4082 = vmatpush1.msra.mxu0 %v3982
    %4083 = vmatprep.subr.mxu0 0.0
    %4084 = vmatpush1.msra.mxu0 %v3983
    %4085 = vmatprep.subr.mxu0 0.0
    %4086 = vmatpush1.msra.mxu0 %v3984
    %4087 = vmatprep.subr.mxu0 0.0
    %4088 = vmatpush1.msra.mxu0 %v3985
    %4089 = vmatprep.subr.mxu0 0.0
    %4090 = vmatpush1.msra.mxu0 %v3986
    %4091 = vmatprep.subr.mxu0 0.0
    %4092 = vmatpush1.msra.mxu0 %v3987
    %4093 = vmatprep.subr.mxu0 0.0
    %4094 = vmatpush1.msra.mxu0 %v3988
    %4095 = vmatprep.subr.mxu0 0.0
    %4096 = vmatpush1.msra.mxu0 %v3989
    %4097 = vmatprep.subr.mxu0 0.0
    %4098 = vmatpush1.msra.mxu0 0.0
    %4099 = vmatprep.subr.mxu0 0.0
    %4100 = vmatpush1.msra.mxu0 0.0
    %4101 = vmatprep.subr.mxu0 0.0
    %4102 = vmatpush1.msra.mxu0 0.0
    %4103 = vmatprep.subr.mxu0 0.0
    %4104 = vmatpush1.msra.mxu0 0.0
    %4105 = vmatprep.subr.mxu0 0.0
    %4106 = vmatpush1.msra.mxu0 0.0
    %4107 = vmatprep.subr.mxu0 0.0
    %4108 = vmatpush1.msra.mxu0 0.0
    %4109 = vmatprep.subr.mxu0 0.0
    %4110 = vmatpush1.msra.mxu0 0.0
    %4111 = vmatprep.subr.mxu0 0.0
    %4112 = vmatpush1.msra.mxu0 0.0
    %4113 = vmatprep.subr.mxu0 0.0
    %4114 = vmatpush1.msra.mxu0 0.0
    %4115 = vmatprep.subr.mxu0 0.0
    %4116 = vmatpush1.msra.mxu0 0.0
    %4117 = vmatprep.subr.mxu0 0.0
    %4118 = vmatpush1.msra.mxu0 0.0
    %4119 = vmatprep.subr.mxu0 0.0
    %4120 = vmatpush1.msra.mxu0 0.0
    %4121 = vmatprep.subr.mxu0 0.0
    %4122 = vmatpush1.msra.mxu0 0.0
    %4123 = vmatprep.subr.mxu0 0.0
    %4124 = vmatpush1.msra.mxu0 0.0
    %4125 = vmatprep.subr.mxu0 0.0
    %4126 = vmatpush1.msra.mxu0 0.0
    %4127 = vmatprep.subr.mxu0 0.0
    %4128 = vmatpush1.msra.mxu0 0.0
    %4129 = vmatprep.subr.mxu0 0.0
    %4130 = vmatpush1.msra.mxu0 0.0
    %4131 = vmatprep.subr.mxu0 0.0
    %4132 = vmatpush1.msra.mxu0 0.0
    %4133 = vmatprep.subr.mxu0 0.0
    %4134 = vmatpush1.msra.mxu0 0.0
    %4135 = vmatprep.subr.mxu0 0.0
    %4136 = vmatpush1.msra.mxu0 0.0
    %4137 = vmatprep.subr.mxu0 0.0
    %4138 = vmatpush1.msra.mxu0 0.0
    %4139 = vmatprep.subr.mxu0 0.0
    %4140 = vmatpush1.msra.mxu0 0.0
    %4141 = vmatprep.mubr.f32.mxu0 0.0
    %4142 = vmatmul.mubr.f32.gmra.mrb[0].mxu0 %v4075
    %v4143 = vpop.f32.mrb[0].mxu0
    %v4144 = vadd.f32 %v4071, %v4143
    %v4145 = vpop.f32.mrb[0].mxu0
    %4146 = vdwg.mxu0
    %v4147 = vld [vmem:[#allocation3 + $0x2] sm:$0x1]
    %v4148 = vld [vmem:[%s1883] sm:$0xff]
    %v4149 = vld [vmem:[%s1883 + $0x8] sm:$0xff]
    %v4150 = vld [vmem:[%s1883 + $0x10] sm:$0xff]
    %v4151 = vld [vmem:[%s1883 + $0x18] sm:$0xff]
    %v4152 = vld [vmem:[%s1883 + $0x20] sm:$0xff]
    %v4153 = vld [vmem:[%s1883 + $0x28] sm:$0xff]
    %v4154 = vld [vmem:[%s1883 + $0x30] sm:$0xff]
    %v4155 = vld [vmem:[%s1883 + $0x38] sm:$0xff]
    %v4156 = vld [vmem:[%s1883 + $0x40] sm:$0xff]
    %v4157 = vld [vmem:[%s1883 + $0x48] sm:$0xff]
    %v4159 = vsel %vm1735, %v4147, 0
    %4161 = vmatprep.subr.mxu0 0.0
    %4162 = vmatpush1.msra.mxu0 %v4148
    %4163 = vmatprep.subr.mxu0 0.0
    %4164 = vmatpush1.msra.mxu0 %v4149
    %4165 = vmatprep.subr.mxu0 0.0
    %4166 = vmatpush1.msra.mxu0 %v4150
    %4167 = vmatprep.subr.mxu0 0.0
    %4168 = vmatpush1.msra.mxu0 %v4151
    %4169 = vmatprep.subr.mxu0 0.0
    %4170 = vmatpush1.msra.mxu0 %v4152
    %4171 = vmatprep.subr.mxu0 0.0
    %4172 = vmatpush1.msra.mxu0 %v4153
    %4173 = vmatprep.subr.mxu0 0.0
    %4174 = vmatpush1.msra.mxu0 %v4154
    %4175 = vmatprep.subr.mxu0 0.0
    %4176 = vmatpush1.msra.mxu0 %v4155
    %4177 = vmatprep.subr.mxu0 0.0
    %4178 = vmatpush1.msra.mxu0 %v4156
    %4179 = vmatprep.subr.mxu0 0.0
    %4180 = vmatpush1.msra.mxu0 %v4157
    %4181 = vmatprep.subr.mxu0 0.0
    %4182 = vmatpush1.msra.mxu0 0.0
    %4183 = vmatprep.subr.mxu0 0.0
    %4184 = vmatpush1.msra.mxu0 0.0
    %4185 = vmatprep.subr.mxu0 0.0
    %4186 = vmatpush1.msra.mxu0 0.0
    %4187 = vmatprep.subr.mxu0 0.0
    %4188 = vmatpush1.msra.mxu0 0.0
    %4189 = vmatprep.subr.mxu0 0.0
    %4190 = vmatpush1.msra.mxu0 0.0
    %4191 = vmatprep.subr.mxu0 0.0
    %4192 = vmatpush1.msra.mxu0 0.0
    %4193 = vmatprep.subr.mxu0 0.0
    %4194 = vmatpush1.msra.mxu0 0.0
    %4195 = vmatprep.subr.mxu0 0.0
    %4196 = vmatpush1.msra.mxu0 0.0
    %4197 = vmatprep.subr.mxu0 0.0
    %4198 = vmatpush1.msra.mxu0 0.0
    %4199 = vmatprep.subr.mxu0 0.0
    %4200 = vmatpush1.msra.mxu0 0.0
    %4201 = vmatprep.subr.mxu0 0.0
    %4202 = vmatpush1.msra.mxu0 0.0
    %4203 = vmatprep.subr.mxu0 0.0
    %4204 = vmatpush1.msra.mxu0 0.0
    %4205 = vmatprep.subr.mxu0 0.0
    %4206 = vmatpush1.msra.mxu0 0.0
    %4207 = vmatprep.subr.mxu0 0.0
    %4208 = vmatpush1.msra.mxu0 0.0
    %4209 = vmatprep.subr.mxu0 0.0
    %4210 = vmatpush1.msra.mxu0 0.0
    %4211 = vmatprep.subr.mxu0 0.0
    %4212 = vmatpush1.msra.mxu0 0.0
    %4213 = vmatprep.subr.mxu0 0.0
    %4214 = vmatpush1.msra.mxu0 0.0
    %4215 = vmatprep.subr.mxu0 0.0
    %4216 = vmatpush1.msra.mxu0 0.0
    %4217 = vmatprep.subr.mxu0 0.0
    %4218 = vmatpush1.msra.mxu0 0.0
    %4219 = vmatprep.subr.mxu0 0.0
    %4220 = vmatpush1.msra.mxu0 0.0
    %4221 = vmatprep.subr.mxu0 0.0
    %4222 = vmatpush1.msra.mxu0 0.0
    %4223 = vmatprep.subr.mxu0 0.0
    %4224 = vmatpush1.msra.mxu0 0.0
    %4225 = vmatprep.mubr.f32.mxu0 0.0
    %4226 = vmatmul.mubr.f32.gmra.mrb[0].mxu0 %v4159
    %v4227 = vpop.f32.mrb[0].mxu0
    %v4228 = vadd.f32 0.0, %v4227
    %v4229 = vpop.f32.mrb[0].mxu0
    %4230 = vdwg.mxu0
    %v4231 = vadd.f32 %v4144, %v4228
    %v4232 = vld [vmem:[#allocation3 + $0x3] sm:$0x1]
    %v4233 = vld [vmem:[%s1969] sm:$0xff]
    %v4234 = vld [vmem:[%s1969 + $0x8] sm:$0xff]
    %v4235 = vld [vmem:[%s1969 + $0x10] sm:$0xff]
    %v4236 = vld [vmem:[%s1969 + $0x18] sm:$0xff]
    %v4237 = vld [vmem:[%s1969 + $0x20] sm:$0xff]
    %v4238 = vld [vmem:[%s1969 + $0x28] sm:$0xff]
    %v4239 = vld [vmem:[%s1969 + $0x30] sm:$0xff]
    %v4240 = vld [vmem:[%s1969 + $0x38] sm:$0xff]
    %v4241 = vld [vmem:[%s1969 + $0x40] sm:$0xff]
    %v4242 = vld [vmem:[%s1969 + $0x48] sm:$0xff]
    %v4244 = vsel %vm1735, %v4232, 0
    %4246 = vmatprep.subr.mxu0 0.0
    %4247 = vmatpush1.msra.mxu0 %v4233
    %4248 = vmatprep.subr.mxu0 0.0
    %4249 = vmatpush1.msra.mxu0 %v4234
    %4250 = vmatprep.subr.mxu0 0.0
    %4251 = vmatpush1.msra.mxu0 %v4235
    %4252 = vmatprep.subr.mxu0 0.0
    %4253 = vmatpush1.msra.mxu0 %v4236
    %4254 = vmatprep.subr.mxu0 0.0
    %4255 = vmatpush1.msra.mxu0 %v4237
    %4256 = vmatprep.subr.mxu0 0.0
    %4257 = vmatpush1.msra.mxu0 %v4238
    %4258 = vmatprep.subr.mxu0 0.0
    %4259 = vmatpush1.msra.mxu0 %v4239
    %4260 = vmatprep.subr.mxu0 0.0
    %4261 = vmatpush1.msra.mxu0 %v4240
    %4262 = vmatprep.subr.mxu0 0.0
    %4263 = vmatpush1.msra.mxu0 %v4241
    %4264 = vmatprep.subr.mxu0 0.0
    %4265 = vmatpush1.msra.mxu0 %v4242
    %4266 = vmatprep.subr.mxu0 0.0
    %4267 = vmatpush1.msra.mxu0 0.0
    %4268 = vmatprep.subr.mxu0 0.0
    %4269 = vmatpush1.msra.mxu0 0.0
    %4270 = vmatprep.subr.mxu0 0.0
    %4271 = vmatpush1.msra.mxu0 0.0
    %4272 = vmatprep.subr.mxu0 0.0
    %4273 = vmatpush1.msra.mxu0 0.0
    %4274 = vmatprep.subr.mxu0 0.0
    %4275 = vmatpush1.msra.mxu0 0.0
    %4276 = vmatprep.subr.mxu0 0.0
    %4277 = vmatpush1.msra.mxu0 0.0
    %4278 = vmatprep.subr.mxu0 0.0
    %4279 = vmatpush1.msra.mxu0 0.0
    %4280 = vmatprep.subr.mxu0 0.0
    %4281 = vmatpush1.msra.mxu0 0.0
    %4282 = vmatprep.subr.mxu0 0.0
    %4283 = vmatpush1.msra.mxu0 0.0
    %4284 = vmatprep.subr.mxu0 0.0
    %4285 = vmatpush1.msra.mxu0 0.0
    %4286 = vmatprep.subr.mxu0 0.0
    %4287 = vmatpush1.msra.mxu0 0.0
    %4288 = vmatprep.subr.mxu0 0.0
    %4289 = vmatpush1.msra.mxu0 0.0
    %4290 = vmatprep.subr.mxu0 0.0
    %4291 = vmatpush1.msra.mxu0 0.0
    %4292 = vmatprep.subr.mxu0 0.0
    %4293 = vmatpush1.msra.mxu0 0.0
    %4294 = vmatprep.subr.mxu0 0.0
    %4295 = vmatpush1.msra.mxu0 0.0
    %4296 = vmatprep.subr.mxu0 0.0
    %4297 = vmatpush1.msra.mxu0 0.0
    %4298 = vmatprep.subr.mxu0 0.0
    %4299 = vmatpush1.msra.mxu0 0.0
    %4300 = vmatprep.subr.mxu0 0.0
    %4301 = vmatpush1.msra.mxu0 0.0
    %4302 = vmatprep.subr.mxu0 0.0
    %4303 = vmatpush1.msra.mxu0 0.0
    %4304 = vmatprep.subr.mxu0 0.0
    %4305 = vmatpush1.msra.mxu0 0.0
    %4306 = vmatprep.subr.mxu0 0.0
    %4307 = vmatpush1.msra.mxu0 0.0
    %4308 = vmatprep.subr.mxu0 0.0
    %4309 = vmatpush1.msra.mxu0 0.0
    %4310 = vmatprep.mubr.f32.mxu0 0.0
    %4311 = vmatmul.mubr.f32.gmra.mrb[0].mxu0 %v4244
    %v4312 = vpop.f32.mrb[0].mxu0
    %v4313 = vadd.f32 0.0, %v4312
    %v4314 = vpop.f32.mrb[0].mxu0
    %4315 = vdwg.mxu0
    %v4316 = vadd.f32 %v4231, %v4313
    %v4317 = vld [vmem:[#allocation3 + $0x4] sm:$0x1]
    %v4318 = vld [vmem:[%s2055] sm:$0xff]
    %v4319 = vld [vmem:[%s2055 + $0x8] sm:$0xff]
    %v4320 = vld [vmem:[%s2055 + $0x10] sm:$0xff]
    %v4321 = vld [vmem:[%s2055 + $0x18] sm:$0xff]
    %v4322 = vld [vmem:[%s2055 + $0x20] sm:$0xff]
    %v4323 = vld [vmem:[%s2055 + $0x28] sm:$0xff]
    %v4324 = vld [vmem:[%s2055 + $0x30] sm:$0xff]
    %v4325 = vld [vmem:[%s2055 + $0x38] sm:$0xff]
    %v4326 = vld [vmem:[%s2055 + $0x40] sm:$0xff]
    %v4327 = vld [vmem:[%s2055 + $0x48] sm:$0xff]
    %v4329 = vsel %vm1735, %v4317, 0
    %4331 = vmatprep.subr.mxu0 0.0
    %4332 = vmatpush1.msra.mxu0 %v4318
    %4333 = vmatprep.subr.mxu0 0.0
    %4334 = vmatpush1.msra.mxu0 %v4319
    %4335 = vmatprep.subr.mxu0 0.0
    %4336 = vmatpush1.msra.mxu0 %v4320
    %4337 = vmatprep.subr.mxu0 0.0
    %4338 = vmatpush1.msra.mxu0 %v4321
    %4339 = vmatprep.subr.mxu0 0.0
    %4340 = vmatpush1.msra.mxu0 %v4322
    %4341 = vmatprep.subr.mxu0 0.0
    %4342 = vmatpush1.msra.mxu0 %v4323
    %4343 = vmatprep.subr.mxu0 0.0
    %4344 = vmatpush1.msra.mxu0 %v4324
    %4345 = vmatprep.subr.mxu0 0.0
    %4346 = vmatpush1.msra.mxu0 %v4325
    %4347 = vmatprep.subr.mxu0 0.0
    %4348 = vmatpush1.msra.mxu0 %v4326
    %4349 = vmatprep.subr.mxu0 0.0
    %4350 = vmatpush1.msra.mxu0 %v4327
    %4351 = vmatprep.subr.mxu0 0.0
    %4352 = vmatpush1.msra.mxu0 0.0
    %4353 = vmatprep.subr.mxu0 0.0
    %4354 = vmatpush1.msra.mxu0 0.0
    %4355 = vmatprep.subr.mxu0 0.0
    %4356 = vmatpush1.msra.mxu0 0.0
    %4357 = vmatprep.subr.mxu0 0.0
    %4358 = vmatpush1.msra.mxu0 0.0
    %4359 = vmatprep.subr.mxu0 0.0
    %4360 = vmatpush1.msra.mxu0 0.0
    %4361 = vmatprep.subr.mxu0 0.0
    %4362 = vmatpush1.msra.mxu0 0.0
    %4363 = vmatprep.subr.mxu0 0.0
    %4364 = vmatpush1.msra.mxu0 0.0
    %4365 = vmatprep.subr.mxu0 0.0
    %4366 = vmatpush1.msra.mxu0 0.0
    %4367 = vmatprep.subr.mxu0 0.0
    %4368 = vmatpush1.msra.mxu0 0.0
    %4369 = vmatprep.subr.mxu0 0.0
    %4370 = vmatpush1.msra.mxu0 0.0
    %4371 = vmatprep.subr.mxu0 0.0
    %4372 = vmatpush1.msra.mxu0 0.0
    %4373 = vmatprep.subr.mxu0 0.0
    %4374 = vmatpush1.msra.mxu0 0.0
    %4375 = vmatprep.subr.mxu0 0.0
    %4376 = vmatpush1.msra.mxu0 0.0
    %4377 = vmatprep.subr.mxu0 0.0
    %4378 = vmatpush1.msra.mxu0 0.0
    %4379 = vmatprep.subr.mxu0 0.0
    %4380 = vmatpush1.msra.mxu0 0.0
    %4381 = vmatprep.subr.mxu0 0.0
    %4382 = vmatpush1.msra.mxu0 0.0
    %4383 = vmatprep.subr.mxu0 0.0
    %4384 = vmatpush1.msra.mxu0 0.0
    %4385 = vmatprep.subr.mxu0 0.0
    %4386 = vmatpush1.msra.mxu0 0.0
    %4387 = vmatprep.subr.mxu0 0.0
    %4388 = vmatpush1.msra.mxu0 0.0
    %4389 = vmatprep.subr.mxu0 0.0
    %4390 = vmatpush1.msra.mxu0 0.0
    %4391 = vmatprep.subr.mxu0 0.0
    %4392 = vmatpush1.msra.mxu0 0.0
    %4393 = vmatprep.subr.mxu0 0.0
    %4394 = vmatpush1.msra.mxu0 0.0
    %4395 = vmatprep.mubr.f32.mxu0 0.0
    %4396 = vmatmul.mubr.f32.gmra.mrb[0].mxu0 %v4329
    %v4397 = vpop.f32.mrb[0].mxu0
    %v4398 = vadd.f32 0.0, %v4397
    %v4399 = vpop.f32.mrb[0].mxu0
    %4400 = vdwg.mxu0
    %v4401 = vadd.f32 %v4316, %v4398
    %v4402 = vld [vmem:[%s10] sm:$0x1]
    %v4403 = vadd.f32 %v4401, %v4402
    %v4404 = vsub.f32 0.0, %v4403
    %v4405 = vmul.f32 %v4404, 1.442695
    %v4406 = vpow.pop %v4405
    %v4407 = vadd.f32 %v4406, 1.0
    %v4408 = vrcp.pop %v4407
    %v4409 = vmul.f32 1.0, %v4408
    %v4410 = vld [vmem:[%s11] sm:$0xff]
    %v4411 = vld [vmem:[%s11 + $0x8] sm:$0xff]
    %v4412 = vld [vmem:[%s11 + $0x10] sm:$0xff]
    %v4413 = vld [vmem:[%s11 + $0x18] sm:$0xff]
    %v4414 = vld [vmem:[%s11 + $0x20] sm:$0xff]
    %v4415 = vld [vmem:[%s11 + $0x28] sm:$0xff]
    %v4416 = vld [vmem:[%s11 + $0x30] sm:$0xff]
    %v4417 = vld [vmem:[%s11 + $0x38] sm:$0xff]
    %v4418 = vld [vmem:[%s11 + $0x40] sm:$0xff]
    %v4419 = vld [vmem:[%s11 + $0x48] sm:$0xff]
    %v4420 = vld [vmem:[%s11 + $0x50] sm:$0xff]
    %v4421 = vld [vmem:[%s11 + $0x58] sm:$0xff]
    %v4422 = vld [vmem:[%s11 + $0x60] sm:$0xff]
    %v4423 = vld [vmem:[%s11 + $0x68] sm:$0xff]
    %v4424 = vld [vmem:[%s11 + $0x70] sm:$0xff]
    %v4425 = vld [vmem:[%s12] sm:$0x1]
    %v4427 = vsel %vm2164, %v4409, 0
    %4429 = vmatprep.subr.mxu0 0.0
    %4430 = vmatpush1.msra.mxu0 %v4410
    %4431 = vmatprep.subr.mxu0 0.0
    %4432 = vmatpush1.msra.mxu0 %v4411
    %4433 = vmatprep.subr.mxu0 0.0
    %4434 = vmatpush1.msra.mxu0 %v4412
    %4435 = vmatprep.subr.mxu0 0.0
    %4436 = vmatpush1.msra.mxu0 %v4413
    %4437 = vmatprep.subr.mxu0 0.0
    %4438 = vmatpush1.msra.mxu0 %v4414
    %4439 = vmatprep.subr.mxu0 0.0
    %4440 = vmatpush1.msra.mxu0 %v4415
    %4441 = vmatprep.subr.mxu0 0.0
    %4442 = vmatpush1.msra.mxu0 %v4416
    %4443 = vmatprep.subr.mxu0 0.0
    %4444 = vmatpush1.msra.mxu0 %v4417
    %4445 = vmatprep.subr.mxu0 0.0
    %4446 = vmatpush1.msra.mxu0 %v4418
    %4447 = vmatprep.subr.mxu0 0.0
    %4448 = vmatpush1.msra.mxu0 %v4419
    %4449 = vmatprep.subr.mxu0 0.0
    %4450 = vmatpush1.msra.mxu0 %v4420
    %4451 = vmatprep.subr.mxu0 0.0
    %4452 = vmatpush1.msra.mxu0 %v4421
    %4453 = vmatprep.subr.mxu0 0.0
    %4454 = vmatpush1.msra.mxu0 %v4422
    %4455 = vmatprep.subr.mxu0 0.0
    %4456 = vmatpush1.msra.mxu0 %v4423
    %4457 = vmatprep.subr.mxu0 0.0
    %4458 = vmatpush1.msra.mxu0 %v4424
    %4459 = vmatprep.subr.mxu0 0.0
    %4460 = vmatpush1.msra.mxu0 0.0
    %4461 = vmatprep.subr.mxu0 0.0
    %4462 = vmatpush1.msra.mxu0 0.0
    %4463 = vmatprep.subr.mxu0 0.0
    %4464 = vmatpush1.msra.mxu0 0.0
    %4465 = vmatprep.subr.mxu0 0.0
    %4466 = vmatpush1.msra.mxu0 0.0
    %4467 = vmatprep.subr.mxu0 0.0
    %4468 = vmatpush1.msra.mxu0 0.0
    %4469 = vmatprep.subr.mxu0 0.0
    %4470 = vmatpush1.msra.mxu0 0.0
    %4471 = vmatprep.subr.mxu0 0.0
    %4472 = vmatpush1.msra.mxu0 0.0
    %4473 = vmatprep.subr.mxu0 0.0
    %4474 = vmatpush1.msra.mxu0 0.0
    %4475 = vmatprep.subr.mxu0 0.0
    %4476 = vmatpush1.msra.mxu0 0.0
    %4477 = vmatprep.subr.mxu0 0.0
    %4478 = vmatpush1.msra.mxu0 0.0
    %4479 = vmatprep.subr.mxu0 0.0
    %4480 = vmatpush1.msra.mxu0 0.0
    %4481 = vmatprep.subr.mxu0 0.0
    %4482 = vmatpush1.msra.mxu0 0.0
    %4483 = vmatprep.subr.mxu0 0.0
    %4484 = vmatpush1.msra.mxu0 0.0
    %4485 = vmatprep.subr.mxu0 0.0
    %4486 = vmatpush1.msra.mxu0 0.0
    %4487 = vmatprep.subr.mxu0 0.0
    %4488 = vmatpush1.msra.mxu0 0.0
    %4489 = vmatprep.subr.mxu0 0.0
    %4490 = vmatpush1.msra.mxu0 0.0
    %4491 = vmatprep.subr.mxu0 0.0
    %4492 = vmatpush1.msra.mxu0 0.0
    %4493 = vmatprep.mubr.f32.mxu0 0.0
    %4494 = vmatmul.mubr.f32.gmra.mrb[0].mxu0 %v4427
    %v4495 = vpop.f32.mrb[0].mxu0
    %v4496 = vadd.f32 %v4425, %v4495
    %v4497 = vpop.f32.mrb[0].mxu0
    %4498 = vdwg.mxu0
    %v4499 = vsub.f32 0.0, %v4496
    %v4500 = vmul.f32 %v4499, 1.442695
    %v4501 = vpow.pop %v4500
    %v4502 = vadd.f32 %v4501, 1.0
    %v4503 = vrcp.pop %v4502
    %v4504 = vmul.f32 1.0, %v4503
    %v4505 = vld [vmem:[%s13] sm:$0xff]
    %v4506 = vld [vmem:[%s13 + $0x8] sm:$0xff]
    %v4507 = vld [vmem:[%s13 + $0x10] sm:$0xff]
    %v4508 = vld [vmem:[%s13 + $0x18] sm:$0xff]
    %v4509 = vld [vmem:[%s13 + $0x20] sm:$0xff]
    %v4510 = vld [vmem:[%s13 + $0x28] sm:$0xff]
    %v4511 = vld [vmem:[%s13 + $0x30] sm:$0xff]
    %v4512 = vld [vmem:[%s13 + $0x38] sm:$0xff]
    %v4513 = vld [vmem:[%s13 + $0x40] sm:$0xff]
    %v4514 = vld [vmem:[%s13 + $0x48] sm:$0xff]
    %v4515 = vld [vmem:[%s13 + $0x50] sm:$0xf]
    %v4516 = vld [vmem:[%s14] sm:$0x1]
    %v4518 = vsel %vm909, %v4504, 0
    %v4521 = vsel %vm722, %v4515, 0
    %4523 = vmatprep.subr.mxu0 0.0
    %4524 = vmatpush1.msra.mxu0 %v4505
    %4525 = vmatprep.subr.mxu0 0.0
    %4526 = vmatpush1.msra.mxu0 %v4506
    %4527 = vmatprep.subr.mxu0 0.0
    %4528 = vmatpush1.msra.mxu0 %v4507
    %4529 = vmatprep.subr.mxu0 0.0
    %4530 = vmatpush1.msra.mxu0 %v4508
    %4531 = vmatprep.subr.mxu0 0.0
    %4532 = vmatpush1.msra.mxu0 %v4509
    %4533 = vmatprep.subr.mxu0 0.0
    %4534 = vmatpush1.msra.mxu0 %v4510
    %4535 = vmatprep.subr.mxu0 0.0
    %4536 = vmatpush1.msra.mxu0 %v4511
    %4537 = vmatprep.subr.mxu0 0.0
    %4538 = vmatpush1.msra.mxu0 %v4512
    %4539 = vmatprep.subr.mxu0 0.0
    %4540 = vmatpush1.msra.mxu0 %v4513
    %4541 = vmatprep.subr.mxu0 0.0
    %4542 = vmatpush1.msra.mxu0 %v4514
    %4543 = vmatprep.subr.mxu0 0.0
    %4544 = vmatpush1.msra.mxu0 %v4521
    %4545 = vmatprep.subr.mxu0 0.0
    %4546 = vmatpush1.msra.mxu0 0.0
    %4547 = vmatprep.subr.mxu0 0.0
    %4548 = vmatpush1.msra.mxu0 0.0
    %4549 = vmatprep.subr.mxu0 0.0
    %4550 = vmatpush1.msra.mxu0 0.0
    %4551 = vmatprep.subr.mxu0 0.0
    %4552 = vmatpush1.msra.mxu0 0.0
    %4553 = vmatprep.subr.mxu0 0.0
    %4554 = vmatpush1.msra.mxu0 0.0
    %4555 = vmatprep.subr.mxu0 0.0
    %4556 = vmatpush1.msra.mxu0 0.0
    %4557 = vmatprep.subr.mxu0 0.0
    %4558 = vmatpush1.msra.mxu0 0.0
    %4559 = vmatprep.subr.mxu0 0.0
    %4560 = vmatpush1.msra.mxu0 0.0
    %4561 = vmatprep.subr.mxu0 0.0
    %4562 = vmatpush1.msra.mxu0 0.0
    %4563 = vmatprep.subr.mxu0 0.0
    %4564 = vmatpush1.msra.mxu0 0.0
    %4565 = vmatprep.subr.mxu0 0.0
    %4566 = vmatpush1.msra.mxu0 0.0
    %4567 = vmatprep.subr.mxu0 0.0
    %4568 = vmatpush1.msra.mxu0 0.0
    %4569 = vmatprep.subr.mxu0 0.0
    %4570 = vmatpush1.msra.mxu0 0.0
    %4571 = vmatprep.subr.mxu0 0.0
    %4572 = vmatpush1.msra.mxu0 0.0
    %4573 = vmatprep.subr.mxu0 0.0
    %4574 = vmatpush1.msra.mxu0 0.0
    %4575 = vmatprep.subr.mxu0 0.0
    %4576 = vmatpush1.msra.mxu0 0.0
    %4577 = vmatprep.subr.mxu0 0.0
    %4578 = vmatpush1.msra.mxu0 0.0
    %4579 = vmatprep.subr.mxu0 0.0
    %4580 = vmatpush1.msra.mxu0 0.0
    %4581 = vmatprep.subr.mxu0 0.0
    %4582 = vmatpush1.msra.mxu0 0.0
    %4583 = vmatprep.subr.mxu0 0.0
    %4584 = vmatpush1.msra.mxu0 0.0
    %4585 = vmatprep.subr.mxu0 0.0
    %4586 = vmatpush1.msra.mxu0 0.0
    %4587 = vmatprep.mubr.f32.mxu0 0.0
    %4588 = vmatmul.mubr.f32.gmra.mrb[0].mxu0 %v4518
    %v4589 = vpop.f32.mrb[0].mxu0
    %v4590 = vadd.f32 %v4516, %v4589
    %v4591 = vpop.f32.mrb[0].mxu0
    %4592 = vdwg.mxu0
    %4593 = vst.msk [vmem:[#allocation4 + $0x1] sm:$0x1] %vm2332, %v4590
    // Predicated region
    $region62: #{lenet_forward.1} parent=1 // pred_check
      _
    $region63: #{lenet_forward.1} parent=1 // pred_check_branch
      %4595 = sbr.rel (0) target = $region65
    $region64: #{lenet_forward.1} parent=1 // pred_region
      %s4597 = ssub.s32 32, 32
      %4598 = vsyncadd [#allocation5], %s4597
      %s4600 = sshll.u32 [#allocation4], 4
      %s4601 = int_to_ptr.vmem [resolvable:$true] %s4600
      %4603 = dma.vmem_to_hbm [thread:$0]  %s4601, 32, %s15, [#allocation5]
    $region65: #{lenet_forward.1} parent=1 // pred_fallthru
      _
    // Predicated region
    $region66: #{lenet_forward.1} parent=1 // pred_check
      _
    $region67: #{lenet_forward.1} parent=1 // pred_check_branch
      %4605 = sbr.rel (0) target = $region69
    $region68: #{lenet_forward.1} parent=1 // pred_region
      %4606 = dma.done [#allocation5], 32
    $region69: #{lenet_forward.1} parent=1 // pred_fallthru
      _
    %4607 = vsyncpa [#allocation5], 1

</llo_original>
